<compile_context>
chip_gen: v7x
topology: tpu7x:2x2x1
jax: 0.10.0
libtpu: 0.0.40
codegen_flags: <defaults>
</compile_context>

<pallas_src>
import functools

import jax
import jax.numpy as jnp
from jax import lax
from jax.experimental import pallas as pl
from jax.experimental.pallas import tpu as pltpu

F32 = jnp.float32
BF16 = jnp.bfloat16

# Bit-reversal permutation of 4-bit row indices (self-inverse): the kernel's
# stored row order at the 16-row level.
_PERM16 = tuple(int(f"{i:04b}"[::-1], 2) for i in range(16))

# Row offsets of the packed big-weight slab (bf16, 256 lanes).
_R_L2, _R_T1, _R_T2, _R_T3, _R_T4, _R_QK, _R_WV = 0, 1024, 1168, 1312, 1456, 1600, 1744
_BIG_ROWS = 1888

# Row indices of the packed small f32 slab (128 lanes).
(_V_GBN0, _V_BBN0, _V_GBN1, _V_BBN1, _V_GBN2, _V_BBN2, _V_GBN3, _V_BBN3,
 _V_GBN4, _V_BBN4, _V_BT4, _V_BQ, _V_BK, _V_BVH, _V_BVP, _V_GAMMA) = range(16)


# --------------------------------------------------------------------------
# The single fused Pallas kernel
# --------------------------------------------------------------------------
def _generator_kernel(prev_ref, z_ref, vec_ref, bn1d_ref, prevw_ref, wl1_ref,
                      bigw_hbm, out_ref, bigw, dma_sem, *, B, attention):
    # ---- overlap: start the one big-weight DMA, then compute the small stuff ---
    big_copy = pltpu.make_async_copy(bigw_hbm, bigw, dma_sem)
    big_copy.start()

    def vrow(i, n=128):                       # (1, n) f32 row of the small slab
        return vec_ref[i:i + 1, 0:n]

    def mm(a, w):                             # bf16 MXU matmul, f32 accumulation
        return jnp.dot(a.astype(BF16), w, preferred_element_type=F32)

    def bn_act(x, g, b, slope=0.0):
        # Batch-stat BatchNorm (torch train-mode) followed by (leaky)ReLU.
        mu = jnp.mean(x, axis=0, keepdims=True)
        var = jnp.mean(jnp.square(x - mu), axis=0, keepdims=True)
        y = (x - mu) * lax.rsqrt(var + 1e-5) * g + b
        if slope == 0.0:
            return jnp.maximum(y, 0.0)
        return jnp.where(y >= 0.0, y, slope * y)

    def split_kh(y, H):
        # y: (B*H, 256), rows (b, s), cols (kh, co)  ->  (B*2H, 128) with stored
        # rows b*2H + kh*H + s  (the transposed conv's [kh=0 rows ; kh=1 rows]).
        y0 = y[:, 0:128].reshape(B, H, 128)
        y1 = y[:, 128:256].reshape(B, H, 128)
        return jnp.concatenate([y0, y1], axis=1).reshape(B * 2 * H, 128)

    # ---------------- prev_x branch (rows arrive in bit-reversed order) --------
    # Conv/linear biases in front of batch-stat BN are cancelled -> not applied.
    h0p = bn_act(mm(prev_ref[...], prevw_ref[0:128, :]),
                 vrow(_V_GBN0, 16), vrow(_V_BBN0, 16), 0.2)            # (B*16, 16)

    def prev_down(x, w, g, be, H):
        # Conv2d(16,16,(2,1),stride 2) on bit-reversed rows: the kh=0 taps are the
        # first half of each batch block, the kh=1 taps the second half.
        Hh = H // 2
        x3 = x.reshape(B, H, 16)
        xe = x3[:, :Hh, :].reshape(B * Hh, 16)
        xo = x3[:, Hh:, :].reshape(B * Hh, 16)
        return bn_act(mm(xe, w[0:16, :]) + mm(xo, w[16:32, :]), g, be, 0.2)

    h1p = prev_down(h0p, prevw_ref[128:160, :], vrow(_V_GBN1, 16), vrow(_V_BBN1, 16), 16)
    h2p = prev_down(h1p, prevw_ref[160:192, :], vrow(_V_GBN2, 16), vrow(_V_BBN2, 16), 8)
    h3p = prev_down(h2p, prevw_ref[192:224, :], vrow(_V_GBN3, 16), vrow(_V_BBN3, 16), 4)

    # ---------------- z branch: linear1 (only small weights needed so far) -----
    h0 = bn_act(mm(z_ref[...], wl1_ref[...]), bn1d_ref[0:1, :], bn1d_ref[1:2, :])

    # Everything from linear2 onward needs the big slab.
    big_copy.wait()

    h1f = bn_act(mm(h0, bigw[_R_L2:_R_L2 + 1024, :]),
                 bn1d_ref[2:3, 0:256], bn1d_ref[3:4, 0:256])           # (B, 256)

    g4, b4 = vrow(_V_GBN4), vrow(_V_BBN4)                              # shared bn2d_4

    # ---------------- deconv t1: (z view ++ h3_prev) -> (B*4, 128) --------------
    # linear2's output columns were de-interleaved at init, so row b*2+t of this
    # reshape is exactly the torch view h1[b, :, t]; no in-kernel lane gather.
    zrows = h1f.reshape(B * 2, 128)
    y1 = (mm(zrows, bigw[_R_T1:_R_T1 + 128, :]) +
          mm(h3p, bigw[_R_T1 + 128:_R_T1 + 144, :]))
    h2_h = bn_act(split_kh(y1, 2), g4, b4)                             # (B*4, 128)
    h2_p = h2p                                                         # (B*4, 16)

    # ---------------- Self_Attn(144), split 128+16 channels, batched -----------
    if attention:
        wq_h = bigw[_R_QK:_R_QK + 128, 0:18]
        wq_p = bigw[_R_QK + 128:_R_QK + 144, 0:18]
        wk_h = bigw[_R_QK:_R_QK + 128, 128:146]
        wk_p = bigw[_R_QK + 128:_R_QK + 144, 128:146]
        wv_hh = bigw[_R_WV:_R_WV + 128, 0:128]
        wv_hp = bigw[_R_WV:_R_WV + 128, 128:144]
        wv_ph = bigw[_R_WV + 128:_R_WV + 144, 0:128]
        wv_pp = bigw[_R_WV + 128:_R_WV + 144, 128:144]
        bq, bk = vrow(_V_BQ, 18), vrow(_V_BK, 18)
        bv_h, bv_p = vrow(_V_BVH, 128), vrow(_V_BVP, 16)
        gmm = vec_ref[_V_GAMMA:_V_GAMMA + 1, 0:1]                      # (1, 1)

        def attn_block(x_h, x_p, N):
            q = (mm(x_h, wq_h) + mm(x_p, wq_p) + bq).reshape(B, N, 18)
            k = (mm(x_h, wk_h) + mm(x_p, wk_p) + bk).reshape(B, N, 18)
            v_h = (mm(x_h, wv_hh) + mm(x_p, wv_ph) + bv_h).reshape(B, N, 128)
            v_p = (mm(x_h, wv_hp) + mm(x_p, wv_pp) + bv_p).reshape(B, N, 16)
            s = lax.dot_general(q, k, (((2,), (2,)), ((0,), (0,))),
                                preferred_element_type=F32)            # (B, N, N)
            s = s - jnp.max(s, axis=-1, keepdims=True)
            e = jnp.exp(s)
            a = e * pl.reciprocal(jnp.sum(e, axis=-1, keepdims=True), approx=True)
            oh = lax.dot_general(a, v_h, (((2,), (1,)), ((0,), (0,))),
                                 preferred_element_type=F32).reshape(B * N, 128)
            op = lax.dot_general(a, v_p, (((2,), (1,)), ((0,), (0,))),
                                 preferred_element_type=F32).reshape(B * N, 16)
            return gmm * oh + x_h, gmm * op + x_p

        h2_h, h2_p = attn_block(h2_h, h2_p, 4)

    # ---------------- deconv t2 / t3 (bn2d_4 shared, as in torch) ---------------
    h3_h = bn_act(split_kh(mm(h2_h, bigw[_R_T2:_R_T2 + 128, :]) +
                           mm(h2_p, bigw[_R_T2 + 128:_R_T2 + 144, :]), 4), g4, b4)
    h3_p = h1p                                                         # (B*8, 16)
    h4_h = bn_act(split_kh(mm(h3_h, bigw[_R_T3:_R_T3 + 128, :]) +
                           mm(h3_p, bigw[_R_T3 + 128:_R_T3 + 144, :]), 8), g4, b4)
    h4_p = h0p                                                         # (B*16, 16)

    if attention:
        h4_h, h4_p = attn_block(h4_h, h4_p, 16)

    # ---------------- final deconv -> pitch logits -> one_hot(argmax) -----------
    logits = (mm(h4_h, bigw[_R_T4:_R_T4 + 128, 0:128]) +
              mm(h4_p, bigw[_R_T4 + 128:_R_T4 + 144, 0:128]) + vrow(_V_BT4))
    # torch: one_hot(sigmoid(logits)); argmax is invariant under the monotone
    # sigmoid, so the sigmoid is skipped (identical except saturation ties).
    m = jnp.max(logits, axis=-1, keepdims=True)
    idx = lax.broadcasted_iota(jnp.int32, logits.shape, 1)
    cand = jnp.where(logits >= m, idx, jnp.int32(2 ** 30))
    first = jnp.min(cand, axis=-1, keepdims=True)                      # first max
    out_ref[...] = (idx == first).astype(F32)


# --------------------------------------------------------------------------
# Wrapper: one pallas_call for the whole forward pass
# --------------------------------------------------------------------------
def generator_forward(params, z, prev_x, attention=True):
    """Forward of `generator`.  prev_x is NCHW (B, 1, 16, 128); z is (B, 100)."""
    B = z.shape[0]
    P = 128  # 144 concat channels = 128 + 16 forces pitch_range == 128
    perm = jnp.array(_PERM16, jnp.int32)     # self-inverse bit-reversal

    # Feed prev_x rows in the kernel's bit-reversed stored order.
    prev_slab = prev_x[:, 0, :, :].astype(F32)[:, perm, :].reshape(B * 16, P)
    args = (prev_slab, z.astype(F32), params["vec"], params["bn1d"],
            params["prevw"], params["w_l1"], params["bigw"])

    out = pl.pallas_call(
        functools.partial(_generator_kernel, B=B, attention=attention),
        out_shape=jax.ShapeDtypeStruct((B * 16, P), F32),
        in_specs=[pl.BlockSpec(memory_space=pltpu.MemorySpace.VMEM)] * 6
                 + [pl.BlockSpec(memory_space=pl.ANY)],     # big slab: manual DMA
        out_specs=pl.BlockSpec(memory_space=pltpu.MemorySpace.VMEM),
        scratch_shapes=[pltpu.VMEM((_BIG_ROWS, 256), BF16),
                        pltpu.SemaphoreType.DMA],
    )(*args)

    # Rows come back in bit-reversed stored order -> restore natural time order.
    g_x = out.reshape(B, 16, P)[:, perm, :]
    return g_x[:, None, :, :]                                  # NCHW (B, 1, 16, P)


# --------------------------------------------------------------------------
# Deterministic parameter init (PyTorch shapes -> packed kernel slabs)
# --------------------------------------------------------------------------
def init_params(key, pitch_range=128):
    P = pitch_range
    assert P == 128, "144 concat channels = 128 + 16 forces pitch_range == 128"
    ks = iter(jax.random.split(key, 64))

    def nrm(shape, scale=0.05):
        return (scale * jax.random.normal(next(ks), shape)).astype(F32)

    def bn_pair(n):
        return 1.0 + nrm((n,), 0.02), nrm((n,), 0.02)

    def pad_row(v, width):
        v = jnp.ravel(v).astype(F32)
        return jnp.pad(v, (0, width - v.shape[0]))

    # --- prev_x branch convs.  Their biases feed batch-stat BN -> cancelled. ---
    prev_blocks = [jnp.transpose(nrm((16, 1, 1, P))[:, 0, 0, :])]       # (P, 16)
    bn_rows = list(bn_pair(16))                                         # bn2d_0
    for _ in range(3):                                                  # h1..h3_prev
        W = nrm((16, 16, 2, 1))
        prev_blocks.append(jnp.concatenate(
            [jnp.transpose(W[:, :, 0, 0]), jnp.transpose(W[:, :, 1, 0])], axis=0))
        bn_rows += list(bn_pair(16))                                    # bn2d_1..3
    prevw = jnp.concatenate(prev_blocks, axis=0).astype(BF16)           # (224, 16)

    # --- z branch (linear biases also cancelled by BN1d) ---
    w_l1 = jnp.transpose(nrm((1024, 100))).astype(BF16)                 # (100, 1024)
    g1d1, b1d1 = bn_pair(1024)
    w_l2 = jnp.transpose(nrm((256, 1024)))                              # (1024, 256)
    g1d2, b1d2 = bn_pair(256)
    # Fold the torch view h1[b,c,t] = flat[b, 2c+t] into the weight: permute the
    # output columns (and BN params) so cols [0:128] are t=0 and [128:256] t=1.
    col_perm = jnp.concatenate([jnp.arange(0, 256, 2), jnp.arange(1, 256, 2)])
    w_l2, g1d2, b1d2 = w_l2[:, col_perm], g1d2[col_perm], b1d2[col_perm]

    g4, b4 = bn_pair(P)                                                 # shared bn2d_4

    # --- ConvTranspose2d(144, P, (2,1), stride (2,2)) x3 (biases cancelled) ---
    def deconv_block():
        W = nrm((144, P, 2, 1))
        return jnp.concatenate([W[:, :, 0, 0], W[:, :, 1, 0]], axis=1)  # (144, 2P)
    T1, T2, T3 = deconv_block(), deconv_block(), deconv_block()

    # --- final ConvTranspose2d(144, 1, (1, P), stride (1, 2)) (bias kept) ---
    W4 = nrm((144, 1, 1, P))
    b4s = nrm((1,))
    T4 = jnp.pad(W4[:, 0, 0, :], ((0, 0), (0, 256 - P)))                # (144, 256)
    b_t4 = jnp.full((P,), b4s[0], F32)

    # --- Self_Attn(144): 1x1 convs 144->18 (q,k) and 144->144 (v); gamma = 0 ---
    wq = jnp.transpose(nrm((18, 144, 1, 1))[:, :, 0, 0])                # (144, 18)
    wk = jnp.transpose(nrm((18, 144, 1, 1))[:, :, 0, 0])
    wv = jnp.transpose(nrm((144, 144, 1, 1))[:, :, 0, 0])               # (144, 144)
    bq, bk, bv = nrm((18,)), nrm((18,)), nrm((144,))
    QK = jnp.zeros((144, 256), F32).at[:, 0:18].set(wq).at[:, 128:146].set(wk)
    WV = jnp.pad(wv, ((0, 0), (0, 256 - 144)))

    bigw = jnp.concatenate([w_l2, T1, T2, T3, T4, QK, WV], axis=0).astype(BF16)
    assert bigw.shape == (_BIG_ROWS, 256)

    vec = jnp.stack(
        [pad_row(r, 128) for r in bn_rows] +                 # bn2d_0..3 gamma/beta
        [pad_row(g4, 128), pad_row(b4, 128),                 # bn2d_4
         pad_row(b_t4, 128),                                 # h4 bias
         pad_row(bq, 128), pad_row(bk, 128),                 # attn q/k biases
         pad_row(bv[:128], 128), pad_row(bv[128:], 128),     # attn v bias (split)
         pad_row(jnp.zeros((1,), F32), 128)],                # gamma (init 0)
        axis=0)                                              # (16, 128)

    bn1d = jnp.stack([pad_row(g1d1, 1024), pad_row(b1d1, 1024),
                      pad_row(g1d2, 1024), pad_row(b1d2, 1024)], axis=0)  # (4, 1024)

    return {"vec": vec, "bn1d": bn1d, "prevw": prevw, "w_l1": w_l1, "bigw": bigw}


if __name__ == "__main__":
    key = jax.random.PRNGKey(0)
    kp, kz, kx = jax.random.split(key, 3)
    B, P = 2, 128
    params = init_params(kp, P)
    z = jax.random.normal(kz, (B, 100), F32)
    prev_x = jax.random.normal(kx, (B, 1, 16, P), F32)   # NCHW like PyTorch input

    fwd = jax.jit(functools.partial(generator_forward, attention=True))
    out = jax.block_until_ready(fwd(params, z, prev_x))

    assert out.shape == (B, 1, 16, P)
    # every time-step row must be exactly one-hot over the pitch axis
    assert bool(jnp.all(jnp.sum(out, axis=-1) == 1.0))
    assert bool(jnp.all(jnp.max(out, axis=-1) == 1.0))
    print("KERNEL_OK")
</pallas_src>

<mosaic_0001>
module attributes {stable_mosaic.version = 11 : i64} {
  func.func @_generator_kernel(%arg0: memref<32x128xf32, #tpu.memory_space<vmem>>, %arg1: memref<2x100xf32, #tpu.memory_space<vmem>>, %arg2: memref<16x128xf32, #tpu.memory_space<vmem>>, %arg3: memref<4x1024xf32, #tpu.memory_space<vmem>>, %arg4: memref<224x16xbf16, #tpu.memory_space<vmem>>, %arg5: memref<100x1024xbf16, #tpu.memory_space<vmem>>, %arg6: memref<1888x256xbf16, #tpu.memory_space<any>>, %arg7: memref<32x128xf32, #tpu.memory_space<vmem>>, %arg8: memref<1888x256xbf16, #tpu.memory_space<vmem>>, %arg9: memref<!tpu.dma_semaphore, #tpu.memory_space<semaphore_mem>>) attributes {dimension_semantics = [], scalar_prefetch = 0 : i64, scratch_operands = 2 : i64, tpu.core_type = #tpu.core_type<tc>} {
    tpu.enqueue_dma source(%arg6 : memref<1888x256xbf16, #tpu.memory_space<any>>) target(%arg8 : memref<1888x256xbf16, #tpu.memory_space<vmem>>) target_semaphore(%arg9 : memref<!tpu.dma_semaphore, #tpu.memory_space<semaphore_mem>>)
    %c0 = arith.constant 0 : index
    %c0_0 = arith.constant 0 : index
    %0 = vector.load %arg0[%c0, %c0_0] : memref<32x128xf32, #tpu.memory_space<vmem>>, vector<32x128xf32>
    %c0_1 = arith.constant 0 : index
    %c0_2 = arith.constant 0 : index
    %1 = vector.load %arg4[%c0_1, %c0_2] : memref<224x16xbf16, #tpu.memory_space<vmem>>, vector<128x16xbf16>
    %2 = arith.truncf %0 : vector<32x128xf32> to vector<32x128xbf16>
    %cst = arith.constant dense<0.000000e+00> : vector<32x16xf32>
    %3 = tpu.matmul %2, %1, %cst {dimension_numbers = #tpu.dot_dimension_numbers<[1], [0], [0], [1], [0, 0, 1, 1], [], []>} : vector<32x128xbf16>, vector<128x16xbf16>, vector<32x16xf32> -> vector<32x16xf32>
    %c0_3 = arith.constant 0 : index
    %c0_4 = arith.constant 0 : index
    %4 = vector.load %arg2[%c0_3, %c0_4] : memref<16x128xf32, #tpu.memory_space<vmem>>, vector<1x16xf32>
    %c1 = arith.constant 1 : index
    %c0_5 = arith.constant 0 : index
    %5 = vector.load %arg2[%c1, %c0_5] : memref<16x128xf32, #tpu.memory_space<vmem>>, vector<1x16xf32>
    %cst_6 = arith.constant dense<0.000000e+00> : vector<16xf32>
    %6 = vector.multi_reduction <add>, %3, %cst_6 [0] : vector<32x16xf32> to vector<16xf32>
    %7 = vector.shape_cast %6 : vector<16xf32> to vector<1x16xf32>
    %cst_7 = arith.constant 3.200000e+01 : f32
    %8 = vector.broadcast %cst_7 : f32 to vector<1x16xf32>
    %9 = arith.divf %7, %8 : vector<1x16xf32>
    %10 = vector.broadcast %9 : vector<1x16xf32> to vector<32x16xf32>
    %11 = arith.subf %3, %10 : vector<32x16xf32>
    %12 = arith.mulf %11, %11 : vector<32x16xf32>
    %cst_8 = arith.constant dense<0.000000e+00> : vector<16xf32>
    %13 = vector.multi_reduction <add>, %12, %cst_8 [0] : vector<32x16xf32> to vector<16xf32>
    %14 = vector.shape_cast %13 : vector<16xf32> to vector<1x16xf32>
    %cst_9 = arith.constant 3.200000e+01 : f32
    %15 = vector.broadcast %cst_9 : f32 to vector<1x16xf32>
    %16 = arith.divf %14, %15 : vector<1x16xf32>
    %17 = vector.broadcast %9 : vector<1x16xf32> to vector<32x16xf32>
    %18 = arith.subf %3, %17 : vector<32x16xf32>
    %cst_10 = arith.constant 9.99999974E-6 : f32
    %19 = vector.broadcast %cst_10 : f32 to vector<1x16xf32>
    %20 = arith.addf %16, %19 : vector<1x16xf32>
    %21 = math.rsqrt %20 : vector<1x16xf32>
    %22 = vector.broadcast %21 : vector<1x16xf32> to vector<32x16xf32>
    %23 = arith.mulf %18, %22 : vector<32x16xf32>
    %24 = vector.broadcast %4 : vector<1x16xf32> to vector<32x16xf32>
    %25 = arith.mulf %23, %24 : vector<32x16xf32>
    %26 = vector.broadcast %5 : vector<1x16xf32> to vector<32x16xf32>
    %27 = arith.addf %25, %26 : vector<32x16xf32>
    %cst_11 = arith.constant 0.000000e+00 : f32
    %28 = vector.broadcast %cst_11 : f32 to vector<32x16xf32>
    %29 = arith.cmpf oge, %27, %28 : vector<32x16xf32>
    %cst_12 = arith.constant 2.000000e-01 : f32
    %30 = vector.broadcast %cst_12 : f32 to vector<32x16xf32>
    %31 = arith.mulf %30, %27 : vector<32x16xf32>
    %32 = arith.select %29, %27, %31 : vector<32x16xi1>, vector<32x16xf32>
    %c128 = arith.constant 128 : index
    %c0_13 = arith.constant 0 : index
    %33 = vector.load %arg4[%c128, %c0_13] : memref<224x16xbf16, #tpu.memory_space<vmem>>, vector<32x16xbf16>
    %c2 = arith.constant 2 : index
    %c0_14 = arith.constant 0 : index
    %34 = vector.load %arg2[%c2, %c0_14] : memref<16x128xf32, #tpu.memory_space<vmem>>, vector<1x16xf32>
    %c3 = arith.constant 3 : index
    %c0_15 = arith.constant 0 : index
    %35 = vector.load %arg2[%c3, %c0_15] : memref<16x128xf32, #tpu.memory_space<vmem>>, vector<1x16xf32>
    %36 = vector.shape_cast %32 : vector<32x16xf32> to vector<2x16x16xf32>
    %37 = vector.extract_strided_slice %36 {offsets = [0, 0, 0], sizes = [2, 8, 16], strides = [1, 1, 1]} : vector<2x16x16xf32> to vector<2x8x16xf32>
    %38 = vector.shape_cast %37 : vector<2x8x16xf32> to vector<16x16xf32>
    %39 = vector.extract_strided_slice %36 {offsets = [0, 8, 0], sizes = [2, 8, 16], strides = [1, 1, 1]} : vector<2x16x16xf32> to vector<2x8x16xf32>
    %40 = vector.shape_cast %39 : vector<2x8x16xf32> to vector<16x16xf32>
    %41 = vector.extract_strided_slice %33 {offsets = [0, 0], sizes = [16, 16], strides = [1, 1]} : vector<32x16xbf16> to vector<16x16xbf16>
    %42 = arith.truncf %38 : vector<16x16xf32> to vector<16x16xbf16>
    %cst_16 = arith.constant dense<0.000000e+00> : vector<16x16xf32>
    %43 = tpu.matmul %42, %41, %cst_16 {dimension_numbers = #tpu.dot_dimension_numbers<[1], [0], [0], [1], [0, 0, 1, 1], [], []>} : vector<16x16xbf16>, vector<16x16xbf16>, vector<16x16xf32> -> vector<16x16xf32>
    %44 = vector.extract_strided_slice %33 {offsets = [16, 0], sizes = [16, 16], strides = [1, 1]} : vector<32x16xbf16> to vector<16x16xbf16>
    %45 = arith.truncf %40 : vector<16x16xf32> to vector<16x16xbf16>
    %cst_17 = arith.constant dense<0.000000e+00> : vector<16x16xf32>
    %46 = tpu.matmul %45, %44, %cst_17 {dimension_numbers = #tpu.dot_dimension_numbers<[1], [0], [0], [1], [0, 0, 1, 1], [], []>} : vector<16x16xbf16>, vector<16x16xbf16>, vector<16x16xf32> -> vector<16x16xf32>
    %47 = arith.addf %43, %46 : vector<16x16xf32>
    %cst_18 = arith.constant dense<0.000000e+00> : vector<16xf32>
    %48 = vector.multi_reduction <add>, %47, %cst_18 [0] : vector<16x16xf32> to vector<16xf32>
    %49 = vector.shape_cast %48 : vector<16xf32> to vector<1x16xf32>
    %cst_19 = arith.constant 1.600000e+01 : f32
    %50 = vector.broadcast %cst_19 : f32 to vector<1x16xf32>
    %51 = arith.divf %49, %50 : vector<1x16xf32>
    %52 = vector.broadcast %51 : vector<1x16xf32> to vector<16x16xf32>
    %53 = arith.subf %47, %52 : vector<16x16xf32>
    %54 = arith.mulf %53, %53 : vector<16x16xf32>
    %cst_20 = arith.constant dense<0.000000e+00> : vector<16xf32>
    %55 = vector.multi_reduction <add>, %54, %cst_20 [0] : vector<16x16xf32> to vector<16xf32>
    %56 = vector.shape_cast %55 : vector<16xf32> to vector<1x16xf32>
    %cst_21 = arith.constant 1.600000e+01 : f32
    %57 = vector.broadcast %cst_21 : f32 to vector<1x16xf32>
    %58 = arith.divf %56, %57 : vector<1x16xf32>
    %59 = vector.broadcast %51 : vector<1x16xf32> to vector<16x16xf32>
    %60 = arith.subf %47, %59 : vector<16x16xf32>
    %cst_22 = arith.constant 9.99999974E-6 : f32
    %61 = vector.broadcast %cst_22 : f32 to vector<1x16xf32>
    %62 = arith.addf %58, %61 : vector<1x16xf32>
    %63 = math.rsqrt %62 : vector<1x16xf32>
    %64 = vector.broadcast %63 : vector<1x16xf32> to vector<16x16xf32>
    %65 = arith.mulf %60, %64 : vector<16x16xf32>
    %66 = vector.broadcast %34 : vector<1x16xf32> to vector<16x16xf32>
    %67 = arith.mulf %65, %66 : vector<16x16xf32>
    %68 = vector.broadcast %35 : vector<1x16xf32> to vector<16x16xf32>
    %69 = arith.addf %67, %68 : vector<16x16xf32>
    %cst_23 = arith.constant 0.000000e+00 : f32
    %70 = vector.broadcast %cst_23 : f32 to vector<16x16xf32>
    %71 = arith.cmpf oge, %69, %70 : vector<16x16xf32>
    %cst_24 = arith.constant 2.000000e-01 : f32
    %72 = vector.broadcast %cst_24 : f32 to vector<16x16xf32>
    %73 = arith.mulf %72, %69 : vector<16x16xf32>
    %74 = arith.select %71, %69, %73 : vector<16x16xi1>, vector<16x16xf32>
    %c160 = arith.constant 160 : index
    %c0_25 = arith.constant 0 : index
    %75 = vector.load %arg4[%c160, %c0_25] : memref<224x16xbf16, #tpu.memory_space<vmem>>, vector<32x16xbf16>
    %c4 = arith.constant 4 : index
    %c0_26 = arith.constant 0 : index
    %76 = vector.load %arg2[%c4, %c0_26] : memref<16x128xf32, #tpu.memory_space<vmem>>, vector<1x16xf32>
    %c5 = arith.constant 5 : index
    %c0_27 = arith.constant 0 : index
    %77 = vector.load %arg2[%c5, %c0_27] : memref<16x128xf32, #tpu.memory_space<vmem>>, vector<1x16xf32>
    %78 = vector.shape_cast %74 : vector<16x16xf32> to vector<2x8x16xf32>
    %79 = vector.extract_strided_slice %78 {offsets = [0, 0, 0], sizes = [2, 4, 16], strides = [1, 1, 1]} : vector<2x8x16xf32> to vector<2x4x16xf32>
    %80 = vector.shape_cast %79 : vector<2x4x16xf32> to vector<8x16xf32>
    %81 = vector.extract_strided_slice %78 {offsets = [0, 4, 0], sizes = [2, 4, 16], strides = [1, 1, 1]} : vector<2x8x16xf32> to vector<2x4x16xf32>
    %82 = vector.shape_cast %81 : vector<2x4x16xf32> to vector<8x16xf32>
    %83 = vector.extract_strided_slice %75 {offsets = [0, 0], sizes = [16, 16], strides = [1, 1]} : vector<32x16xbf16> to vector<16x16xbf16>
    %84 = arith.truncf %80 : vector<8x16xf32> to vector<8x16xbf16>
    %cst_28 = arith.constant dense<0.000000e+00> : vector<8x16xf32>
    %85 = tpu.matmul %84, %83, %cst_28 {dimension_numbers = #tpu.dot_dimension_numbers<[1], [0], [0], [1], [0, 0, 1, 1], [], []>} : vector<8x16xbf16>, vector<16x16xbf16>, vector<8x16xf32> -> vector<8x16xf32>
    %86 = vector.extract_strided_slice %75 {offsets = [16, 0], sizes = [16, 16], strides = [1, 1]} : vector<32x16xbf16> to vector<16x16xbf16>
    %87 = arith.truncf %82 : vector<8x16xf32> to vector<8x16xbf16>
    %cst_29 = arith.constant dense<0.000000e+00> : vector<8x16xf32>
    %88 = tpu.matmul %87, %86, %cst_29 {dimension_numbers = #tpu.dot_dimension_numbers<[1], [0], [0], [1], [0, 0, 1, 1], [], []>} : vector<8x16xbf16>, vector<16x16xbf16>, vector<8x16xf32> -> vector<8x16xf32>
    %89 = arith.addf %85, %88 : vector<8x16xf32>
    %cst_30 = arith.constant dense<0.000000e+00> : vector<16xf32>
    %90 = vector.multi_reduction <add>, %89, %cst_30 [0] : vector<8x16xf32> to vector<16xf32>
    %91 = vector.shape_cast %90 : vector<16xf32> to vector<1x16xf32>
    %cst_31 = arith.constant 8.000000e+00 : f32
    %92 = vector.broadcast %cst_31 : f32 to vector<1x16xf32>
    %93 = arith.divf %91, %92 : vector<1x16xf32>
    %94 = vector.broadcast %93 : vector<1x16xf32> to vector<8x16xf32>
    %95 = arith.subf %89, %94 : vector<8x16xf32>
    %96 = arith.mulf %95, %95 : vector<8x16xf32>
    %cst_32 = arith.constant dense<0.000000e+00> : vector<16xf32>
    %97 = vector.multi_reduction <add>, %96, %cst_32 [0] : vector<8x16xf32> to vector<16xf32>
    %98 = vector.shape_cast %97 : vector<16xf32> to vector<1x16xf32>
    %cst_33 = arith.constant 8.000000e+00 : f32
    %99 = vector.broadcast %cst_33 : f32 to vector<1x16xf32>
    %100 = arith.divf %98, %99 : vector<1x16xf32>
    %101 = vector.broadcast %93 : vector<1x16xf32> to vector<8x16xf32>
    %102 = arith.subf %89, %101 : vector<8x16xf32>
    %cst_34 = arith.constant 9.99999974E-6 : f32
    %103 = vector.broadcast %cst_34 : f32 to vector<1x16xf32>
    %104 = arith.addf %100, %103 : vector<1x16xf32>
    %105 = math.rsqrt %104 : vector<1x16xf32>
    %106 = vector.broadcast %105 : vector<1x16xf32> to vector<8x16xf32>
    %107 = arith.mulf %102, %106 : vector<8x16xf32>
    %108 = vector.broadcast %76 : vector<1x16xf32> to vector<8x16xf32>
    %109 = arith.mulf %107, %108 : vector<8x16xf32>
    %110 = vector.broadcast %77 : vector<1x16xf32> to vector<8x16xf32>
    %111 = arith.addf %109, %110 : vector<8x16xf32>
    %cst_35 = arith.constant 0.000000e+00 : f32
    %112 = vector.broadcast %cst_35 : f32 to vector<8x16xf32>
    %113 = arith.cmpf oge, %111, %112 : vector<8x16xf32>
    %cst_36 = arith.constant 2.000000e-01 : f32
    %114 = vector.broadcast %cst_36 : f32 to vector<8x16xf32>
    %115 = arith.mulf %114, %111 : vector<8x16xf32>
    %116 = arith.select %113, %111, %115 : vector<8x16xi1>, vector<8x16xf32>
    %c192 = arith.constant 192 : index
    %c0_37 = arith.constant 0 : index
    %117 = vector.load %arg4[%c192, %c0_37] : memref<224x16xbf16, #tpu.memory_space<vmem>>, vector<32x16xbf16>
    %c6 = arith.constant 6 : index
    %c0_38 = arith.constant 0 : index
    %118 = vector.load %arg2[%c6, %c0_38] : memref<16x128xf32, #tpu.memory_space<vmem>>, vector<1x16xf32>
    %c7 = arith.constant 7 : index
    %c0_39 = arith.constant 0 : index
    %119 = vector.load %arg2[%c7, %c0_39] : memref<16x128xf32, #tpu.memory_space<vmem>>, vector<1x16xf32>
    %120 = vector.shape_cast %116 : vector<8x16xf32> to vector<2x4x16xf32>
    %121 = vector.extract_strided_slice %120 {offsets = [0, 0, 0], sizes = [2, 2, 16], strides = [1, 1, 1]} : vector<2x4x16xf32> to vector<2x2x16xf32>
    %122 = vector.shape_cast %121 : vector<2x2x16xf32> to vector<4x16xf32>
    %123 = vector.extract_strided_slice %120 {offsets = [0, 2, 0], sizes = [2, 2, 16], strides = [1, 1, 1]} : vector<2x4x16xf32> to vector<2x2x16xf32>
    %124 = vector.shape_cast %123 : vector<2x2x16xf32> to vector<4x16xf32>
    %125 = vector.extract_strided_slice %117 {offsets = [0, 0], sizes = [16, 16], strides = [1, 1]} : vector<32x16xbf16> to vector<16x16xbf16>
    %126 = arith.truncf %122 : vector<4x16xf32> to vector<4x16xbf16>
    %cst_40 = arith.constant dense<0.000000e+00> : vector<4x16xf32>
    %127 = tpu.matmul %126, %125, %cst_40 {dimension_numbers = #tpu.dot_dimension_numbers<[1], [0], [0], [1], [0, 0, 1, 1], [], []>} : vector<4x16xbf16>, vector<16x16xbf16>, vector<4x16xf32> -> vector<4x16xf32>
    %128 = vector.extract_strided_slice %117 {offsets = [16, 0], sizes = [16, 16], strides = [1, 1]} : vector<32x16xbf16> to vector<16x16xbf16>
    %129 = arith.truncf %124 : vector<4x16xf32> to vector<4x16xbf16>
    %cst_41 = arith.constant dense<0.000000e+00> : vector<4x16xf32>
    %130 = tpu.matmul %129, %128, %cst_41 {dimension_numbers = #tpu.dot_dimension_numbers<[1], [0], [0], [1], [0, 0, 1, 1], [], []>} : vector<4x16xbf16>, vector<16x16xbf16>, vector<4x16xf32> -> vector<4x16xf32>
    %131 = arith.addf %127, %130 : vector<4x16xf32>
    %cst_42 = arith.constant dense<0.000000e+00> : vector<16xf32>
    %132 = vector.multi_reduction <add>, %131, %cst_42 [0] : vector<4x16xf32> to vector<16xf32>
    %133 = vector.shape_cast %132 : vector<16xf32> to vector<1x16xf32>
    %cst_43 = arith.constant 4.000000e+00 : f32
    %134 = vector.broadcast %cst_43 : f32 to vector<1x16xf32>
    %135 = arith.divf %133, %134 : vector<1x16xf32>
    %136 = vector.broadcast %135 : vector<1x16xf32> to vector<4x16xf32>
    %137 = arith.subf %131, %136 : vector<4x16xf32>
    %138 = arith.mulf %137, %137 : vector<4x16xf32>
    %cst_44 = arith.constant dense<0.000000e+00> : vector<16xf32>
    %139 = vector.multi_reduction <add>, %138, %cst_44 [0] : vector<4x16xf32> to vector<16xf32>
    %140 = vector.shape_cast %139 : vector<16xf32> to vector<1x16xf32>
    %cst_45 = arith.constant 4.000000e+00 : f32
    %141 = vector.broadcast %cst_45 : f32 to vector<1x16xf32>
    %142 = arith.divf %140, %141 : vector<1x16xf32>
    %143 = vector.broadcast %135 : vector<1x16xf32> to vector<4x16xf32>
    %144 = arith.subf %131, %143 : vector<4x16xf32>
    %cst_46 = arith.constant 9.99999974E-6 : f32
    %145 = vector.broadcast %cst_46 : f32 to vector<1x16xf32>
    %146 = arith.addf %142, %145 : vector<1x16xf32>
    %147 = math.rsqrt %146 : vector<1x16xf32>
    %148 = vector.broadcast %147 : vector<1x16xf32> to vector<4x16xf32>
    %149 = arith.mulf %144, %148 : vector<4x16xf32>
    %150 = vector.broadcast %118 : vector<1x16xf32> to vector<4x16xf32>
    %151 = arith.mulf %149, %150 : vector<4x16xf32>
    %152 = vector.broadcast %119 : vector<1x16xf32> to vector<4x16xf32>
    %153 = arith.addf %151, %152 : vector<4x16xf32>
    %cst_47 = arith.constant 0.000000e+00 : f32
    %154 = vector.broadcast %cst_47 : f32 to vector<4x16xf32>
    %155 = arith.cmpf oge, %153, %154 : vector<4x16xf32>
    %cst_48 = arith.constant 2.000000e-01 : f32
    %156 = vector.broadcast %cst_48 : f32 to vector<4x16xf32>
    %157 = arith.mulf %156, %153 : vector<4x16xf32>
    %158 = arith.select %155, %153, %157 : vector<4x16xi1>, vector<4x16xf32>
    %c0_49 = arith.constant 0 : index
    %c0_50 = arith.constant 0 : index
    %159 = vector.load %arg1[%c0_49, %c0_50] : memref<2x100xf32, #tpu.memory_space<vmem>>, vector<2x100xf32>
    %c0_51 = arith.constant 0 : index
    %c0_52 = arith.constant 0 : index
    %160 = vector.load %arg5[%c0_51, %c0_52] : memref<100x1024xbf16, #tpu.memory_space<vmem>>, vector<100x1024xbf16>
    %161 = arith.truncf %159 : vector<2x100xf32> to vector<2x100xbf16>
    %cst_53 = arith.constant dense<0.000000e+00> : vector<2x1024xf32>
    %162 = tpu.matmul %161, %160, %cst_53 {dimension_numbers = #tpu.dot_dimension_numbers<[1], [0], [0], [1], [0, 0, 1, 1], [], []>} : vector<2x100xbf16>, vector<100x1024xbf16>, vector<2x1024xf32> -> vector<2x1024xf32>
    %c0_54 = arith.constant 0 : index
    %c0_55 = arith.constant 0 : index
    %163 = vector.load %arg3[%c0_54, %c0_55] : memref<4x1024xf32, #tpu.memory_space<vmem>>, vector<1x1024xf32>
    %c1_56 = arith.constant 1 : index
    %c0_57 = arith.constant 0 : index
    %164 = vector.load %arg3[%c1_56, %c0_57] : memref<4x1024xf32, #tpu.memory_space<vmem>>, vector<1x1024xf32>
    %cst_58 = arith.constant dense<0.000000e+00> : vector<1024xf32>
    %165 = vector.multi_reduction <add>, %162, %cst_58 [0] : vector<2x1024xf32> to vector<1024xf32>
    %166 = vector.shape_cast %165 : vector<1024xf32> to vector<1x1024xf32>
    %cst_59 = arith.constant 2.000000e+00 : f32
    %167 = vector.broadcast %cst_59 : f32 to vector<1x1024xf32>
    %168 = arith.divf %166, %167 : vector<1x1024xf32>
    %169 = vector.broadcast %168 : vector<1x1024xf32> to vector<2x1024xf32>
    %170 = arith.subf %162, %169 : vector<2x1024xf32>
    %171 = arith.mulf %170, %170 : vector<2x1024xf32>
    %cst_60 = arith.constant dense<0.000000e+00> : vector<1024xf32>
    %172 = vector.multi_reduction <add>, %171, %cst_60 [0] : vector<2x1024xf32> to vector<1024xf32>
    %173 = vector.shape_cast %172 : vector<1024xf32> to vector<1x1024xf32>
    %cst_61 = arith.constant 2.000000e+00 : f32
    %174 = vector.broadcast %cst_61 : f32 to vector<1x1024xf32>
    %175 = arith.divf %173, %174 : vector<1x1024xf32>
    %176 = vector.broadcast %168 : vector<1x1024xf32> to vector<2x1024xf32>
    %177 = arith.subf %162, %176 : vector<2x1024xf32>
    %cst_62 = arith.constant 9.99999974E-6 : f32
    %178 = vector.broadcast %cst_62 : f32 to vector<1x1024xf32>
    %179 = arith.addf %175, %178 : vector<1x1024xf32>
    %180 = math.rsqrt %179 : vector<1x1024xf32>
    %181 = vector.broadcast %180 : vector<1x1024xf32> to vector<2x1024xf32>
    %182 = arith.mulf %177, %181 : vector<2x1024xf32>
    %183 = vector.broadcast %163 : vector<1x1024xf32> to vector<2x1024xf32>
    %184 = arith.mulf %182, %183 : vector<2x1024xf32>
    %185 = vector.broadcast %164 : vector<1x1024xf32> to vector<2x1024xf32>
    %186 = arith.addf %184, %185 : vector<2x1024xf32>
    %cst_63 = arith.constant 0.000000e+00 : f32
    %187 = vector.broadcast %cst_63 : f32 to vector<2x1024xf32>
    %188 = arith.maximumf %186, %187 : vector<2x1024xf32>
    tpu.wait_dma2 semaphore(%arg9 : memref<!tpu.dma_semaphore, #tpu.memory_space<semaphore_mem>>) src(%arg6 : memref<1888x256xbf16, #tpu.memory_space<any>>) dst(%arg8 : memref<1888x256xbf16, #tpu.memory_space<vmem>>)
    %c0_64 = arith.constant 0 : index
    %c0_65 = arith.constant 0 : index
    %189 = vector.load %arg8[%c0_64, %c0_65] : memref<1888x256xbf16, #tpu.memory_space<vmem>>, vector<1024x256xbf16>
    %190 = arith.truncf %188 : vector<2x1024xf32> to vector<2x1024xbf16>
    %cst_66 = arith.constant dense<0.000000e+00> : vector<2x256xf32>
    %191 = tpu.matmul %190, %189, %cst_66 {dimension_numbers = #tpu.dot_dimension_numbers<[1], [0], [0], [1], [0, 0, 1, 1], [], []>} : vector<2x1024xbf16>, vector<1024x256xbf16>, vector<2x256xf32> -> vector<2x256xf32>
    %c2_67 = arith.constant 2 : index
    %c0_68 = arith.constant 0 : index
    %192 = vector.load %arg3[%c2_67, %c0_68] : memref<4x1024xf32, #tpu.memory_space<vmem>>, vector<1x256xf32>
    %c3_69 = arith.constant 3 : index
    %c0_70 = arith.constant 0 : index
    %193 = vector.load %arg3[%c3_69, %c0_70] : memref<4x1024xf32, #tpu.memory_space<vmem>>, vector<1x256xf32>
    %cst_71 = arith.constant dense<0.000000e+00> : vector<256xf32>
    %194 = vector.multi_reduction <add>, %191, %cst_71 [0] : vector<2x256xf32> to vector<256xf32>
    %195 = vector.shape_cast %194 : vector<256xf32> to vector<1x256xf32>
    %cst_72 = arith.constant 2.000000e+00 : f32
    %196 = vector.broadcast %cst_72 : f32 to vector<1x256xf32>
    %197 = arith.divf %195, %196 : vector<1x256xf32>
    %198 = vector.broadcast %197 : vector<1x256xf32> to vector<2x256xf32>
    %199 = arith.subf %191, %198 : vector<2x256xf32>
    %200 = arith.mulf %199, %199 : vector<2x256xf32>
    %cst_73 = arith.constant dense<0.000000e+00> : vector<256xf32>
    %201 = vector.multi_reduction <add>, %200, %cst_73 [0] : vector<2x256xf32> to vector<256xf32>
    %202 = vector.shape_cast %201 : vector<256xf32> to vector<1x256xf32>
    %cst_74 = arith.constant 2.000000e+00 : f32
    %203 = vector.broadcast %cst_74 : f32 to vector<1x256xf32>
    %204 = arith.divf %202, %203 : vector<1x256xf32>
    %205 = vector.broadcast %197 : vector<1x256xf32> to vector<2x256xf32>
    %206 = arith.subf %191, %205 : vector<2x256xf32>
    %cst_75 = arith.constant 9.99999974E-6 : f32
    %207 = vector.broadcast %cst_75 : f32 to vector<1x256xf32>
    %208 = arith.addf %204, %207 : vector<1x256xf32>
    %209 = math.rsqrt %208 : vector<1x256xf32>
    %210 = vector.broadcast %209 : vector<1x256xf32> to vector<2x256xf32>
    %211 = arith.mulf %206, %210 : vector<2x256xf32>
    %212 = vector.broadcast %192 : vector<1x256xf32> to vector<2x256xf32>
    %213 = arith.mulf %211, %212 : vector<2x256xf32>
    %214 = vector.broadcast %193 : vector<1x256xf32> to vector<2x256xf32>
    %215 = arith.addf %213, %214 : vector<2x256xf32>
    %cst_76 = arith.constant 0.000000e+00 : f32
    %216 = vector.broadcast %cst_76 : f32 to vector<2x256xf32>
    %217 = arith.maximumf %215, %216 : vector<2x256xf32>
    %c8 = arith.constant 8 : index
    %c0_77 = arith.constant 0 : index
    %218 = vector.load %arg2[%c8, %c0_77] : memref<16x128xf32, #tpu.memory_space<vmem>>, vector<1x128xf32>
    %c9 = arith.constant 9 : index
    %c0_78 = arith.constant 0 : index
    %219 = vector.load %arg2[%c9, %c0_78] : memref<16x128xf32, #tpu.memory_space<vmem>>, vector<1x128xf32>
    %220 = vector.shape_cast %217 : vector<2x256xf32> to vector<4x128xf32>
    %c1024 = arith.constant 1024 : index
    %c0_79 = arith.constant 0 : index
    %221 = vector.load %arg8[%c1024, %c0_79] : memref<1888x256xbf16, #tpu.memory_space<vmem>>, vector<128x256xbf16>
    %222 = arith.truncf %220 : vector<4x128xf32> to vector<4x128xbf16>
    %cst_80 = arith.constant dense<0.000000e+00> : vector<4x256xf32>
    %223 = tpu.matmul %222, %221, %cst_80 {dimension_numbers = #tpu.dot_dimension_numbers<[1], [0], [0], [1], [0, 0, 1, 1], [], []>} : vector<4x128xbf16>, vector<128x256xbf16>, vector<4x256xf32> -> vector<4x256xf32>
    %c1152 = arith.constant 1152 : index
    %c0_81 = arith.constant 0 : index
    %224 = vector.load %arg8[%c1152, %c0_81] : memref<1888x256xbf16, #tpu.memory_space<vmem>>, vector<16x256xbf16>
    %225 = arith.truncf %158 : vector<4x16xf32> to vector<4x16xbf16>
    %cst_82 = arith.constant dense<0.000000e+00> : vector<4x256xf32>
    %226 = tpu.matmul %225, %224, %cst_82 {dimension_numbers = #tpu.dot_dimension_numbers<[1], [0], [0], [1], [0, 0, 1, 1], [], []>} : vector<4x16xbf16>, vector<16x256xbf16>, vector<4x256xf32> -> vector<4x256xf32>
    %227 = arith.addf %223, %226 : vector<4x256xf32>
    %228 = vector.extract_strided_slice %227 {offsets = [0, 0], sizes = [4, 128], strides = [1, 1]} : vector<4x256xf32> to vector<4x128xf32>
    %229 = vector.shape_cast %228 : vector<4x128xf32> to vector<2x2x128xf32>
    %230 = vector.extract_strided_slice %227 {offsets = [0, 128], sizes = [4, 128], strides = [1, 1]} : vector<4x256xf32> to vector<4x128xf32>
    %231 = vector.shape_cast %230 : vector<4x128xf32> to vector<2x2x128xf32>
    %232 = tpu.concatenate %229, %231 in 1 : vector<2x2x128xf32>, vector<2x2x128xf32> -> vector<2x4x128xf32>
    %233 = vector.shape_cast %232 : vector<2x4x128xf32> to vector<8x128xf32>
    %cst_83 = arith.constant dense<0.000000e+00> : vector<128xf32>
    %234 = vector.multi_reduction <add>, %233, %cst_83 [0] : vector<8x128xf32> to vector<128xf32>
    %235 = vector.shape_cast %234 : vector<128xf32> to vector<1x128xf32>
    %cst_84 = arith.constant 8.000000e+00 : f32
    %236 = vector.broadcast %cst_84 : f32 to vector<1x128xf32>
    %237 = arith.divf %235, %236 : vector<1x128xf32>
    %238 = vector.broadcast %237 : vector<1x128xf32> to vector<8x128xf32>
    %239 = arith.subf %233, %238 : vector<8x128xf32>
    %240 = arith.mulf %239, %239 : vector<8x128xf32>
    %cst_85 = arith.constant dense<0.000000e+00> : vector<128xf32>
    %241 = vector.multi_reduction <add>, %240, %cst_85 [0] : vector<8x128xf32> to vector<128xf32>
    %242 = vector.shape_cast %241 : vector<128xf32> to vector<1x128xf32>
    %cst_86 = arith.constant 8.000000e+00 : f32
    %243 = vector.broadcast %cst_86 : f32 to vector<1x128xf32>
    %244 = arith.divf %242, %243 : vector<1x128xf32>
    %245 = vector.broadcast %237 : vector<1x128xf32> to vector<8x128xf32>
    %246 = arith.subf %233, %245 : vector<8x128xf32>
    %cst_87 = arith.constant 9.99999974E-6 : f32
    %247 = vector.broadcast %cst_87 : f32 to vector<1x128xf32>
    %248 = arith.addf %244, %247 : vector<1x128xf32>
    %249 = math.rsqrt %248 : vector<1x128xf32>
    %250 = vector.broadcast %249 : vector<1x128xf32> to vector<8x128xf32>
    %251 = arith.mulf %246, %250 : vector<8x128xf32>
    %252 = vector.broadcast %218 : vector<1x128xf32> to vector<8x128xf32>
    %253 = arith.mulf %251, %252 : vector<8x128xf32>
    %254 = vector.broadcast %219 : vector<1x128xf32> to vector<8x128xf32>
    %255 = arith.addf %253, %254 : vector<8x128xf32>
    %cst_88 = arith.constant 0.000000e+00 : f32
    %256 = vector.broadcast %cst_88 : f32 to vector<8x128xf32>
    %257 = arith.maximumf %255, %256 : vector<8x128xf32>
    %c1600 = arith.constant 1600 : index
    %c0_89 = arith.constant 0 : index
    %258 = vector.load %arg8[%c1600, %c0_89] : memref<1888x256xbf16, #tpu.memory_space<vmem>>, vector<128x18xbf16>
    %c1728 = arith.constant 1728 : index
    %c0_90 = arith.constant 0 : index
    %259 = vector.load %arg8[%c1728, %c0_90] : memref<1888x256xbf16, #tpu.memory_space<vmem>>, vector<16x18xbf16>
    %c1600_91 = arith.constant 1600 : index
    %c128_92 = arith.constant 128 : index
    %260 = vector.load %arg8[%c1600_91, %c128_92] : memref<1888x256xbf16, #tpu.memory_space<vmem>>, vector<128x18xbf16>
    %c1728_93 = arith.constant 1728 : index
    %c128_94 = arith.constant 128 : index
    %261 = vector.load %arg8[%c1728_93, %c128_94] : memref<1888x256xbf16, #tpu.memory_space<vmem>>, vector<16x18xbf16>
    %c1744 = arith.constant 1744 : index
    %c0_95 = arith.constant 0 : index
    %262 = vector.load %arg8[%c1744, %c0_95] : memref<1888x256xbf16, #tpu.memory_space<vmem>>, vector<128x128xbf16>
    %c1744_96 = arith.constant 1744 : index
    %c128_97 = arith.constant 128 : index
    %263 = vector.load %arg8[%c1744_96, %c128_97] : memref<1888x256xbf16, #tpu.memory_space<vmem>>, vector<128x16xbf16>
    %c1872 = arith.constant 1872 : index
    %c0_98 = arith.constant 0 : index
    %264 = vector.load %arg8[%c1872, %c0_98] : memref<1888x256xbf16, #tpu.memory_space<vmem>>, vector<16x128xbf16>
    %c1872_99 = arith.constant 1872 : index
    %c128_100 = arith.constant 128 : index
    %265 = vector.load %arg8[%c1872_99, %c128_100] : memref<1888x256xbf16, #tpu.memory_space<vmem>>, vector<16x16xbf16>
    %c11 = arith.constant 11 : index
    %c0_101 = arith.constant 0 : index
    %266 = vector.load %arg2[%c11, %c0_101] : memref<16x128xf32, #tpu.memory_space<vmem>>, vector<1x18xf32>
    %c12 = arith.constant 12 : index
    %c0_102 = arith.constant 0 : index
    %267 = vector.load %arg2[%c12, %c0_102] : memref<16x128xf32, #tpu.memory_space<vmem>>, vector<1x18xf32>
    %c13 = arith.constant 13 : index
    %c0_103 = arith.constant 0 : index
    %268 = vector.load %arg2[%c13, %c0_103] : memref<16x128xf32, #tpu.memory_space<vmem>>, vector<1x128xf32>
    %c14 = arith.constant 14 : index
    %c0_104 = arith.constant 0 : index
    %269 = vector.load %arg2[%c14, %c0_104] : memref<16x128xf32, #tpu.memory_space<vmem>>, vector<1x16xf32>
    %c15 = arith.constant 15 : index
    %c0_105 = arith.constant 0 : index
    %270 = vector.load %arg2[%c15, %c0_105] : memref<16x128xf32, #tpu.memory_space<vmem>>, vector<1x1xf32>
    %271 = arith.truncf %257 : vector<8x128xf32> to vector<8x128xbf16>
    %cst_106 = arith.constant dense<0.000000e+00> : vector<8x18xf32>
    %272 = tpu.matmul %271, %258, %cst_106 {dimension_numbers = #tpu.dot_dimension_numbers<[1], [0], [0], [1], [0, 0, 1, 1], [], []>} : vector<8x128xbf16>, vector<128x18xbf16>, vector<8x18xf32> -> vector<8x18xf32>
    %273 = arith.truncf %116 : vector<8x16xf32> to vector<8x16xbf16>
    %cst_107 = arith.constant dense<0.000000e+00> : vector<8x18xf32>
    %274 = tpu.matmul %273, %259, %cst_107 {dimension_numbers = #tpu.dot_dimension_numbers<[1], [0], [0], [1], [0, 0, 1, 1], [], []>} : vector<8x16xbf16>, vector<16x18xbf16>, vector<8x18xf32> -> vector<8x18xf32>
    %275 = arith.addf %272, %274 : vector<8x18xf32>
    %276 = vector.broadcast %266 : vector<1x18xf32> to vector<8x18xf32>
    %277 = arith.addf %275, %276 : vector<8x18xf32>
    %278 = vector.shape_cast %277 : vector<8x18xf32> to vector<2x4x18xf32>
    %279 = arith.truncf %257 : vector<8x128xf32> to vector<8x128xbf16>
    %cst_108 = arith.constant dense<0.000000e+00> : vector<8x18xf32>
    %280 = tpu.matmul %279, %260, %cst_108 {dimension_numbers = #tpu.dot_dimension_numbers<[1], [0], [0], [1], [0, 0, 1, 1], [], []>} : vector<8x128xbf16>, vector<128x18xbf16>, vector<8x18xf32> -> vector<8x18xf32>
    %281 = arith.truncf %116 : vector<8x16xf32> to vector<8x16xbf16>
    %cst_109 = arith.constant dense<0.000000e+00> : vector<8x18xf32>
    %282 = tpu.matmul %281, %261, %cst_109 {dimension_numbers = #tpu.dot_dimension_numbers<[1], [0], [0], [1], [0, 0, 1, 1], [], []>} : vector<8x16xbf16>, vector<16x18xbf16>, vector<8x18xf32> -> vector<8x18xf32>
    %283 = arith.addf %280, %282 : vector<8x18xf32>
    %284 = vector.broadcast %267 : vector<1x18xf32> to vector<8x18xf32>
    %285 = arith.addf %283, %284 : vector<8x18xf32>
    %286 = vector.shape_cast %285 : vector<8x18xf32> to vector<2x4x18xf32>
    %287 = arith.truncf %257 : vector<8x128xf32> to vector<8x128xbf16>
    %cst_110 = arith.constant dense<0.000000e+00> : vector<8x128xf32>
    %288 = tpu.matmul %287, %262, %cst_110 {dimension_numbers = #tpu.dot_dimension_numbers<[1], [0], [0], [1], [0, 0, 1, 1], [], []>} : vector<8x128xbf16>, vector<128x128xbf16>, vector<8x128xf32> -> vector<8x128xf32>
    %289 = arith.truncf %116 : vector<8x16xf32> to vector<8x16xbf16>
    %cst_111 = arith.constant dense<0.000000e+00> : vector<8x128xf32>
    %290 = tpu.matmul %289, %264, %cst_111 {dimension_numbers = #tpu.dot_dimension_numbers<[1], [0], [0], [1], [0, 0, 1, 1], [], []>} : vector<8x16xbf16>, vector<16x128xbf16>, vector<8x128xf32> -> vector<8x128xf32>
    %291 = arith.addf %288, %290 : vector<8x128xf32>
    %292 = vector.broadcast %268 : vector<1x128xf32> to vector<8x128xf32>
    %293 = arith.addf %291, %292 : vector<8x128xf32>
    %294 = vector.shape_cast %293 : vector<8x128xf32> to vector<2x4x128xf32>
    %295 = arith.truncf %257 : vector<8x128xf32> to vector<8x128xbf16>
    %cst_112 = arith.constant dense<0.000000e+00> : vector<8x16xf32>
    %296 = tpu.matmul %295, %263, %cst_112 {dimension_numbers = #tpu.dot_dimension_numbers<[1], [0], [0], [1], [0, 0, 1, 1], [], []>} : vector<8x128xbf16>, vector<128x16xbf16>, vector<8x16xf32> -> vector<8x16xf32>
    %297 = arith.truncf %116 : vector<8x16xf32> to vector<8x16xbf16>
    %cst_113 = arith.constant dense<0.000000e+00> : vector<8x16xf32>
    %298 = tpu.matmul %297, %265, %cst_113 {dimension_numbers = #tpu.dot_dimension_numbers<[1], [0], [0], [1], [0, 0, 1, 1], [], []>} : vector<8x16xbf16>, vector<16x16xbf16>, vector<8x16xf32> -> vector<8x16xf32>
    %299 = arith.addf %296, %298 : vector<8x16xf32>
    %300 = vector.broadcast %269 : vector<1x16xf32> to vector<8x16xf32>
    %301 = arith.addf %299, %300 : vector<8x16xf32>
    %302 = vector.shape_cast %301 : vector<8x16xf32> to vector<2x4x16xf32>
    %cst_114 = arith.constant dense<0.000000e+00> : vector<2x4x4xf32>
    %303 = tpu.matmul %278, %286, %cst_114 {dimension_numbers = #tpu.dot_dimension_numbers<[2], [2], [1], [1], [0, 0, 0, 1, 1, 1], [0], [0]>} : vector<2x4x18xf32>, vector<2x4x18xf32>, vector<2x4x4xf32> -> vector<2x4x4xf32>
    %cst_115 = arith.constant dense<0xFF800000> : vector<2x4xf32>
    %304 = vector.multi_reduction <maximumf>, %303, %cst_115 [2] : vector<2x4x4xf32> to vector<2x4xf32>
    %305 = vector.shape_cast %304 : vector<2x4xf32> to vector<2x4x1xf32>
    %306 = vector.broadcast %305 : vector<2x4x1xf32> to vector<2x4x4xf32>
    %307 = arith.subf %303, %306 : vector<2x4x4xf32>
    %308 = math.exp %307 : vector<2x4x4xf32>
    %cst_116 = arith.constant dense<0.000000e+00> : vector<2x4xf32>
    %309 = vector.multi_reduction <add>, %308, %cst_116 [2] : vector<2x4x4xf32> to vector<2x4xf32>
    %310 = vector.shape_cast %309 : vector<2x4xf32> to vector<2x4x1xf32>
    %311 = tpu.reciprocal %310 {approx = true} : vector<2x4x1xf32> -> vector<2x4x1xf32>
    %312 = vector.broadcast %311 : vector<2x4x1xf32> to vector<2x4x4xf32>
    %313 = arith.mulf %308, %312 : vector<2x4x4xf32>
    %cst_117 = arith.constant dense<0.000000e+00> : vector<2x4x128xf32>
    %314 = tpu.matmul %313, %294, %cst_117 {dimension_numbers = #tpu.dot_dimension_numbers<[2], [1], [1], [2], [0, 0, 0, 1, 1, 2], [0], [0]>} : vector<2x4x4xf32>, vector<2x4x128xf32>, vector<2x4x128xf32> -> vector<2x4x128xf32>
    %315 = vector.shape_cast %314 : vector<2x4x128xf32> to vector<8x128xf32>
    %cst_118 = arith.constant dense<0.000000e+00> : vector<2x4x16xf32>
    %316 = tpu.matmul %313, %302, %cst_118 {dimension_numbers = #tpu.dot_dimension_numbers<[2], [1], [1], [2], [0, 0, 0, 1, 1, 2], [0], [0]>} : vector<2x4x4xf32>, vector<2x4x16xf32>, vector<2x4x16xf32> -> vector<2x4x16xf32>
    %317 = vector.shape_cast %316 : vector<2x4x16xf32> to vector<8x16xf32>
    %318 = vector.broadcast %270 : vector<1x1xf32> to vector<8x128xf32>
    %319 = arith.mulf %318, %315 : vector<8x128xf32>
    %320 = arith.addf %319, %257 : vector<8x128xf32>
    %321 = vector.broadcast %270 : vector<1x1xf32> to vector<8x16xf32>
    %322 = arith.mulf %321, %317 : vector<8x16xf32>
    %323 = arith.addf %322, %116 : vector<8x16xf32>
    %c1168 = arith.constant 1168 : index
    %c0_119 = arith.constant 0 : index
    %324 = vector.load %arg8[%c1168, %c0_119] : memref<1888x256xbf16, #tpu.memory_space<vmem>>, vector<128x256xbf16>
    %325 = arith.truncf %320 : vector<8x128xf32> to vector<8x128xbf16>
    %cst_120 = arith.constant dense<0.000000e+00> : vector<8x256xf32>
    %326 = tpu.matmul %325, %324, %cst_120 {dimension_numbers = #tpu.dot_dimension_numbers<[1], [0], [0], [1], [0, 0, 1, 1], [], []>} : vector<8x128xbf16>, vector<128x256xbf16>, vector<8x256xf32> -> vector<8x256xf32>
    %c1296 = arith.constant 1296 : index
    %c0_121 = arith.constant 0 : index
    %327 = vector.load %arg8[%c1296, %c0_121] : memref<1888x256xbf16, #tpu.memory_space<vmem>>, vector<16x256xbf16>
    %328 = arith.truncf %323 : vector<8x16xf32> to vector<8x16xbf16>
    %cst_122 = arith.constant dense<0.000000e+00> : vector<8x256xf32>
    %329 = tpu.matmul %328, %327, %cst_122 {dimension_numbers = #tpu.dot_dimension_numbers<[1], [0], [0], [1], [0, 0, 1, 1], [], []>} : vector<8x16xbf16>, vector<16x256xbf16>, vector<8x256xf32> -> vector<8x256xf32>
    %330 = arith.addf %326, %329 : vector<8x256xf32>
    %331 = vector.extract_strided_slice %330 {offsets = [0, 0], sizes = [8, 128], strides = [1, 1]} : vector<8x256xf32> to vector<8x128xf32>
    %332 = vector.shape_cast %331 : vector<8x128xf32> to vector<2x4x128xf32>
    %333 = vector.extract_strided_slice %330 {offsets = [0, 128], sizes = [8, 128], strides = [1, 1]} : vector<8x256xf32> to vector<8x128xf32>
    %334 = vector.shape_cast %333 : vector<8x128xf32> to vector<2x4x128xf32>
    %335 = tpu.concatenate %332, %334 in 1 : vector<2x4x128xf32>, vector<2x4x128xf32> -> vector<2x8x128xf32>
    %336 = vector.shape_cast %335 : vector<2x8x128xf32> to vector<16x128xf32>
    %cst_123 = arith.constant dense<0.000000e+00> : vector<128xf32>
    %337 = vector.multi_reduction <add>, %336, %cst_123 [0] : vector<16x128xf32> to vector<128xf32>
    %338 = vector.shape_cast %337 : vector<128xf32> to vector<1x128xf32>
    %cst_124 = arith.constant 1.600000e+01 : f32
    %339 = vector.broadcast %cst_124 : f32 to vector<1x128xf32>
    %340 = arith.divf %338, %339 : vector<1x128xf32>
    %341 = vector.broadcast %340 : vector<1x128xf32> to vector<16x128xf32>
    %342 = arith.subf %336, %341 : vector<16x128xf32>
    %343 = arith.mulf %342, %342 : vector<16x128xf32>
    %cst_125 = arith.constant dense<0.000000e+00> : vector<128xf32>
    %344 = vector.multi_reduction <add>, %343, %cst_125 [0] : vector<16x128xf32> to vector<128xf32>
    %345 = vector.shape_cast %344 : vector<128xf32> to vector<1x128xf32>
    %cst_126 = arith.constant 1.600000e+01 : f32
    %346 = vector.broadcast %cst_126 : f32 to vector<1x128xf32>
    %347 = arith.divf %345, %346 : vector<1x128xf32>
    %348 = vector.broadcast %340 : vector<1x128xf32> to vector<16x128xf32>
    %349 = arith.subf %336, %348 : vector<16x128xf32>
    %cst_127 = arith.constant 9.99999974E-6 : f32
    %350 = vector.broadcast %cst_127 : f32 to vector<1x128xf32>
    %351 = arith.addf %347, %350 : vector<1x128xf32>
    %352 = math.rsqrt %351 : vector<1x128xf32>
    %353 = vector.broadcast %352 : vector<1x128xf32> to vector<16x128xf32>
    %354 = arith.mulf %349, %353 : vector<16x128xf32>
    %355 = vector.broadcast %218 : vector<1x128xf32> to vector<16x128xf32>
    %356 = arith.mulf %354, %355 : vector<16x128xf32>
    %357 = vector.broadcast %219 : vector<1x128xf32> to vector<16x128xf32>
    %358 = arith.addf %356, %357 : vector<16x128xf32>
    %cst_128 = arith.constant 0.000000e+00 : f32
    %359 = vector.broadcast %cst_128 : f32 to vector<16x128xf32>
    %360 = arith.maximumf %358, %359 : vector<16x128xf32>
    %c1312 = arith.constant 1312 : index
    %c0_129 = arith.constant 0 : index
    %361 = vector.load %arg8[%c1312, %c0_129] : memref<1888x256xbf16, #tpu.memory_space<vmem>>, vector<128x256xbf16>
    %362 = arith.truncf %360 : vector<16x128xf32> to vector<16x128xbf16>
    %cst_130 = arith.constant dense<0.000000e+00> : vector<16x256xf32>
    %363 = tpu.matmul %362, %361, %cst_130 {dimension_numbers = #tpu.dot_dimension_numbers<[1], [0], [0], [1], [0, 0, 1, 1], [], []>} : vector<16x128xbf16>, vector<128x256xbf16>, vector<16x256xf32> -> vector<16x256xf32>
    %c1440 = arith.constant 1440 : index
    %c0_131 = arith.constant 0 : index
    %364 = vector.load %arg8[%c1440, %c0_131] : memref<1888x256xbf16, #tpu.memory_space<vmem>>, vector<16x256xbf16>
    %365 = arith.truncf %74 : vector<16x16xf32> to vector<16x16xbf16>
    %cst_132 = arith.constant dense<0.000000e+00> : vector<16x256xf32>
    %366 = tpu.matmul %365, %364, %cst_132 {dimension_numbers = #tpu.dot_dimension_numbers<[1], [0], [0], [1], [0, 0, 1, 1], [], []>} : vector<16x16xbf16>, vector<16x256xbf16>, vector<16x256xf32> -> vector<16x256xf32>
    %367 = arith.addf %363, %366 : vector<16x256xf32>
    %368 = vector.extract_strided_slice %367 {offsets = [0, 0], sizes = [16, 128], strides = [1, 1]} : vector<16x256xf32> to vector<16x128xf32>
    %369 = vector.shape_cast %368 : vector<16x128xf32> to vector<2x8x128xf32>
    %370 = vector.extract_strided_slice %367 {offsets = [0, 128], sizes = [16, 128], strides = [1, 1]} : vector<16x256xf32> to vector<16x128xf32>
    %371 = vector.shape_cast %370 : vector<16x128xf32> to vector<2x8x128xf32>
    %372 = tpu.concatenate %369, %371 in 1 : vector<2x8x128xf32>, vector<2x8x128xf32> -> vector<2x16x128xf32>
    %373 = vector.shape_cast %372 : vector<2x16x128xf32> to vector<32x128xf32>
    %cst_133 = arith.constant dense<0.000000e+00> : vector<128xf32>
    %374 = vector.multi_reduction <add>, %373, %cst_133 [0] : vector<32x128xf32> to vector<128xf32>
    %375 = vector.shape_cast %374 : vector<128xf32> to vector<1x128xf32>
    %cst_134 = arith.constant 3.200000e+01 : f32
    %376 = vector.broadcast %cst_134 : f32 to vector<1x128xf32>
    %377 = arith.divf %375, %376 : vector<1x128xf32>
    %378 = vector.broadcast %377 : vector<1x128xf32> to vector<32x128xf32>
    %379 = arith.subf %373, %378 : vector<32x128xf32>
    %380 = arith.mulf %379, %379 : vector<32x128xf32>
    %cst_135 = arith.constant dense<0.000000e+00> : vector<128xf32>
    %381 = vector.multi_reduction <add>, %380, %cst_135 [0] : vector<32x128xf32> to vector<128xf32>
    %382 = vector.shape_cast %381 : vector<128xf32> to vector<1x128xf32>
    %cst_136 = arith.constant 3.200000e+01 : f32
    %383 = vector.broadcast %cst_136 : f32 to vector<1x128xf32>
    %384 = arith.divf %382, %383 : vector<1x128xf32>
    %385 = vector.broadcast %377 : vector<1x128xf32> to vector<32x128xf32>
    %386 = arith.subf %373, %385 : vector<32x128xf32>
    %cst_137 = arith.constant 9.99999974E-6 : f32
    %387 = vector.broadcast %cst_137 : f32 to vector<1x128xf32>
    %388 = arith.addf %384, %387 : vector<1x128xf32>
    %389 = math.rsqrt %388 : vector<1x128xf32>
    %390 = vector.broadcast %389 : vector<1x128xf32> to vector<32x128xf32>
    %391 = arith.mulf %386, %390 : vector<32x128xf32>
    %392 = vector.broadcast %218 : vector<1x128xf32> to vector<32x128xf32>
    %393 = arith.mulf %391, %392 : vector<32x128xf32>
    %394 = vector.broadcast %219 : vector<1x128xf32> to vector<32x128xf32>
    %395 = arith.addf %393, %394 : vector<32x128xf32>
    %cst_138 = arith.constant 0.000000e+00 : f32
    %396 = vector.broadcast %cst_138 : f32 to vector<32x128xf32>
    %397 = arith.maximumf %395, %396 : vector<32x128xf32>
    %398 = arith.truncf %397 : vector<32x128xf32> to vector<32x128xbf16>
    %cst_139 = arith.constant dense<0.000000e+00> : vector<32x18xf32>
    %399 = tpu.matmul %398, %258, %cst_139 {dimension_numbers = #tpu.dot_dimension_numbers<[1], [0], [0], [1], [0, 0, 1, 1], [], []>} : vector<32x128xbf16>, vector<128x18xbf16>, vector<32x18xf32> -> vector<32x18xf32>
    %400 = arith.truncf %32 : vector<32x16xf32> to vector<32x16xbf16>
    %cst_140 = arith.constant dense<0.000000e+00> : vector<32x18xf32>
    %401 = tpu.matmul %400, %259, %cst_140 {dimension_numbers = #tpu.dot_dimension_numbers<[1], [0], [0], [1], [0, 0, 1, 1], [], []>} : vector<32x16xbf16>, vector<16x18xbf16>, vector<32x18xf32> -> vector<32x18xf32>
    %402 = arith.addf %399, %401 : vector<32x18xf32>
    %403 = vector.broadcast %266 : vector<1x18xf32> to vector<32x18xf32>
    %404 = arith.addf %402, %403 : vector<32x18xf32>
    %405 = vector.shape_cast %404 : vector<32x18xf32> to vector<2x16x18xf32>
    %406 = arith.truncf %397 : vector<32x128xf32> to vector<32x128xbf16>
    %cst_141 = arith.constant dense<0.000000e+00> : vector<32x18xf32>
    %407 = tpu.matmul %406, %260, %cst_141 {dimension_numbers = #tpu.dot_dimension_numbers<[1], [0], [0], [1], [0, 0, 1, 1], [], []>} : vector<32x128xbf16>, vector<128x18xbf16>, vector<32x18xf32> -> vector<32x18xf32>
    %408 = arith.truncf %32 : vector<32x16xf32> to vector<32x16xbf16>
    %cst_142 = arith.constant dense<0.000000e+00> : vector<32x18xf32>
    %409 = tpu.matmul %408, %261, %cst_142 {dimension_numbers = #tpu.dot_dimension_numbers<[1], [0], [0], [1], [0, 0, 1, 1], [], []>} : vector<32x16xbf16>, vector<16x18xbf16>, vector<32x18xf32> -> vector<32x18xf32>
    %410 = arith.addf %407, %409 : vector<32x18xf32>
    %411 = vector.broadcast %267 : vector<1x18xf32> to vector<32x18xf32>
    %412 = arith.addf %410, %411 : vector<32x18xf32>
    %413 = vector.shape_cast %412 : vector<32x18xf32> to vector<2x16x18xf32>
    %414 = arith.truncf %397 : vector<32x128xf32> to vector<32x128xbf16>
    %cst_143 = arith.constant dense<0.000000e+00> : vector<32x128xf32>
    %415 = tpu.matmul %414, %262, %cst_143 {dimension_numbers = #tpu.dot_dimension_numbers<[1], [0], [0], [1], [0, 0, 1, 1], [], []>} : vector<32x128xbf16>, vector<128x128xbf16>, vector<32x128xf32> -> vector<32x128xf32>
    %416 = arith.truncf %32 : vector<32x16xf32> to vector<32x16xbf16>
    %cst_144 = arith.constant dense<0.000000e+00> : vector<32x128xf32>
    %417 = tpu.matmul %416, %264, %cst_144 {dimension_numbers = #tpu.dot_dimension_numbers<[1], [0], [0], [1], [0, 0, 1, 1], [], []>} : vector<32x16xbf16>, vector<16x128xbf16>, vector<32x128xf32> -> vector<32x128xf32>
    %418 = arith.addf %415, %417 : vector<32x128xf32>
    %419 = vector.broadcast %268 : vector<1x128xf32> to vector<32x128xf32>
    %420 = arith.addf %418, %419 : vector<32x128xf32>
    %421 = vector.shape_cast %420 : vector<32x128xf32> to vector<2x16x128xf32>
    %422 = arith.truncf %397 : vector<32x128xf32> to vector<32x128xbf16>
    %cst_145 = arith.constant dense<0.000000e+00> : vector<32x16xf32>
    %423 = tpu.matmul %422, %263, %cst_145 {dimension_numbers = #tpu.dot_dimension_numbers<[1], [0], [0], [1], [0, 0, 1, 1], [], []>} : vector<32x128xbf16>, vector<128x16xbf16>, vector<32x16xf32> -> vector<32x16xf32>
    %424 = arith.truncf %32 : vector<32x16xf32> to vector<32x16xbf16>
    %cst_146 = arith.constant dense<0.000000e+00> : vector<32x16xf32>
    %425 = tpu.matmul %424, %265, %cst_146 {dimension_numbers = #tpu.dot_dimension_numbers<[1], [0], [0], [1], [0, 0, 1, 1], [], []>} : vector<32x16xbf16>, vector<16x16xbf16>, vector<32x16xf32> -> vector<32x16xf32>
    %426 = arith.addf %423, %425 : vector<32x16xf32>
    %427 = vector.broadcast %269 : vector<1x16xf32> to vector<32x16xf32>
    %428 = arith.addf %426, %427 : vector<32x16xf32>
    %429 = vector.shape_cast %428 : vector<32x16xf32> to vector<2x16x16xf32>
    %cst_147 = arith.constant dense<0.000000e+00> : vector<2x16x16xf32>
    %430 = tpu.matmul %405, %413, %cst_147 {dimension_numbers = #tpu.dot_dimension_numbers<[2], [2], [1], [1], [0, 0, 0, 1, 1, 1], [0], [0]>} : vector<2x16x18xf32>, vector<2x16x18xf32>, vector<2x16x16xf32> -> vector<2x16x16xf32>
    %cst_148 = arith.constant dense<0xFF800000> : vector<2x16xf32>
    %431 = vector.multi_reduction <maximumf>, %430, %cst_148 [2] : vector<2x16x16xf32> to vector<2x16xf32>
    %432 = vector.shape_cast %431 : vector<2x16xf32> to vector<2x16x1xf32>
    %433 = vector.broadcast %432 : vector<2x16x1xf32> to vector<2x16x16xf32>
    %434 = arith.subf %430, %433 : vector<2x16x16xf32>
    %435 = math.exp %434 : vector<2x16x16xf32>
    %cst_149 = arith.constant dense<0.000000e+00> : vector<2x16xf32>
    %436 = vector.multi_reduction <add>, %435, %cst_149 [2] : vector<2x16x16xf32> to vector<2x16xf32>
    %437 = vector.shape_cast %436 : vector<2x16xf32> to vector<2x16x1xf32>
    %438 = tpu.reciprocal %437 {approx = true} : vector<2x16x1xf32> -> vector<2x16x1xf32>
    %439 = vector.broadcast %438 : vector<2x16x1xf32> to vector<2x16x16xf32>
    %440 = arith.mulf %435, %439 : vector<2x16x16xf32>
    %cst_150 = arith.constant dense<0.000000e+00> : vector<2x16x128xf32>
    %441 = tpu.matmul %440, %421, %cst_150 {dimension_numbers = #tpu.dot_dimension_numbers<[2], [1], [1], [2], [0, 0, 0, 1, 1, 2], [0], [0]>} : vector<2x16x16xf32>, vector<2x16x128xf32>, vector<2x16x128xf32> -> vector<2x16x128xf32>
    %442 = vector.shape_cast %441 : vector<2x16x128xf32> to vector<32x128xf32>
    %cst_151 = arith.constant dense<0.000000e+00> : vector<2x16x16xf32>
    %443 = tpu.matmul %440, %429, %cst_151 {dimension_numbers = #tpu.dot_dimension_numbers<[2], [1], [1], [2], [0, 0, 0, 1, 1, 2], [0], [0]>} : vector<2x16x16xf32>, vector<2x16x16xf32>, vector<2x16x16xf32> -> vector<2x16x16xf32>
    %444 = vector.shape_cast %443 : vector<2x16x16xf32> to vector<32x16xf32>
    %445 = vector.broadcast %270 : vector<1x1xf32> to vector<32x128xf32>
    %446 = arith.mulf %445, %442 : vector<32x128xf32>
    %447 = arith.addf %446, %397 : vector<32x128xf32>
    %448 = vector.broadcast %270 : vector<1x1xf32> to vector<32x16xf32>
    %449 = arith.mulf %448, %444 : vector<32x16xf32>
    %450 = arith.addf %449, %32 : vector<32x16xf32>
    %c1456 = arith.constant 1456 : index
    %c0_152 = arith.constant 0 : index
    %451 = vector.load %arg8[%c1456, %c0_152] : memref<1888x256xbf16, #tpu.memory_space<vmem>>, vector<128x128xbf16>
    %452 = arith.truncf %447 : vector<32x128xf32> to vector<32x128xbf16>
    %cst_153 = arith.constant dense<0.000000e+00> : vector<32x128xf32>
    %453 = tpu.matmul %452, %451, %cst_153 {dimension_numbers = #tpu.dot_dimension_numbers<[1], [0], [0], [1], [0, 0, 1, 1], [], []>} : vector<32x128xbf16>, vector<128x128xbf16>, vector<32x128xf32> -> vector<32x128xf32>
    %c1584 = arith.constant 1584 : index
    %c0_154 = arith.constant 0 : index
    %454 = vector.load %arg8[%c1584, %c0_154] : memref<1888x256xbf16, #tpu.memory_space<vmem>>, vector<16x128xbf16>
    %455 = arith.truncf %450 : vector<32x16xf32> to vector<32x16xbf16>
    %cst_155 = arith.constant dense<0.000000e+00> : vector<32x128xf32>
    %456 = tpu.matmul %455, %454, %cst_155 {dimension_numbers = #tpu.dot_dimension_numbers<[1], [0], [0], [1], [0, 0, 1, 1], [], []>} : vector<32x16xbf16>, vector<16x128xbf16>, vector<32x128xf32> -> vector<32x128xf32>
    %457 = arith.addf %453, %456 : vector<32x128xf32>
    %c10 = arith.constant 10 : index
    %c0_156 = arith.constant 0 : index
    %458 = vector.load %arg2[%c10, %c0_156] : memref<16x128xf32, #tpu.memory_space<vmem>>, vector<1x128xf32>
    %459 = vector.broadcast %458 : vector<1x128xf32> to vector<32x128xf32>
    %460 = arith.addf %457, %459 : vector<32x128xf32>
    %cst_157 = arith.constant dense<0xFF800000> : vector<32xf32>
    %461 = vector.multi_reduction <maximumf>, %460, %cst_157 [1] : vector<32x128xf32> to vector<32xf32>
    %462 = vector.shape_cast %461 : vector<32xf32> to vector<32x1xf32>
    %463 = tpu.iota {dimensions = array<i32: 1>} : vector<32x128xi32>
    %464 = vector.broadcast %462 : vector<32x1xf32> to vector<32x128xf32>
    %465 = arith.cmpf oge, %460, %464 : vector<32x128xf32>
    %c1073741824_i32 = arith.constant 1073741824 : i32
    %466 = vector.broadcast %c1073741824_i32 : i32 to vector<32x128xi32>
    %467 = arith.select %465, %463, %466 : vector<32x128xi1>, vector<32x128xi32>
    %cst_158 = arith.constant dense<2147483647> : vector<32xi32>
    %468 = vector.multi_reduction <minsi>, %467, %cst_158 [1] : vector<32x128xi32> to vector<32xi32>
    %469 = vector.shape_cast %468 : vector<32xi32> to vector<32x1xi32>
    %470 = vector.broadcast %469 : vector<32x1xi32> to vector<32x128xi32>
    %471 = arith.cmpi eq, %463, %470 : vector<32x128xi32>
    %472 = arith.extui %471 : vector<32x128xi1> to vector<32x128xi32>
    %473 = arith.sitofp %472 : vector<32x128xi32> to vector<32x128xf32>
    %c0_159 = arith.constant 0 : index
    %c0_160 = arith.constant 0 : index
    %474 = vector.load %arg7[%c0_159, %c0_160] : memref<32x128xf32, #tpu.memory_space<vmem>>, vector<32x128xf32>
    tpu.vector_store %arg7[%c0_159, %c0_160], %473 {strides = array<i32>} : memref<32x128xf32, #tpu.memory_space<vmem>>, vector<32x128xf32>,
    return
  }
}

</mosaic_0001>

<llo_original>
// kernel: generator_forward.1
$region0: #{generator_forward.1}
  #allocation0 [shape = 'u32[]', space=smem, size = 0x4, offset = 0x4, fixed_abs, tag = 'smem constant byte address 0x4 - core index']
  #allocation1 [shape = 'u32[144,128]{1,0:T(1,128)}', space=vmem, size = 0x12000, scoped, tag = 'internal scratch']
  #allocation2 [shape = 'bf16[1888,256]{1,0:T(16,128)(2,1)}', space=vmem, size = 0xec000, scoped, tag = 'scratch operand']
  #allocation3 [shape = 's32[1]{0}', space=sflag, size = 0x4, scoped, tag = 'scratch operand']
  #allocation6 [shape = 's32[]', space=sflag, size = 0x4, offset = 0, fixed_abs, tag = 'sflag constant byte address 0x0 - dummy sync flag']
  %s0 = inlined_call_operand.vmem [shape: f32[32,128], index: 0, kind: input, shape index: {}]
  %s1 = inlined_call_operand.vmem [shape: f32[2,100], index: 1, kind: input, shape index: {}]
  %s2 = inlined_call_operand.vmem [shape: f32[16,128], index: 2, kind: input, shape index: {}]
  %s3 = inlined_call_operand.vmem [shape: f32[4,1024], index: 3, kind: input, shape index: {}]
  %s4 = inlined_call_operand.vmem [shape: bf16[224,16], index: 4, kind: input, shape index: {}]
  %s5 = inlined_call_operand.hbm [shape: bf16[100,1024], index: 5, kind: input, shape index: {}]
  %s6 = inlined_call_operand.hbm [shape: bf16[1888,256], index: 6, kind: input, shape index: {}]
  %s7 = inlined_call_operand.vmem [shape: f32[32,128], index: 7, kind: output, shape index: {}]
  %s8 = sld [smem:[#allocation0]]
  $region38: #{generator_forward.1} parent=0
    _
  %s10 = ssub.s32 1, %s8
  %s11 = scalar_select 0, %s10, %s8
  $region1: #{generator_forward.1} parent=0
    #allocation4 [shape = 'u8[212992]{0}', space=vmem, size = 0x34000, scoped, tag = 'input window, operand 5, single buffered']
    #allocation5 [shape = 's32[1]{0}', space=sflag, size = 0x4, scoped, tag = 'scoped memory for generator_forward.1']
    #allocation7 [shape = 'u32[9]{0}', space=smem, size = 0x24, scoped, tag = 'DMA stride descriptor']
    %12 = vsyncpa [#allocation5], 0
    // Predicated region
    $region2: #{generator_forward.1} parent=1 // pred_check
      _
    $region3: #{generator_forward.1} parent=1 // pred_check_branch
      %14 = sbr.rel (0) target = $region5
    $region4: #{generator_forward.1} parent=1 // pred_region
      _
    $region5: #{generator_forward.1} parent=1 // pred_fallthru
      _
    // Predicated region
    $region6: #{generator_forward.1} parent=1 // pred_check
      _
    $region7: #{generator_forward.1} parent=1 // pred_check_branch
      %16 = sbr.rel (0) target = $region9
    $region8: #{generator_forward.1} parent=1 // pred_region
      _
    $region9: #{generator_forward.1} parent=1 // pred_fallthru
      _
    // Predicated region
    $region10: #{generator_forward.1} parent=1 // pred_check
      _
    $region11: #{generator_forward.1} parent=1 // pred_check_branch
      %18 = sbr.rel (0) target = $region13
    $region12: #{generator_forward.1} parent=1 // pred_region
      _
    $region13: #{generator_forward.1} parent=1 // pred_fallthru
      _
    // Predicated region
    $region14: #{generator_forward.1} parent=1 // pred_check
      _
    $region15: #{generator_forward.1} parent=1 // pred_check_branch
      %20 = sbr.rel (0) target = $region17
    $region16: #{generator_forward.1} parent=1 // pred_region
      _
    $region17: #{generator_forward.1} parent=1 // pred_fallthru
      _
    // Predicated region
    $region18: #{generator_forward.1} parent=1 // pred_check
      _
    $region19: #{generator_forward.1} parent=1 // pred_check_branch
      %22 = sbr.rel (0) target = $region21
    $region20: #{generator_forward.1} parent=1 // pred_region
      _
    $region21: #{generator_forward.1} parent=1 // pred_fallthru
      _
    // Predicated region
    $region22: #{generator_forward.1} parent=1 // pred_check
      _
    $region23: #{generator_forward.1} parent=1 // pred_check_branch
      %24 = sbr.rel (0) target = $region25
    $region24: #{generator_forward.1} parent=1 // pred_region
      %s26 = ssub.s32 6656, 6656
      %27 = vsyncadd [#allocation5], %s26
      %s28 = sshll.u32 [#allocation4], 4
      %s29 = int_to_ptr.vmem [resolvable:$true] %s28
      %34 = dma.hbm_to_vmem [thread:$0]  %s5, 6656, %s29, [#allocation5], 512, 512, 32
    $region25: #{generator_forward.1} parent=1 // pred_fallthru
      _
    // Predicated region
    $region26: #{generator_forward.1} parent=1 // pred_check
      _
    $region27: #{generator_forward.1} parent=1 // pred_check_branch
      %36 = sbr.rel (0) target = $region29
    $region28: #{generator_forward.1} parent=1 // pred_region
      %37 = dma.done [#allocation5], 6656
    $region29: #{generator_forward.1} parent=1 // pred_fallthru
      _
    %s40 = sshll.u32 1, 14
    %s41 = sxor.u32 4294967295, %s40
    %s43 = sld [smem:[#allocation0]]
    %s44 = sadd.s32 2, %s43
    %s46 = sshll.u32 7, 26
    %s47 = sxor.u32 4294967295, %s46
    %s48 = sand.u32 0, %s47
    %s49 = sshll.u32 %s44, 26
    %s50 = sor.u32 %s48, %s49
    %s51 = sshll.u32 [#allocation2], 4
    %s52 = int_to_ptr.vmem [resolvable:$true] %s51
    %55 = sst [smem:[#allocation7]] 256
    %s56 = scalar_lea.smem [#allocation7], 1
    %57 = sst [smem:[%s56]] 256
    %s58 = scalar_lea.smem [#allocation7], 2
    %59 = sst [smem:[%s58]] 2
    %s60 = scalar_lea.smem [#allocation7], 3
    %61 = sst [smem:[%s60]] 64
    %s62 = scalar_lea.smem [#allocation7], 4
    %63 = sst [smem:[%s62]] 128
    %s64 = scalar_lea.smem [#allocation7], 5
    %65 = sst [smem:[%s64]] 2
    %s66 = scalar_lea.smem [#allocation7], 6
    %67 = sst [smem:[%s66]] 128
    %s68 = scalar_lea.smem [#allocation7], 7
    %69 = sst [smem:[%s68]] 64
    %s70 = scalar_lea.smem [#allocation7], 8
    %71 = sst [smem:[%s70]] 4
    %73 = dma.general %s6, 30208, %s52, [#allocation3], [#allocation6], [#allocation7], %s50, 0
    %v74 = vld [vmem:[%s0] sm:$0xff]
    %v75 = vld [vmem:[%s0 + $0x8] sm:$0xff]
    %v76 = vld [vmem:[%s0 + $0x10] sm:$0xff]
    %v77 = vld [vmem:[%s0 + $0x18] sm:$0xff]
    %v78 = vld [vmem:[%s4] sm:$0xf]
    %v79 = vld [vmem:[%s4 + $0x4] sm:$0xf]
    %v80 = vld [vmem:[%s4 + $0x8] sm:$0xf]
    %v81 = vld [vmem:[%s4 + $0xc] sm:$0xf]
    %v82 = vld [vmem:[%s4 + $0x10] sm:$0xf]
    %v83 = vld [vmem:[%s4 + $0x14] sm:$0xf]
    %v84 = vld [vmem:[%s4 + $0x18] sm:$0xf]
    %v85 = vld [vmem:[%s4 + $0x1c] sm:$0xf]
    %v86 = vld [vmem:[%s4 + $0x20] sm:$0xf]
    %v87 = vld [vmem:[%s4 + $0x24] sm:$0xf]
    %v88 = vld [vmem:[%s4 + $0x28] sm:$0xf]
    %v89 = vld [vmem:[%s4 + $0x2c] sm:$0xf]
    %v90 = vld [vmem:[%s4 + $0x30] sm:$0xf]
    %v91 = vld [vmem:[%s4 + $0x34] sm:$0xf]
    %v92 = vld [vmem:[%s4 + $0x38] sm:$0xf]
    %v93 = vld [vmem:[%s4 + $0x3c] sm:$0xf]
    %v94 = vpack.c.bf16 %v75, %v74
    %v95 = vpack.c.bf16 %v77, %v76
    %v112 = vunpack.c.l.b16 %v78
    %v113 = vunpack.c.l.b16 %v79
    %v114 = vunpack.c.l.b16 %v80
    %v115 = vunpack.c.l.b16 %v81
    %v116 = vunpack.c.l.b16 %v82
    %v117 = vunpack.c.l.b16 %v83
    %v118 = vunpack.c.l.b16 %v84
    %v119 = vunpack.c.l.b16 %v85
    %v120 = vunpack.c.l.b16 %v86
    %v121 = vunpack.c.l.b16 %v87
    %v122 = vunpack.c.l.b16 %v88
    %v123 = vunpack.c.l.b16 %v89
    %v124 = vunpack.c.l.b16 %v90
    %v125 = vunpack.c.l.b16 %v91
    %v126 = vunpack.c.l.b16 %v92
    %v127 = vunpack.c.l.b16 %v93
    %v128 = vpack.c.b16 %v113, %v112
    %v129 = vpack.c.b16 %v115, %v114
    %v130 = vpack.c.b16 %v117, %v116
    %v131 = vpack.c.b16 %v119, %v118
    %v132 = vpack.c.b16 %v121, %v120
    %v133 = vpack.c.b16 %v123, %v122
    %v134 = vpack.c.b16 %v125, %v124
    %v135 = vpack.c.b16 %v127, %v126
    %144 = vmatprep.subr.bf16.mxu0 0
    %145 = vmatpush1.bf16.msra.mxu0 %v128
    %146 = vmatprep.subr.bf16.mxu0 0
    %147 = vmatpush1.bf16.msra.mxu0 %v129
    %148 = vmatprep.subr.bf16.mxu0 0
    %149 = vmatpush1.bf16.msra.mxu0 %v130
    %150 = vmatprep.subr.bf16.mxu0 0
    %151 = vmatpush1.bf16.msra.mxu0 %v131
    %152 = vmatprep.subr.bf16.mxu0 0
    %153 = vmatpush1.bf16.msra.mxu0 %v132
    %154 = vmatprep.subr.bf16.mxu0 0
    %155 = vmatpush1.bf16.msra.mxu0 %v133
    %156 = vmatprep.subr.bf16.mxu0 0
    %157 = vmatpush1.bf16.msra.mxu0 %v134
    %158 = vmatprep.subr.bf16.mxu0 0
    %159 = vmatpush1.bf16.msra.mxu0 %v135
    %160 = vmatprep.subr.bf16.mxu0 0
    %161 = vmatpush1.bf16.msra.mxu0 0
    %162 = vmatprep.subr.bf16.mxu0 0
    %163 = vmatpush1.bf16.msra.mxu0 0
    %164 = vmatprep.subr.bf16.mxu0 0
    %165 = vmatpush1.bf16.msra.mxu0 0
    %166 = vmatprep.subr.bf16.mxu0 0
    %167 = vmatpush1.bf16.msra.mxu0 0
    %168 = vmatprep.subr.bf16.mxu0 0
    %169 = vmatpush1.bf16.msra.mxu0 0
    %170 = vmatprep.subr.bf16.mxu0 0
    %171 = vmatpush1.bf16.msra.mxu0 0
    %172 = vmatprep.subr.bf16.mxu0 0
    %173 = vmatpush1.bf16.msra.mxu0 0
    %174 = vmatprep.subr.bf16.mxu0 0
    %175 = vmatpush1.bf16.msra.mxu0 0
    %176 = vmatprep.mubr.bf16.mxu0 0
    %177 = vmatmul.mubr.bf16.gmra.mrb[0].mxu0 %v94
    %v178 = vpop.f32.mrb[0].mxu0
    %v179 = vadd.f32 0.0, %v178
    %v180 = vpop.f32.mrb[0].mxu0
    %v181 = vpop.f32.mrb[0].mxu0
    %v182 = vadd.f32 0.0, %v181
    %v183 = vpop.f32.mrb[0].mxu0
    %184 = vmatprep.mubr.bf16.mxu0 0
    %185 = vmatmul.mubr.bf16.gmra.mrb[0].mxu0 %v95
    %v186 = vpop.f32.mrb[0].mxu0
    %v187 = vadd.f32 0.0, %v186
    %v188 = vpop.f32.mrb[0].mxu0
    %v189 = vpop.f32.mrb[0].mxu0
    %v190 = vadd.f32 0.0, %v189
    %v191 = vpop.f32.mrb[0].mxu0
    %192 = vdwg.mxu0
    %v193 = vld [vmem:[%s2] sm:$0x1]
    %v194 = vld [vmem:[%s2 + $0x1] sm:$0x1]
    %vm195 = vcmask 130048
    %v196 = vsel %vm195, %v179, 0.0
    %v197 = vsel %vm195, %v182, 0.0
    %v198 = vadd.f32 %v196, %v197
    %v199 = vsel %vm195, %v187, 0.0
    %v200 = vadd.f32 %v198, %v199
    %v201 = vsel %vm195, %v190, 0.0
    %v202 = vadd.f32 %v200, %v201
    %v203 = vrot.slane %v202, 4
    %v204 = vadd.f32 %v202, %v203
    %v205 = vrot.slane %v204, 2
    %v206 = vadd.f32 %v204, %v205
    %v207 = vrot.slane %v206, 1
    %v208 = vadd.f32 %v206, %v207
    %v209 = vrcp.pop 32.0
    %v210 = vmul.f32 %v208, %v209
    %v211 = vsub.f32 %v179, %v210
    %v212 = vsub.f32 %v182, %v210
    %v213 = vsub.f32 %v187, %v210
    %v214 = vsub.f32 %v190, %v210
    %v215 = vmul.f32 %v211, %v211
    %v216 = vmul.f32 %v212, %v212
    %v217 = vmul.f32 %v213, %v213
    %v218 = vmul.f32 %v214, %v214
    %v219 = vsel %vm195, %v215, 0.0
    %v220 = vsel %vm195, %v216, 0.0
    %v221 = vadd.f32 %v219, %v220
    %v222 = vsel %vm195, %v217, 0.0
    %v223 = vadd.f32 %v221, %v222
    %v224 = vsel %vm195, %v218, 0.0
    %v225 = vadd.f32 %v223, %v224
    %v226 = vrot.slane %v225, 4
    %v227 = vadd.f32 %v225, %v226
    %v228 = vrot.slane %v227, 2
    %v229 = vadd.f32 %v227, %v228
    %v230 = vrot.slane %v229, 1
    %v231 = vadd.f32 %v229, %v230
    %v232 = vmul.f32 %v231, %v209
    %v233 = vadd.f32 %v232, 1e-05
    %v234 = vrsqrt.pop %v233
    %v235 = vmul.f32 %v211, %v234
    %v236 = vmul.f32 %v212, %v234
    %v237 = vmul.f32 %v213, %v234
    %v238 = vmul.f32 %v214, %v234
    %v239 = vlaneseq
    %v240 = vshrl.u32 %v239, 7
    %v241 = vsub.s32 0, %v240
    %v242 = vrot.slane %v193, %v241
    %v243 = vmul.f32 %v235, %v242
    %v244 = vmul.f32 %v236, %v242
    %v245 = vmul.f32 %v237, %v242
    %v246 = vmul.f32 %v238, %v242
    %v247 = vlaneseq
    %v248 = vshrl.u32 %v247, 7
    %v249 = vsub.s32 0, %v248
    %v250 = vrot.slane %v194, %v249
    %v251 = vadd.f32 %v243, %v250
    %v252 = vadd.f32 %v244, %v250
    %v253 = vadd.f32 %v245, %v250
    %v254 = vadd.f32 %v246, %v250
    %vm255 = vcmp.ge.f32.partialorder %v251, 0.0
    %vm256 = vcmp.ge.f32.partialorder %v252, 0.0
    %vm257 = vcmp.ge.f32.partialorder %v253, 0.0
    %vm258 = vcmp.ge.f32.partialorder %v254, 0.0
    %v259 = vmul.f32 %v251, 0.2
    %v260 = vmul.f32 %v252, 0.2
    %v261 = vmul.f32 %v253, 0.2
    %v262 = vmul.f32 %v254, 0.2
    %v263 = vsel %vm255, %v251, %v259
    %v264 = vsel %vm256, %v252, %v260
    %v265 = vsel %vm257, %v253, %v261
    %v266 = vsel %vm258, %v254, %v262
    %v267 = vld [vmem:[%s4 + $0x40] sm:$0xf]
    %v268 = vld [vmem:[%s4 + $0x44] sm:$0xf]
    %v269 = vld [vmem:[%s4 + $0x48] sm:$0xf]
    %v270 = vld [vmem:[%s4 + $0x4c] sm:$0xf]
    %v271 = vld [vmem:[%s2 + $0x2] sm:$0x1]
    %v272 = vld [vmem:[%s2 + $0x3] sm:$0x1]
    %v273 = vpack.c.bf16 %v265, %v263
    %v274 = vpack.c.bf16 %v266, %v264
    %v277 = vunpack.c.l.b16 %v269
    %v278 = vunpack.c.l.b16 %v270
    %v279 = vpack.c.b16 %v278, %v277
    %v282 = vsel %vm195, %v274, 0
    %284 = vmatprep.subr.bf16.mxu0 0
    %285 = vmatpush1.bf16.msra.mxu0 %v279
    %286 = vmatprep.subr.bf16.mxu0 0
    %287 = vmatpush1.bf16.msra.mxu0 0
    %288 = vmatprep.subr.bf16.mxu0 0
    %289 = vmatpush1.bf16.msra.mxu0 0
    %290 = vmatprep.subr.bf16.mxu0 0
    %291 = vmatpush1.bf16.msra.mxu0 0
    %292 = vmatprep.subr.bf16.mxu0 0
    %293 = vmatpush1.bf16.msra.mxu0 0
    %294 = vmatprep.subr.bf16.mxu0 0
    %295 = vmatpush1.bf16.msra.mxu0 0
    %296 = vmatprep.subr.bf16.mxu0 0
    %297 = vmatpush1.bf16.msra.mxu0 0
    %298 = vmatprep.subr.bf16.mxu0 0
    %299 = vmatpush1.bf16.msra.mxu0 0
    %300 = vmatprep.subr.bf16.mxu0 0
    %301 = vmatpush1.bf16.msra.mxu0 0
    %302 = vmatprep.subr.bf16.mxu0 0
    %303 = vmatpush1.bf16.msra.mxu0 0
    %304 = vmatprep.subr.bf16.mxu0 0
    %305 = vmatpush1.bf16.msra.mxu0 0
    %306 = vmatprep.subr.bf16.mxu0 0
    %307 = vmatpush1.bf16.msra.mxu0 0
    %308 = vmatprep.subr.bf16.mxu0 0
    %309 = vmatpush1.bf16.msra.mxu0 0
    %310 = vmatprep.subr.bf16.mxu0 0
    %311 = vmatpush1.bf16.msra.mxu0 0
    %312 = vmatprep.subr.bf16.mxu0 0
    %313 = vmatpush1.bf16.msra.mxu0 0
    %314 = vmatprep.subr.bf16.mxu0 0
    %315 = vmatpush1.bf16.msra.mxu0 0
    %316 = vmatprep.mubr.bf16.mxu0 0
    %317 = vmatmul.mubr.bf16.gmra.mrb[0].mxu0 %v282
    %v318 = vpop.f32.mrb[0].mxu0
    %v319 = vadd.f32 0.0, %v318
    %v320 = vpop.f32.mrb[0].mxu0
    %v321 = vpop.f32.mrb[0].mxu0
    %v322 = vadd.f32 0.0, %v321
    %v323 = vpop.f32.mrb[0].mxu0
    %324 = vdwg.mxu0
    %v327 = vunpack.c.l.b16 %v267
    %v328 = vunpack.c.l.b16 %v268
    %v329 = vpack.c.b16 %v328, %v327
    %v332 = vsel %vm195, %v273, 0
    %334 = vmatprep.subr.bf16.mxu0 0
    %335 = vmatpush1.bf16.msra.mxu0 %v329
    %336 = vmatprep.subr.bf16.mxu0 0
    %337 = vmatpush1.bf16.msra.mxu0 0
    %338 = vmatprep.subr.bf16.mxu0 0
    %339 = vmatpush1.bf16.msra.mxu0 0
    %340 = vmatprep.subr.bf16.mxu0 0
    %341 = vmatpush1.bf16.msra.mxu0 0
    %342 = vmatprep.subr.bf16.mxu0 0
    %343 = vmatpush1.bf16.msra.mxu0 0
    %344 = vmatprep.subr.bf16.mxu0 0
    %345 = vmatpush1.bf16.msra.mxu0 0
    %346 = vmatprep.subr.bf16.mxu0 0
    %347 = vmatpush1.bf16.msra.mxu0 0
    %348 = vmatprep.subr.bf16.mxu0 0
    %349 = vmatpush1.bf16.msra.mxu0 0
    %350 = vmatprep.subr.bf16.mxu0 0
    %351 = vmatpush1.bf16.msra.mxu0 0
    %352 = vmatprep.subr.bf16.mxu0 0
    %353 = vmatpush1.bf16.msra.mxu0 0
    %354 = vmatprep.subr.bf16.mxu0 0
    %355 = vmatpush1.bf16.msra.mxu0 0
    %356 = vmatprep.subr.bf16.mxu0 0
    %357 = vmatpush1.bf16.msra.mxu0 0
    %358 = vmatprep.subr.bf16.mxu0 0
    %359 = vmatpush1.bf16.msra.mxu0 0
    %360 = vmatprep.subr.bf16.mxu0 0
    %361 = vmatpush1.bf16.msra.mxu0 0
    %362 = vmatprep.subr.bf16.mxu0 0
    %363 = vmatpush1.bf16.msra.mxu0 0
    %364 = vmatprep.subr.bf16.mxu0 0
    %365 = vmatpush1.bf16.msra.mxu0 0
    %366 = vmatprep.mubr.bf16.mxu0 0
    %367 = vmatmul.mubr.bf16.gmra.mrb[0].mxu0 %v332
    %v368 = vpop.f32.mrb[0].mxu0
    %v369 = vadd.f32 %v319, %v368
    %v370 = vpop.f32.mrb[0].mxu0
    %v371 = vpop.f32.mrb[0].mxu0
    %v372 = vadd.f32 %v322, %v371
    %v373 = vpop.f32.mrb[0].mxu0
    %374 = vdwg.mxu0
    %v375 = vsel %vm195, %v369, 0.0
    %v376 = vsel %vm195, %v372, 0.0
    %v377 = vadd.f32 %v375, %v376
    %v378 = vrot.slane %v377, 4
    %v379 = vadd.f32 %v377, %v378
    %v380 = vrot.slane %v379, 2
    %v381 = vadd.f32 %v379, %v380
    %v382 = vrot.slane %v381, 1
    %v383 = vadd.f32 %v381, %v382
    %v384 = vrcp.pop 16.0
    %v385 = vmul.f32 %v383, %v384
    %v386 = vsub.f32 %v369, %v385
    %v387 = vsub.f32 %v372, %v385
    %v388 = vmul.f32 %v386, %v386
    %v389 = vmul.f32 %v387, %v387
    %v390 = vsel %vm195, %v388, 0.0
    %v391 = vsel %vm195, %v389, 0.0
    %v392 = vadd.f32 %v390, %v391
    %v393 = vrot.slane %v392, 4
    %v394 = vadd.f32 %v392, %v393
    %v395 = vrot.slane %v394, 2
    %v396 = vadd.f32 %v394, %v395
    %v397 = vrot.slane %v396, 1
    %v398 = vadd.f32 %v396, %v397
    %v399 = vmul.f32 %v398, %v384
    %v400 = vadd.f32 %v399, 1e-05
    %v401 = vrsqrt.pop %v400
    %v402 = vmul.f32 %v386, %v401
    %v403 = vmul.f32 %v387, %v401
    %v404 = vlaneseq
    %v405 = vshrl.u32 %v404, 7
    %v406 = vsub.s32 0, %v405
    %v407 = vrot.slane %v271, %v406
    %v408 = vmul.f32 %v402, %v407
    %v409 = vmul.f32 %v403, %v407
    %v410 = vlaneseq
    %v411 = vshrl.u32 %v410, 7
    %v412 = vsub.s32 0, %v411
    %v413 = vrot.slane %v272, %v412
    %v414 = vadd.f32 %v408, %v413
    %v415 = vadd.f32 %v409, %v413
    %vm416 = vcmp.ge.f32.partialorder %v414, 0.0
    %vm417 = vcmp.ge.f32.partialorder %v415, 0.0
    %v418 = vmul.f32 %v414, 0.2
    %v419 = vmul.f32 %v415, 0.2
    %v420 = vsel %vm416, %v414, %v418
    %v421 = vsel %vm417, %v415, %v419
    %v422 = vld [vmem:[%s4 + $0x50] sm:$0xf]
    %v423 = vld [vmem:[%s4 + $0x54] sm:$0xf]
    %v424 = vld [vmem:[%s4 + $0x58] sm:$0xf]
    %v425 = vld [vmem:[%s4 + $0x5c] sm:$0xf]
    %v426 = vld [vmem:[%s2 + $0x4] sm:$0x1]
    %v427 = vld [vmem:[%s2 + $0x5] sm:$0x1]
    %v430 = vcombine.high %v420, %v420
    %v431 = vcombine.high %v421, %v421
    %v432 = vcombine.low %v420, %v421
    %v434 = vpack.c.bf16 %v432, %v432
    %v435 = vcombine.low %v430, %v431
    %v437 = vpack.c.bf16 %v435, %v435
    %v440 = vunpack.c.l.b16 %v424
    %v441 = vunpack.c.l.b16 %v425
    %v442 = vpack.c.b16 %v441, %v440
    %v445 = vsel %vm195, %v437, 0
    %447 = vmatprep.subr.bf16.mxu0 0
    %448 = vmatpush1.bf16.msra.mxu0 %v442
    %449 = vmatprep.subr.bf16.mxu0 0
    %450 = vmatpush1.bf16.msra.mxu0 0
    %451 = vmatprep.subr.bf16.mxu0 0
    %452 = vmatpush1.bf16.msra.mxu0 0
    %453 = vmatprep.subr.bf16.mxu0 0
    %454 = vmatpush1.bf16.msra.mxu0 0
    %455 = vmatprep.subr.bf16.mxu0 0
    %456 = vmatpush1.bf16.msra.mxu0 0
    %457 = vmatprep.subr.bf16.mxu0 0
    %458 = vmatpush1.bf16.msra.mxu0 0
    %459 = vmatprep.subr.bf16.mxu0 0
    %460 = vmatpush1.bf16.msra.mxu0 0
    %461 = vmatprep.subr.bf16.mxu0 0
    %462 = vmatpush1.bf16.msra.mxu0 0
    %463 = vmatprep.subr.bf16.mxu0 0
    %464 = vmatpush1.bf16.msra.mxu0 0
    %465 = vmatprep.subr.bf16.mxu0 0
    %466 = vmatpush1.bf16.msra.mxu0 0
    %467 = vmatprep.subr.bf16.mxu0 0
    %468 = vmatpush1.bf16.msra.mxu0 0
    %469 = vmatprep.subr.bf16.mxu0 0
    %470 = vmatpush1.bf16.msra.mxu0 0
    %471 = vmatprep.subr.bf16.mxu0 0
    %472 = vmatpush1.bf16.msra.mxu0 0
    %473 = vmatprep.subr.bf16.mxu0 0
    %474 = vmatpush1.bf16.msra.mxu0 0
    %475 = vmatprep.subr.bf16.mxu0 0
    %476 = vmatpush1.bf16.msra.mxu0 0
    %477 = vmatprep.subr.bf16.mxu0 0
    %478 = vmatpush1.bf16.msra.mxu0 0
    %479 = vmatprep.mubr.bf16.mxu0 0
    %480 = vmatmul.mubr.bf16.gmra.mrb[0].mxu0 %v445
    %v481 = vpop.f32.mrb[0].mxu0
    %v482 = vadd.f32 0.0, %v481
    %v483 = vpop.f32.mrb[0].mxu0
    %v484 = vpop.f32.mrb[0].mxu0
    %v485 = vpop.f32.mrb[0].mxu0
    %486 = vdwg.mxu0
    %v489 = vunpack.c.l.b16 %v422
    %v490 = vunpack.c.l.b16 %v423
    %v491 = vpack.c.b16 %v490, %v489
    %v494 = vsel %vm195, %v434, 0
    %496 = vmatprep.subr.bf16.mxu0 0
    %497 = vmatpush1.bf16.msra.mxu0 %v491
    %498 = vmatprep.subr.bf16.mxu0 0
    %499 = vmatpush1.bf16.msra.mxu0 0
    %500 = vmatprep.subr.bf16.mxu0 0
    %501 = vmatpush1.bf16.msra.mxu0 0
    %502 = vmatprep.subr.bf16.mxu0 0
    %503 = vmatpush1.bf16.msra.mxu0 0
    %504 = vmatprep.subr.bf16.mxu0 0
    %505 = vmatpush1.bf16.msra.mxu0 0
    %506 = vmatprep.subr.bf16.mxu0 0
    %507 = vmatpush1.bf16.msra.mxu0 0
    %508 = vmatprep.subr.bf16.mxu0 0
    %509 = vmatpush1.bf16.msra.mxu0 0
    %510 = vmatprep.subr.bf16.mxu0 0
    %511 = vmatpush1.bf16.msra.mxu0 0
    %512 = vmatprep.subr.bf16.mxu0 0
    %513 = vmatpush1.bf16.msra.mxu0 0
    %514 = vmatprep.subr.bf16.mxu0 0
    %515 = vmatpush1.bf16.msra.mxu0 0
    %516 = vmatprep.subr.bf16.mxu0 0
    %517 = vmatpush1.bf16.msra.mxu0 0
    %518 = vmatprep.subr.bf16.mxu0 0
    %519 = vmatpush1.bf16.msra.mxu0 0
    %520 = vmatprep.subr.bf16.mxu0 0
    %521 = vmatpush1.bf16.msra.mxu0 0
    %522 = vmatprep.subr.bf16.mxu0 0
    %523 = vmatpush1.bf16.msra.mxu0 0
    %524 = vmatprep.subr.bf16.mxu0 0
    %525 = vmatpush1.bf16.msra.mxu0 0
    %526 = vmatprep.subr.bf16.mxu0 0
    %527 = vmatpush1.bf16.msra.mxu0 0
    %528 = vmatprep.mubr.bf16.mxu0 0
    %529 = vmatmul.mubr.bf16.gmra.mrb[0].mxu0 %v494
    %v530 = vpop.f32.mrb[0].mxu0
    %v531 = vadd.f32 %v482, %v530
    %v532 = vpop.f32.mrb[0].mxu0
    %v533 = vpop.f32.mrb[0].mxu0
    %v534 = vpop.f32.mrb[0].mxu0
    %535 = vdwg.mxu0
    %v536 = vsel %vm195, %v531, 0.0
    %v537 = vrot.slane %v536, 4
    %v538 = vadd.f32 %v536, %v537
    %v539 = vrot.slane %v538, 2
    %v540 = vadd.f32 %v538, %v539
    %v541 = vrot.slane %v540, 1
    %v542 = vadd.f32 %v540, %v541
    %v543 = vrcp.pop 8.0
    %v544 = vmul.f32 %v542, %v543
    %v545 = vsub.f32 %v531, %v544
    %v546 = vmul.f32 %v545, %v545
    %v547 = vsel %vm195, %v546, 0.0
    %v548 = vrot.slane %v547, 4
    %v549 = vadd.f32 %v547, %v548
    %v550 = vrot.slane %v549, 2
    %v551 = vadd.f32 %v549, %v550
    %v552 = vrot.slane %v551, 1
    %v553 = vadd.f32 %v551, %v552
    %v554 = vmul.f32 %v553, %v543
    %v555 = vadd.f32 %v554, 1e-05
    %v556 = vrsqrt.pop %v555
    %v557 = vmul.f32 %v545, %v556
    %v558 = vlaneseq
    %v559 = vshrl.u32 %v558, 7
    %v560 = vsub.s32 0, %v559
    %v561 = vrot.slane %v426, %v560
    %v562 = vmul.f32 %v557, %v561
    %v563 = vlaneseq
    %v564 = vshrl.u32 %v563, 7
    %v565 = vsub.s32 0, %v564
    %v566 = vrot.slane %v427, %v565
    %v567 = vadd.f32 %v562, %v566
    %vm568 = vcmp.ge.f32.partialorder %v567, 0.0
    %v569 = vmul.f32 %v567, 0.2
    %v570 = vsel %vm568, %v567, %v569
    %v571 = vld [vmem:[%s4 + $0x60] sm:$0xf]
    %v572 = vld [vmem:[%s4 + $0x64] sm:$0xf]
    %v573 = vld [vmem:[%s4 + $0x68] sm:$0xf]
    %v574 = vld [vmem:[%s4 + $0x6c] sm:$0xf]
    %v575 = vld [vmem:[%s2 + $0x6] sm:$0x1]
    %v576 = vld [vmem:[%s2 + $0x7] sm:$0x1]
    %v578 = vcombine.high %v570, %v570
    %v580 = vunpack.c.l.s4 1983009808
    %v581 = vunpack.c.0.s8 %v580
    %v582 = vlaneseq
    %v583 = vshrl.u32 %v582, 7
    %v584 = vsub.s32 %v581, %v583
    %v585 = vrot.slane %v570, %v584
    %v586 = vcombine.high %v585, %v585
    %v588 = vunpack.c.l.s4 1983009808
    %v589 = vunpack.c.0.s8 %v588
    %v590 = vlaneseq
    %v591 = vshrl.u32 %v590, 7
    %v592 = vsub.s32 %v589, %v591
    %v593 = vrot.slane %v578, %v592
    %v594 = vcombine.high %v593, %v593
    %v595 = vcombine.low %v570, %v578
    %v597 = vunpack.c.l.s4 1983009808
    %v598 = vunpack.c.0.s8 %v597
    %v599 = vlaneseq
    %v600 = vshrl.u32 %v599, 7
    %v601 = vsub.s32 %v598, %v600
    %v602 = vrot.slane %v595, %v601
    %v604 = vpack.c.bf16 %v602, %v602
    %v605 = vcombine.low %v586, %v594
    %v607 = vunpack.c.l.s4 1983009808
    %v608 = vunpack.c.0.s8 %v607
    %v609 = vlaneseq
    %v610 = vshrl.u32 %v609, 7
    %v611 = vsub.s32 %v608, %v610
    %v612 = vrot.slane %v605, %v611
    %v614 = vpack.c.bf16 %v612, %v612
    %v617 = vunpack.c.l.b16 %v573
    %v618 = vunpack.c.l.b16 %v574
    %v619 = vpack.c.b16 %v618, %v617
    %v622 = vsel %vm195, %v614, 0
    %624 = vmatprep.subr.bf16.mxu0 0
    %625 = vmatpush1.bf16.msra.mxu0 %v619
    %626 = vmatprep.subr.bf16.mxu0 0
    %627 = vmatpush1.bf16.msra.mxu0 0
    %628 = vmatprep.subr.bf16.mxu0 0
    %629 = vmatpush1.bf16.msra.mxu0 0
    %630 = vmatprep.subr.bf16.mxu0 0
    %631 = vmatpush1.bf16.msra.mxu0 0
    %632 = vmatprep.subr.bf16.mxu0 0
    %633 = vmatpush1.bf16.msra.mxu0 0
    %634 = vmatprep.subr.bf16.mxu0 0
    %635 = vmatpush1.bf16.msra.mxu0 0
    %636 = vmatprep.subr.bf16.mxu0 0
    %637 = vmatpush1.bf16.msra.mxu0 0
    %638 = vmatprep.subr.bf16.mxu0 0
    %639 = vmatpush1.bf16.msra.mxu0 0
    %640 = vmatprep.subr.bf16.mxu0 0
    %641 = vmatpush1.bf16.msra.mxu0 0
    %642 = vmatprep.subr.bf16.mxu0 0
    %643 = vmatpush1.bf16.msra.mxu0 0
    %644 = vmatprep.subr.bf16.mxu0 0
    %645 = vmatpush1.bf16.msra.mxu0 0
    %646 = vmatprep.subr.bf16.mxu0 0
    %647 = vmatpush1.bf16.msra.mxu0 0
    %648 = vmatprep.subr.bf16.mxu0 0
    %649 = vmatpush1.bf16.msra.mxu0 0
    %650 = vmatprep.subr.bf16.mxu0 0
    %651 = vmatpush1.bf16.msra.mxu0 0
    %652 = vmatprep.subr.bf16.mxu0 0
    %653 = vmatpush1.bf16.msra.mxu0 0
    %654 = vmatprep.subr.bf16.mxu0 0
    %655 = vmatpush1.bf16.msra.mxu0 0
    %656 = vmatprep.mubr.bf16.mxu0 0
    %657 = vmatmul.mubr.bf16.gmra.mrb[0].mxu0 %v622
    %v658 = vpop.f32.mrb[0].mxu0
    %v659 = vadd.f32 0.0, %v658
    %v660 = vpop.f32.mrb[0].mxu0
    %v661 = vpop.f32.mrb[0].mxu0
    %v662 = vpop.f32.mrb[0].mxu0
    %663 = vdwg.mxu0
    %v666 = vunpack.c.l.b16 %v571
    %v667 = vunpack.c.l.b16 %v572
    %v668 = vpack.c.b16 %v667, %v666
    %v671 = vsel %vm195, %v604, 0
    %673 = vmatprep.subr.bf16.mxu0 0
    %674 = vmatpush1.bf16.msra.mxu0 %v668
    %675 = vmatprep.subr.bf16.mxu0 0
    %676 = vmatpush1.bf16.msra.mxu0 0
    %677 = vmatprep.subr.bf16.mxu0 0
    %678 = vmatpush1.bf16.msra.mxu0 0
    %679 = vmatprep.subr.bf16.mxu0 0
    %680 = vmatpush1.bf16.msra.mxu0 0
    %681 = vmatprep.subr.bf16.mxu0 0
    %682 = vmatpush1.bf16.msra.mxu0 0
    %683 = vmatprep.subr.bf16.mxu0 0
    %684 = vmatpush1.bf16.msra.mxu0 0
    %685 = vmatprep.subr.bf16.mxu0 0
    %686 = vmatpush1.bf16.msra.mxu0 0
    %687 = vmatprep.subr.bf16.mxu0 0
    %688 = vmatpush1.bf16.msra.mxu0 0
    %689 = vmatprep.subr.bf16.mxu0 0
    %690 = vmatpush1.bf16.msra.mxu0 0
    %691 = vmatprep.subr.bf16.mxu0 0
    %692 = vmatpush1.bf16.msra.mxu0 0
    %693 = vmatprep.subr.bf16.mxu0 0
    %694 = vmatpush1.bf16.msra.mxu0 0
    %695 = vmatprep.subr.bf16.mxu0 0
    %696 = vmatpush1.bf16.msra.mxu0 0
    %697 = vmatprep.subr.bf16.mxu0 0
    %698 = vmatpush1.bf16.msra.mxu0 0
    %699 = vmatprep.subr.bf16.mxu0 0
    %700 = vmatpush1.bf16.msra.mxu0 0
    %701 = vmatprep.subr.bf16.mxu0 0
    %702 = vmatpush1.bf16.msra.mxu0 0
    %703 = vmatprep.subr.bf16.mxu0 0
    %704 = vmatpush1.bf16.msra.mxu0 0
    %705 = vmatprep.mubr.bf16.mxu0 0
    %706 = vmatmul.mubr.bf16.gmra.mrb[0].mxu0 %v671
    %v707 = vpop.f32.mrb[0].mxu0
    %v708 = vadd.f32 %v659, %v707
    %v709 = vpop.f32.mrb[0].mxu0
    %v710 = vpop.f32.mrb[0].mxu0
    %v711 = vpop.f32.mrb[0].mxu0
    %712 = vdwg.mxu0
    %vm713 = vcmask 125952
    %v714 = vsel %vm713, %v708, 0.0
    %v715 = vrot.slane %v714, 4
    %v716 = vadd.f32 %v714, %v715
    %v717 = vrot.slane %v716, 2
    %v718 = vadd.f32 %v716, %v717
    %v719 = vrot.slane %v718, 1
    %v720 = vadd.f32 %v718, %v719
    %v721 = vrcp.pop 4.0
    %v722 = vmul.f32 %v720, %v721
    %v723 = vsub.f32 %v708, %v722
    %v724 = vmul.f32 %v723, %v723
    %v725 = vsel %vm713, %v724, 0.0
    %v726 = vrot.slane %v725, 4
    %v727 = vadd.f32 %v725, %v726
    %v728 = vrot.slane %v727, 2
    %v729 = vadd.f32 %v727, %v728
    %v730 = vrot.slane %v729, 1
    %v731 = vadd.f32 %v729, %v730
    %v732 = vmul.f32 %v731, %v721
    %v733 = vadd.f32 %v732, 1e-05
    %v734 = vrsqrt.pop %v733
    %v735 = vmul.f32 %v723, %v734
    %v736 = vlaneseq
    %v737 = vshrl.u32 %v736, 7
    %v738 = vsub.s32 0, %v737
    %v739 = vrot.slane %v575, %v738
    %v740 = vmul.f32 %v735, %v739
    %v741 = vlaneseq
    %v742 = vshrl.u32 %v741, 7
    %v743 = vsub.s32 0, %v742
    %v744 = vrot.slane %v576, %v743
    %v745 = vadd.f32 %v740, %v744
    %vm746 = vcmp.ge.f32.partialorder %v745, 0.0
    %v747 = vmul.f32 %v745, 0.2
    %v748 = vsel %vm746, %v745, %v747
    %v749 = vld [vmem:[%s1] sm:$0x3]
    %v750 = vld [vmem:[#allocation4] sm:$0xff]
    %v751 = vld [vmem:[#allocation4 + $0x8] sm:$0xff]
    %v752 = vld [vmem:[#allocation4 + $0x10] sm:$0xff]
    %v753 = vld [vmem:[#allocation4 + $0x18] sm:$0xff]
    %v754 = vld [vmem:[#allocation4 + $0x20] sm:$0xff]
    %v755 = vld [vmem:[#allocation4 + $0x28] sm:$0xff]
    %v756 = vld [vmem:[#allocation4 + $0x30] sm:$0xff]
    %v757 = vld [vmem:[#allocation4 + $0x38] sm:$0xff]
    %v758 = vld [vmem:[#allocation4 + $0x40] sm:$0xff]
    %v759 = vld [vmem:[#allocation4 + $0x48] sm:$0xff]
    %v760 = vld [vmem:[#allocation4 + $0x50] sm:$0xff]
    %v761 = vld [vmem:[#allocation4 + $0x58] sm:$0xff]
    %v762 = vld [vmem:[#allocation4 + $0x60] sm:$0xff]
    %v763 = vld [vmem:[#allocation4 + $0x68] sm:$0xff]
    %v764 = vld [vmem:[#allocation4 + $0x70] sm:$0xff]
    %v765 = vld [vmem:[#allocation4 + $0x78] sm:$0xff]
    %v766 = vld [vmem:[#allocation4 + $0x80] sm:$0xff]
    %v767 = vld [vmem:[#allocation4 + $0x88] sm:$0xff]
    %v768 = vld [vmem:[#allocation4 + $0x90] sm:$0xff]
    %v769 = vld [vmem:[#allocation4 + $0x98] sm:$0xff]
    %v770 = vld [vmem:[#allocation4 + $0xa0] sm:$0xff]
    %v771 = vld [vmem:[#allocation4 + $0xa8] sm:$0xff]
    %v772 = vld [vmem:[#allocation4 + $0xb0] sm:$0xff]
    %v773 = vld [vmem:[#allocation4 + $0xb8] sm:$0xff]
    %v774 = vld [vmem:[#allocation4 + $0xc0] sm:$0xff]
    %v775 = vld [vmem:[#allocation4 + $0xc8] sm:$0xff]
    %v776 = vld [vmem:[#allocation4 + $0xd0] sm:$0xff]
    %v777 = vld [vmem:[#allocation4 + $0xd8] sm:$0xff]
    %v778 = vld [vmem:[#allocation4 + $0xe0] sm:$0xff]
    %v779 = vld [vmem:[#allocation4 + $0xe8] sm:$0xff]
    %v780 = vld [vmem:[#allocation4 + $0xf0] sm:$0xff]
    %v781 = vld [vmem:[#allocation4 + $0xf8] sm:$0xff]
    %v782 = vld [vmem:[#allocation4 + $0x100] sm:$0xff]
    %v783 = vld [vmem:[#allocation4 + $0x108] sm:$0xff]
    %v784 = vld [vmem:[#allocation4 + $0x110] sm:$0xff]
    %v785 = vld [vmem:[#allocation4 + $0x118] sm:$0xff]
    %v786 = vld [vmem:[#allocation4 + $0x120] sm:$0xff]
    %v787 = vld [vmem:[#allocation4 + $0x128] sm:$0xff]
    %v788 = vld [vmem:[#allocation4 + $0x130] sm:$0xff]
    %v789 = vld [vmem:[#allocation4 + $0x138] sm:$0xff]
    %v790 = vld [vmem:[#allocation4 + $0x140] sm:$0xff]
    %v791 = vld [vmem:[#allocation4 + $0x148] sm:$0xff]
    %v792 = vld [vmem:[#allocation4 + $0x150] sm:$0xff]
    %v793 = vld [vmem:[#allocation4 + $0x158] sm:$0xff]
    %v794 = vld [vmem:[#allocation4 + $0x160] sm:$0xff]
    %v795 = vld [vmem:[#allocation4 + $0x168] sm:$0xff]
    %v796 = vld [vmem:[#allocation4 + $0x170] sm:$0xff]
    %v797 = vld [vmem:[#allocation4 + $0x178] sm:$0xff]
    %v798 = vld [vmem:[#allocation4 + $0x180] sm:$0x33]
    %v799 = vld [vmem:[#allocation4 + $0x188] sm:$0x33]
    %v800 = vld [vmem:[#allocation4 + $0x190] sm:$0x33]
    %v801 = vld [vmem:[#allocation4 + $0x198] sm:$0x33]
    %v802 = vpack.c.bf16 %v749, %v749
    %v855 = vunpack.c.l.b16 %v750
    %v856 = vunpack.c.h.b16 %v750
    %v857 = vunpack.c.l.b16 %v751
    %v858 = vunpack.c.h.b16 %v751
    %v859 = vunpack.c.l.b16 %v752
    %v860 = vunpack.c.h.b16 %v752
    %v861 = vunpack.c.l.b16 %v753
    %v862 = vunpack.c.h.b16 %v753
    %v863 = vunpack.c.l.b16 %v754
    %v864 = vunpack.c.h.b16 %v754
    %v865 = vunpack.c.l.b16 %v755
    %v866 = vunpack.c.h.b16 %v755
    %v867 = vunpack.c.l.b16 %v756
    %v868 = vunpack.c.h.b16 %v756
    %v869 = vunpack.c.l.b16 %v757
    %v870 = vunpack.c.h.b16 %v757
    %v871 = vunpack.c.l.b16 %v758
    %v872 = vunpack.c.h.b16 %v758
    %v873 = vunpack.c.l.b16 %v759
    %v874 = vunpack.c.h.b16 %v759
    %v875 = vunpack.c.l.b16 %v760
    %v876 = vunpack.c.h.b16 %v760
    %v877 = vunpack.c.l.b16 %v761
    %v878 = vunpack.c.h.b16 %v761
    %v879 = vunpack.c.l.b16 %v762
    %v880 = vunpack.c.h.b16 %v762
    %v881 = vunpack.c.l.b16 %v763
    %v882 = vunpack.c.h.b16 %v763
    %v883 = vunpack.c.l.b16 %v764
    %v884 = vunpack.c.h.b16 %v764
    %v885 = vunpack.c.l.b16 %v765
    %v886 = vunpack.c.h.b16 %v765
    %v887 = vunpack.c.l.b16 %v766
    %v888 = vunpack.c.h.b16 %v766
    %v889 = vunpack.c.l.b16 %v767
    %v890 = vunpack.c.h.b16 %v767
    %v891 = vunpack.c.l.b16 %v768
    %v892 = vunpack.c.h.b16 %v768
    %v893 = vunpack.c.l.b16 %v769
    %v894 = vunpack.c.h.b16 %v769
    %v895 = vunpack.c.l.b16 %v770
    %v896 = vunpack.c.h.b16 %v770
    %v897 = vunpack.c.l.b16 %v771
    %v898 = vunpack.c.h.b16 %v771
    %v899 = vunpack.c.l.b16 %v772
    %v900 = vunpack.c.h.b16 %v772
    %v901 = vunpack.c.l.b16 %v773
    %v902 = vunpack.c.h.b16 %v773
    %v903 = vunpack.c.l.b16 %v774
    %v904 = vunpack.c.h.b16 %v774
    %v905 = vunpack.c.l.b16 %v775
    %v906 = vunpack.c.h.b16 %v775
    %v907 = vunpack.c.l.b16 %v776
    %v908 = vunpack.c.h.b16 %v776
    %v909 = vunpack.c.l.b16 %v777
    %v910 = vunpack.c.h.b16 %v777
    %v911 = vunpack.c.l.b16 %v778
    %v912 = vunpack.c.h.b16 %v778
    %v913 = vunpack.c.l.b16 %v779
    %v914 = vunpack.c.h.b16 %v779
    %v915 = vunpack.c.l.b16 %v780
    %v916 = vunpack.c.h.b16 %v780
    %v917 = vunpack.c.l.b16 %v781
    %v918 = vunpack.c.h.b16 %v781
    %v919 = vunpack.c.l.b16 %v782
    %v920 = vunpack.c.h.b16 %v782
    %v921 = vunpack.c.l.b16 %v783
    %v922 = vunpack.c.h.b16 %v783
    %v923 = vunpack.c.l.b16 %v784
    %v924 = vunpack.c.h.b16 %v784
    %v925 = vunpack.c.l.b16 %v785
    %v926 = vunpack.c.h.b16 %v785
    %v927 = vunpack.c.l.b16 %v786
    %v928 = vunpack.c.h.b16 %v786
    %v929 = vunpack.c.l.b16 %v787
    %v930 = vunpack.c.h.b16 %v787
    %v931 = vunpack.c.l.b16 %v788
    %v932 = vunpack.c.h.b16 %v788
    %v933 = vunpack.c.l.b16 %v789
    %v934 = vunpack.c.h.b16 %v789
    %v935 = vunpack.c.l.b16 %v790
    %v936 = vunpack.c.h.b16 %v790
    %v937 = vunpack.c.l.b16 %v791
    %v938 = vunpack.c.h.b16 %v791
    %v939 = vunpack.c.l.b16 %v792
    %v940 = vunpack.c.h.b16 %v792
    %v941 = vunpack.c.l.b16 %v793
    %v942 = vunpack.c.h.b16 %v793
    %v943 = vunpack.c.l.b16 %v794
    %v944 = vunpack.c.h.b16 %v794
    %v945 = vunpack.c.l.b16 %v795
    %v946 = vunpack.c.h.b16 %v795
    %v947 = vunpack.c.l.b16 %v796
    %v948 = vunpack.c.h.b16 %v796
    %v949 = vunpack.c.l.b16 %v797
    %v950 = vunpack.c.h.b16 %v797
    %v951 = vunpack.c.l.b16 %v798
    %v952 = vunpack.c.h.b16 %v798
    %v953 = vunpack.c.l.b16 %v799
    %v954 = vunpack.c.h.b16 %v799
    %v955 = vunpack.c.l.b16 %v800
    %v956 = vunpack.c.h.b16 %v800
    %v957 = vunpack.c.l.b16 %v801
    %v958 = vunpack.c.h.b16 %v801
    %v959 = vpack.c.b16 %v863, %v855
    %v960 = vpack.c.b16 %v864, %v856
    %v961 = vpack.c.b16 %v865, %v857
    %v962 = vpack.c.b16 %v866, %v858
    %v963 = vpack.c.b16 %v867, %v859
    %v964 = vpack.c.b16 %v868, %v860
    %v965 = vpack.c.b16 %v869, %v861
    %v966 = vpack.c.b16 %v870, %v862
    %v967 = vpack.c.b16 %v879, %v871
    %v968 = vpack.c.b16 %v880, %v872
    %v969 = vpack.c.b16 %v881, %v873
    %v970 = vpack.c.b16 %v882, %v874
    %v971 = vpack.c.b16 %v883, %v875
    %v972 = vpack.c.b16 %v884, %v876
    %v973 = vpack.c.b16 %v885, %v877
    %v974 = vpack.c.b16 %v886, %v878
    %v975 = vpack.c.b16 %v895, %v887
    %v976 = vpack.c.b16 %v896, %v888
    %v977 = vpack.c.b16 %v897, %v889
    %v978 = vpack.c.b16 %v898, %v890
    %v979 = vpack.c.b16 %v899, %v891
    %v980 = vpack.c.b16 %v900, %v892
    %v981 = vpack.c.b16 %v901, %v893
    %v982 = vpack.c.b16 %v902, %v894
    %v983 = vpack.c.b16 %v911, %v903
    %v984 = vpack.c.b16 %v912, %v904
    %v985 = vpack.c.b16 %v913, %v905
    %v986 = vpack.c.b16 %v914, %v906
    %v987 = vpack.c.b16 %v915, %v907
    %v988 = vpack.c.b16 %v916, %v908
    %v989 = vpack.c.b16 %v917, %v909
    %v990 = vpack.c.b16 %v918, %v910
    %v991 = vpack.c.b16 %v927, %v919
    %v992 = vpack.c.b16 %v928, %v920
    %v993 = vpack.c.b16 %v929, %v921
    %v994 = vpack.c.b16 %v930, %v922
    %v995 = vpack.c.b16 %v931, %v923
    %v996 = vpack.c.b16 %v932, %v924
    %v997 = vpack.c.b16 %v933, %v925
    %v998 = vpack.c.b16 %v934, %v926
    %v999 = vpack.c.b16 %v943, %v935
    %v1000 = vpack.c.b16 %v944, %v936
    %v1001 = vpack.c.b16 %v945, %v937
    %v1002 = vpack.c.b16 %v946, %v938
    %v1003 = vpack.c.b16 %v947, %v939
    %v1004 = vpack.c.b16 %v948, %v940
    %v1005 = vpack.c.b16 %v949, %v941
    %v1006 = vpack.c.b16 %v950, %v942
    %v1007 = vpack.c.b16 %v951, %v951
    %v1008 = vpack.c.b16 %v952, %v952
    %v1009 = vpack.c.b16 %v953, %v953
    %v1010 = vpack.c.b16 %v954, %v954
    %v1011 = vpack.c.b16 %v955, %v955
    %v1012 = vpack.c.b16 %v956, %v956
    %v1013 = vpack.c.b16 %v957, %v957
    %v1014 = vpack.c.b16 %v958, %v958
    %vm1063 = vcmask 818176
    %v1065 = vsel %vm1063, %v802, 0
    %vm1067 = vcmask 1041408
    %v1069 = vsel %vm1067, %v1007, 0
    %v1072 = vsel %vm1067, %v1008, 0
    %v1075 = vsel %vm1067, %v1009, 0
    %v1078 = vsel %vm1067, %v1010, 0
    %v1081 = vsel %vm1067, %v1011, 0
    %v1084 = vsel %vm1067, %v1012, 0
    %v1087 = vsel %vm1067, %v1013, 0
    %v1090 = vsel %vm1067, %v1014, 0
    %1092 = vmatprep.subr.bf16.mxu0 %v960
    %1093 = vmatpush1.bf16.msra.mxu0 %v959
    %1094 = vmatprep.subr.bf16.mxu0 %v968
    %1095 = vmatpush1.bf16.msra.mxu0 %v967
    %1096 = vmatprep.subr.bf16.mxu0 %v976
    %1097 = vmatpush1.bf16.msra.mxu0 %v975
    %1098 = vmatprep.subr.bf16.mxu0 %v984
    %1099 = vmatpush1.bf16.msra.mxu0 %v983
    %1100 = vmatprep.subr.bf16.mxu0 %v992
    %1101 = vmatpush1.bf16.msra.mxu0 %v991
    %1102 = vmatprep.subr.bf16.mxu0 %v1000
    %1103 = vmatpush1.bf16.msra.mxu0 %v999
    %1104 = vmatprep.subr.bf16.mxu0 %v1072
    %1105 = vmatpush1.bf16.msra.mxu0 %v1069
    %1106 = vmatprep.subr.bf16.mxu0 0
    %1107 = vmatpush1.bf16.msra.mxu0 0
    %1108 = vmatprep.subr.bf16.mxu0 0
    %1109 = vmatpush1.bf16.msra.mxu0 0
    %1110 = vmatprep.subr.bf16.mxu0 0
    %1111 = vmatpush1.bf16.msra.mxu0 0
    %1112 = vmatprep.subr.bf16.mxu0 0
    %1113 = vmatpush1.bf16.msra.mxu0 0
    %1114 = vmatprep.subr.bf16.mxu0 0
    %1115 = vmatpush1.bf16.msra.mxu0 0
    %1116 = vmatprep.subr.bf16.mxu0 0
    %1117 = vmatpush1.bf16.msra.mxu0 0
    %1118 = vmatprep.subr.bf16.mxu0 0
    %1119 = vmatpush1.bf16.msra.mxu0 0
    %1120 = vmatprep.subr.bf16.mxu0 0
    %1121 = vmatpush1.bf16.msra.mxu0 0
    %1122 = vmatprep.subr.bf16.mxu0 0
    %1123 = vmatpush1.bf16.msra.mxu0 0
    %1124 = vmatprep.mubr.bf16.mxu0 0
    %1125 = vmatmul.mubr.bf16.gmra.mrb[0].mxu0 %v1065
    %v1126 = vpop.f32.mrb[0].mxu0
    %v1127 = vadd.f32 0.0, %v1126
    %v1128 = vpop.f32.mrb[0].mxu0
    %v1129 = vadd.f32 0.0, %v1128
    %v1130 = vpop.f32.mrb[0].mxu0
    %v1131 = vpop.f32.mrb[0].mxu0
    %1132 = vdwg.mxu0
    %1133 = vmatprep.subr.bf16.mxu0 %v962
    %1134 = vmatpush1.bf16.msra.mxu0 %v961
    %1135 = vmatprep.subr.bf16.mxu0 %v970
    %1136 = vmatpush1.bf16.msra.mxu0 %v969
    %1137 = vmatprep.subr.bf16.mxu0 %v978
    %1138 = vmatpush1.bf16.msra.mxu0 %v977
    %1139 = vmatprep.subr.bf16.mxu0 %v986
    %1140 = vmatpush1.bf16.msra.mxu0 %v985
    %1141 = vmatprep.subr.bf16.mxu0 %v994
    %1142 = vmatpush1.bf16.msra.mxu0 %v993
    %1143 = vmatprep.subr.bf16.mxu0 %v1002
    %1144 = vmatpush1.bf16.msra.mxu0 %v1001
    %1145 = vmatprep.subr.bf16.mxu0 %v1078
    %1146 = vmatpush1.bf16.msra.mxu0 %v1075
    %1147 = vmatprep.subr.bf16.mxu0 0
    %1148 = vmatpush1.bf16.msra.mxu0 0
    %1149 = vmatprep.subr.bf16.mxu0 0
    %1150 = vmatpush1.bf16.msra.mxu0 0
    %1151 = vmatprep.subr.bf16.mxu0 0
    %1152 = vmatpush1.bf16.msra.mxu0 0
    %1153 = vmatprep.subr.bf16.mxu0 0
    %1154 = vmatpush1.bf16.msra.mxu0 0
    %1155 = vmatprep.subr.bf16.mxu0 0
    %1156 = vmatpush1.bf16.msra.mxu0 0
    %1157 = vmatprep.subr.bf16.mxu0 0
    %1158 = vmatpush1.bf16.msra.mxu0 0
    %1159 = vmatprep.subr.bf16.mxu0 0
    %1160 = vmatpush1.bf16.msra.mxu0 0
    %1161 = vmatprep.subr.bf16.mxu0 0
    %1162 = vmatpush1.bf16.msra.mxu0 0
    %1163 = vmatprep.subr.bf16.mxu0 0
    %1164 = vmatpush1.bf16.msra.mxu0 0
    %1165 = vmatprep.mubr.bf16.mxu0 0
    %1166 = vmatmul.mubr.bf16.gmra.mrb[0].mxu0 %v1065
    %v1167 = vpop.f32.mrb[0].mxu0
    %v1168 = vadd.f32 0.0, %v1167
    %v1169 = vpop.f32.mrb[0].mxu0
    %v1170 = vadd.f32 0.0, %v1169
    %v1171 = vpop.f32.mrb[0].mxu0
    %v1172 = vpop.f32.mrb[0].mxu0
    %1173 = vdwg.mxu0
    %1174 = vmatprep.subr.bf16.mxu0 %v964
    %1175 = vmatpush1.bf16.msra.mxu0 %v963
    %1176 = vmatprep.subr.bf16.mxu0 %v972
    %1177 = vmatpush1.bf16.msra.mxu0 %v971
    %1178 = vmatprep.subr.bf16.mxu0 %v980
    %1179 = vmatpush1.bf16.msra.mxu0 %v979
    %1180 = vmatprep.subr.bf16.mxu0 %v988
    %1181 = vmatpush1.bf16.msra.mxu0 %v987
    %1182 = vmatprep.subr.bf16.mxu0 %v996
    %1183 = vmatpush1.bf16.msra.mxu0 %v995
    %1184 = vmatprep.subr.bf16.mxu0 %v1004
    %1185 = vmatpush1.bf16.msra.mxu0 %v1003
    %1186 = vmatprep.subr.bf16.mxu0 %v1084
    %1187 = vmatpush1.bf16.msra.mxu0 %v1081
    %1188 = vmatprep.subr.bf16.mxu0 0
    %1189 = vmatpush1.bf16.msra.mxu0 0
    %1190 = vmatprep.subr.bf16.mxu0 0
    %1191 = vmatpush1.bf16.msra.mxu0 0
    %1192 = vmatprep.subr.bf16.mxu0 0
    %1193 = vmatpush1.bf16.msra.mxu0 0
    %1194 = vmatprep.subr.bf16.mxu0 0
    %1195 = vmatpush1.bf16.msra.mxu0 0
    %1196 = vmatprep.subr.bf16.mxu0 0
    %1197 = vmatpush1.bf16.msra.mxu0 0
    %1198 = vmatprep.subr.bf16.mxu0 0
    %1199 = vmatpush1.bf16.msra.mxu0 0
    %1200 = vmatprep.subr.bf16.mxu0 0
    %1201 = vmatpush1.bf16.msra.mxu0 0
    %1202 = vmatprep.subr.bf16.mxu0 0
    %1203 = vmatpush1.bf16.msra.mxu0 0
    %1204 = vmatprep.subr.bf16.mxu0 0
    %1205 = vmatpush1.bf16.msra.mxu0 0
    %1206 = vmatprep.mubr.bf16.mxu0 0
    %1207 = vmatmul.mubr.bf16.gmra.mrb[0].mxu0 %v1065
    %v1208 = vpop.f32.mrb[0].mxu0
    %v1209 = vadd.f32 0.0, %v1208
    %v1210 = vpop.f32.mrb[0].mxu0
    %v1211 = vadd.f32 0.0, %v1210
    %v1212 = vpop.f32.mrb[0].mxu0
    %v1213 = vpop.f32.mrb[0].mxu0
    %1214 = vdwg.mxu0
    %1215 = vmatprep.subr.bf16.mxu0 %v966
    %1216 = vmatpush1.bf16.msra.mxu0 %v965
    %1217 = vmatprep.subr.bf16.mxu0 %v974
    %1218 = vmatpush1.bf16.msra.mxu0 %v973
    %1219 = vmatprep.subr.bf16.mxu0 %v982
    %1220 = vmatpush1.bf16.msra.mxu0 %v981
    %1221 = vmatprep.subr.bf16.mxu0 %v990
    %1222 = vmatpush1.bf16.msra.mxu0 %v989
    %1223 = vmatprep.subr.bf16.mxu0 %v998
    %1224 = vmatpush1.bf16.msra.mxu0 %v997
    %1225 = vmatprep.subr.bf16.mxu0 %v1006
    %1226 = vmatpush1.bf16.msra.mxu0 %v1005
    %1227 = vmatprep.subr.bf16.mxu0 %v1090
    %1228 = vmatpush1.bf16.msra.mxu0 %v1087
    %1229 = vmatprep.subr.bf16.mxu0 0
    %1230 = vmatpush1.bf16.msra.mxu0 0
    %1231 = vmatprep.subr.bf16.mxu0 0
    %1232 = vmatpush1.bf16.msra.mxu0 0
    %1233 = vmatprep.subr.bf16.mxu0 0
    %1234 = vmatpush1.bf16.msra.mxu0 0
    %1235 = vmatprep.subr.bf16.mxu0 0
    %1236 = vmatpush1.bf16.msra.mxu0 0
    %1237 = vmatprep.subr.bf16.mxu0 0
    %1238 = vmatpush1.bf16.msra.mxu0 0
    %1239 = vmatprep.subr.bf16.mxu0 0
    %1240 = vmatpush1.bf16.msra.mxu0 0
    %1241 = vmatprep.subr.bf16.mxu0 0
    %1242 = vmatpush1.bf16.msra.mxu0 0
    %1243 = vmatprep.subr.bf16.mxu0 0
    %1244 = vmatpush1.bf16.msra.mxu0 0
    %1245 = vmatprep.subr.bf16.mxu0 0
    %1246 = vmatpush1.bf16.msra.mxu0 0
    %1247 = vmatprep.mubr.bf16.mxu0 0
    %1248 = vmatmul.mubr.bf16.gmra.mrb[0].mxu0 %v1065
    %v1249 = vpop.f32.mrb[0].mxu0
    %v1250 = vadd.f32 0.0, %v1249
    %v1251 = vpop.f32.mrb[0].mxu0
    %v1252 = vadd.f32 0.0, %v1251
    %v1253 = vpop.f32.mrb[0].mxu0
    %v1254 = vpop.f32.mrb[0].mxu0
    %1255 = vdwg.mxu0
    %v1256 = vld [vmem:[%s3] ss:$4 sm:$0xff]
    %s1257 = scalar_lea.vmem %s3, 1
    %v1258 = vld [vmem:[%s1257] ss:$4 sm:$0xff]
    %v1259 = vsel %vm1067, %v1127, 0.0
    %v1260 = vrot.slane %v1259, 4
    %v1261 = vadd.f32 %v1259, %v1260
    %v1262 = vrot.slane %v1261, 2
    %v1263 = vadd.f32 %v1261, %v1262
    %v1264 = vrot.slane %v1263, 1
    %v1265 = vadd.f32 %v1263, %v1264
    %v1266 = vsel %vm1067, %v1129, 0.0
    %v1267 = vrot.slane %v1266, 4
    %v1268 = vadd.f32 %v1266, %v1267
    %v1269 = vrot.slane %v1268, 2
    %v1270 = vadd.f32 %v1268, %v1269
    %v1271 = vrot.slane %v1270, 1
    %v1272 = vadd.f32 %v1270, %v1271
    %v1273 = vsel %vm1067, %v1168, 0.0
    %v1274 = vrot.slane %v1273, 4
    %v1275 = vadd.f32 %v1273, %v1274
    %v1276 = vrot.slane %v1275, 2
    %v1277 = vadd.f32 %v1275, %v1276
    %v1278 = vrot.slane %v1277, 1
    %v1279 = vadd.f32 %v1277, %v1278
    %v1280 = vsel %vm1067, %v1170, 0.0
    %v1281 = vrot.slane %v1280, 4
    %v1282 = vadd.f32 %v1280, %v1281
    %v1283 = vrot.slane %v1282, 2
    %v1284 = vadd.f32 %v1282, %v1283
    %v1285 = vrot.slane %v1284, 1
    %v1286 = vadd.f32 %v1284, %v1285
    %v1287 = vsel %vm1067, %v1209, 0.0
    %v1288 = vrot.slane %v1287, 4
    %v1289 = vadd.f32 %v1287, %v1288
    %v1290 = vrot.slane %v1289, 2
    %v1291 = vadd.f32 %v1289, %v1290
    %v1292 = vrot.slane %v1291, 1
    %v1293 = vadd.f32 %v1291, %v1292
    %v1294 = vsel %vm1067, %v1211, 0.0
    %v1295 = vrot.slane %v1294, 4
    %v1296 = vadd.f32 %v1294, %v1295
    %v1297 = vrot.slane %v1296, 2
    %v1298 = vadd.f32 %v1296, %v1297
    %v1299 = vrot.slane %v1298, 1
    %v1300 = vadd.f32 %v1298, %v1299
    %v1301 = vsel %vm1067, %v1250, 0.0
    %v1302 = vrot.slane %v1301, 4
    %v1303 = vadd.f32 %v1301, %v1302
    %v1304 = vrot.slane %v1303, 2
    %v1305 = vadd.f32 %v1303, %v1304
    %v1306 = vrot.slane %v1305, 1
    %v1307 = vadd.f32 %v1305, %v1306
    %v1308 = vsel %vm1067, %v1252, 0.0
    %v1309 = vrot.slane %v1308, 4
    %v1310 = vadd.f32 %v1308, %v1309
    %v1311 = vrot.slane %v1310, 2
    %v1312 = vadd.f32 %v1310, %v1311
    %v1313 = vrot.slane %v1312, 1
    %v1314 = vadd.f32 %v1312, %v1313
    %v1315 = vrcp.pop 2.0
    %v1316 = vmul.f32 %v1265, %v1315
    %v1317 = vmul.f32 %v1272, %v1315
    %v1318 = vmul.f32 %v1279, %v1315
    %v1319 = vmul.f32 %v1286, %v1315
    %v1320 = vmul.f32 %v1293, %v1315
    %v1321 = vmul.f32 %v1300, %v1315
    %v1322 = vmul.f32 %v1307, %v1315
    %v1323 = vmul.f32 %v1314, %v1315
    %v1324 = vsub.f32 %v1127, %v1316
    %v1325 = vsub.f32 %v1129, %v1317
    %v1326 = vsub.f32 %v1168, %v1318
    %v1327 = vsub.f32 %v1170, %v1319
    %v1328 = vsub.f32 %v1209, %v1320
    %v1329 = vsub.f32 %v1211, %v1321
    %v1330 = vsub.f32 %v1250, %v1322
    %v1331 = vsub.f32 %v1252, %v1323
    %v1332 = vmul.f32 %v1324, %v1324
    %v1333 = vmul.f32 %v1325, %v1325
    %v1334 = vmul.f32 %v1326, %v1326
    %v1335 = vmul.f32 %v1327, %v1327
    %v1336 = vmul.f32 %v1328, %v1328
    %v1337 = vmul.f32 %v1329, %v1329
    %v1338 = vmul.f32 %v1330, %v1330
    %v1339 = vmul.f32 %v1331, %v1331
    %v1340 = vsel %vm1067, %v1332, 0.0
    %v1341 = vrot.slane %v1340, 4
    %v1342 = vadd.f32 %v1340, %v1341
    %v1343 = vrot.slane %v1342, 2
    %v1344 = vadd.f32 %v1342, %v1343
    %v1345 = vrot.slane %v1344, 1
    %v1346 = vadd.f32 %v1344, %v1345
    %v1347 = vsel %vm1067, %v1333, 0.0
    %v1348 = vrot.slane %v1347, 4
    %v1349 = vadd.f32 %v1347, %v1348
    %v1350 = vrot.slane %v1349, 2
    %v1351 = vadd.f32 %v1349, %v1350
    %v1352 = vrot.slane %v1351, 1
    %v1353 = vadd.f32 %v1351, %v1352
    %v1354 = vsel %vm1067, %v1334, 0.0
    %v1355 = vrot.slane %v1354, 4
    %v1356 = vadd.f32 %v1354, %v1355
    %v1357 = vrot.slane %v1356, 2
    %v1358 = vadd.f32 %v1356, %v1357
    %v1359 = vrot.slane %v1358, 1
    %v1360 = vadd.f32 %v1358, %v1359
    %v1361 = vsel %vm1067, %v1335, 0.0
    %v1362 = vrot.slane %v1361, 4
    %v1363 = vadd.f32 %v1361, %v1362
    %v1364 = vrot.slane %v1363, 2
    %v1365 = vadd.f32 %v1363, %v1364
    %v1366 = vrot.slane %v1365, 1
    %v1367 = vadd.f32 %v1365, %v1366
    %v1368 = vsel %vm1067, %v1336, 0.0
    %v1369 = vrot.slane %v1368, 4
    %v1370 = vadd.f32 %v1368, %v1369
    %v1371 = vrot.slane %v1370, 2
    %v1372 = vadd.f32 %v1370, %v1371
    %v1373 = vrot.slane %v1372, 1
    %v1374 = vadd.f32 %v1372, %v1373
    %v1375 = vsel %vm1067, %v1337, 0.0
    %v1376 = vrot.slane %v1375, 4
    %v1377 = vadd.f32 %v1375, %v1376
    %v1378 = vrot.slane %v1377, 2
    %v1379 = vadd.f32 %v1377, %v1378
    %v1380 = vrot.slane %v1379, 1
    %v1381 = vadd.f32 %v1379, %v1380
    %v1382 = vsel %vm1067, %v1338, 0.0
    %v1383 = vrot.slane %v1382, 4
    %v1384 = vadd.f32 %v1382, %v1383
    %v1385 = vrot.slane %v1384, 2
    %v1386 = vadd.f32 %v1384, %v1385
    %v1387 = vrot.slane %v1386, 1
    %v1388 = vadd.f32 %v1386, %v1387
    %v1389 = vsel %vm1067, %v1339, 0.0
    %v1390 = vrot.slane %v1389, 4
    %v1391 = vadd.f32 %v1389, %v1390
    %v1392 = vrot.slane %v1391, 2
    %v1393 = vadd.f32 %v1391, %v1392
    %v1394 = vrot.slane %v1393, 1
    %v1395 = vadd.f32 %v1393, %v1394
    %v1396 = vmul.f32 %v1346, %v1315
    %v1397 = vmul.f32 %v1353, %v1315
    %v1398 = vmul.f32 %v1360, %v1315
    %v1399 = vmul.f32 %v1367, %v1315
    %v1400 = vmul.f32 %v1374, %v1315
    %v1401 = vmul.f32 %v1381, %v1315
    %v1402 = vmul.f32 %v1388, %v1315
    %v1403 = vmul.f32 %v1395, %v1315
    %v1404 = vadd.f32 %v1396, 1e-05
    %v1405 = vadd.f32 %v1397, 1e-05
    %v1406 = vadd.f32 %v1398, 1e-05
    %v1407 = vadd.f32 %v1399, 1e-05
    %v1408 = vadd.f32 %v1400, 1e-05
    %v1409 = vadd.f32 %v1401, 1e-05
    %v1410 = vadd.f32 %v1402, 1e-05
    %v1411 = vadd.f32 %v1403, 1e-05
    %v1412 = vrsqrt.pop %v1404
    %v1413 = vrsqrt.pop %v1405
    %v1414 = vrsqrt.pop %v1406
    %v1415 = vrsqrt.pop %v1407
    %v1416 = vrsqrt.pop %v1408
    %v1417 = vrsqrt.pop %v1409
    %v1418 = vrsqrt.pop %v1410
    %v1419 = vrsqrt.pop %v1411
    %v1420 = vmul.f32 %v1324, %v1412
    %v1421 = vmul.f32 %v1325, %v1413
    %v1422 = vmul.f32 %v1326, %v1414
    %v1423 = vmul.f32 %v1327, %v1415
    %v1424 = vmul.f32 %v1328, %v1416
    %v1425 = vmul.f32 %v1329, %v1417
    %v1426 = vmul.f32 %v1330, %v1418
    %v1427 = vmul.f32 %v1331, %v1419
    %v1429 = vlaneseq
    %v1430 = vshrl.u32 %v1429, 7
    %v1431 = vsub.s32 0, %v1430
    %v1432 = vrot.slane %v1256, %v1431
    %v1433 = vlaneseq
    %v1434 = vshrl.u32 %v1433, 7
    %v1435 = vsub.s32 1, %v1434
    %v1436 = vrot.slane %v1256, %v1435
    %v1437 = vlaneseq
    %v1438 = vshrl.u32 %v1437, 7
    %v1439 = vsub.s32 2, %v1438
    %v1440 = vrot.slane %v1256, %v1439
    %v1441 = vlaneseq
    %v1442 = vshrl.u32 %v1441, 7
    %v1443 = vsub.s32 3, %v1442
    %v1444 = vrot.slane %v1256, %v1443
    %v1445 = vlaneseq
    %v1446 = vshrl.u32 %v1445, 7
    %v1447 = vsub.s32 4, %v1446
    %v1448 = vrot.slane %v1256, %v1447
    %v1449 = vlaneseq
    %v1450 = vshrl.u32 %v1449, 7
    %v1451 = vsub.s32 5, %v1450
    %v1452 = vrot.slane %v1256, %v1451
    %v1453 = vlaneseq
    %v1454 = vshrl.u32 %v1453, 7
    %v1455 = vsub.s32 6, %v1454
    %v1456 = vrot.slane %v1256, %v1455
    %v1457 = vlaneseq
    %v1458 = vshrl.u32 %v1457, 7
    %v1459 = vsub.s32 7, %v1458
    %v1460 = vrot.slane %v1256, %v1459
    %v1469 = vmul.f32 %v1420, %v1432
    %v1470 = vmul.f32 %v1421, %v1436
    %v1471 = vmul.f32 %v1422, %v1440
    %v1472 = vmul.f32 %v1423, %v1444
    %v1473 = vmul.f32 %v1424, %v1448
    %v1474 = vmul.f32 %v1425, %v1452
    %v1475 = vmul.f32 %v1426, %v1456
    %v1476 = vmul.f32 %v1427, %v1460
    %v1478 = vlaneseq
    %v1479 = vshrl.u32 %v1478, 7
    %v1480 = vsub.s32 0, %v1479
    %v1481 = vrot.slane %v1258, %v1480
    %v1482 = vlaneseq
    %v1483 = vshrl.u32 %v1482, 7
    %v1484 = vsub.s32 1, %v1483
    %v1485 = vrot.slane %v1258, %v1484
    %v1486 = vlaneseq
    %v1487 = vshrl.u32 %v1486, 7
    %v1488 = vsub.s32 2, %v1487
    %v1489 = vrot.slane %v1258, %v1488
    %v1490 = vlaneseq
    %v1491 = vshrl.u32 %v1490, 7
    %v1492 = vsub.s32 3, %v1491
    %v1493 = vrot.slane %v1258, %v1492
    %v1494 = vlaneseq
    %v1495 = vshrl.u32 %v1494, 7
    %v1496 = vsub.s32 4, %v1495
    %v1497 = vrot.slane %v1258, %v1496
    %v1498 = vlaneseq
    %v1499 = vshrl.u32 %v1498, 7
    %v1500 = vsub.s32 5, %v1499
    %v1501 = vrot.slane %v1258, %v1500
    %v1502 = vlaneseq
    %v1503 = vshrl.u32 %v1502, 7
    %v1504 = vsub.s32 6, %v1503
    %v1505 = vrot.slane %v1258, %v1504
    %v1506 = vlaneseq
    %v1507 = vshrl.u32 %v1506, 7
    %v1508 = vsub.s32 7, %v1507
    %v1509 = vrot.slane %v1258, %v1508
    %v1518 = vadd.f32 %v1469, %v1481
    %v1519 = vadd.f32 %v1470, %v1485
    %v1520 = vadd.f32 %v1471, %v1489
    %v1521 = vadd.f32 %v1472, %v1493
    %v1522 = vadd.f32 %v1473, %v1497
    %v1523 = vadd.f32 %v1474, %v1501
    %v1524 = vadd.f32 %v1475, %v1505
    %v1525 = vadd.f32 %v1476, %v1509
    %v1526 = vmax.f32 %v1518, 0.0
    %v1527 = vmax.f32 %v1519, 0.0
    %v1528 = vmax.f32 %v1520, 0.0
    %v1529 = vmax.f32 %v1521, 0.0
    %v1530 = vmax.f32 %v1522, 0.0
    %v1531 = vmax.f32 %v1523, 0.0
    %v1532 = vmax.f32 %v1524, 0.0
    %v1533 = vmax.f32 %v1525, 0.0
    %s1534 = smul.u32 4, 236
    %s1535 = smul.u32 %s1534, 2
    %s1536 = sshll.u32 %s1535, 4
    %1537 = dma.done [#allocation3], %s1536
    %v1538 = vld [vmem:[#allocation2] sm:$0xff]
    %v1539 = vld [vmem:[#allocation2 + $0x8] sm:$0xff]
    %v1540 = vld [vmem:[#allocation2 + $0x10] sm:$0xff]
    %v1541 = vld [vmem:[#allocation2 + $0x18] sm:$0xff]
    %v1542 = vld [vmem:[#allocation2 + $0x20] sm:$0xff]
    %v1543 = vld [vmem:[#allocation2 + $0x28] sm:$0xff]
    %v1544 = vld [vmem:[#allocation2 + $0x30] sm:$0xff]
    %v1545 = vld [vmem:[#allocation2 + $0x38] sm:$0xff]
    %v1546 = vld [vmem:[#allocation2 + $0x40] sm:$0xff]
    %v1547 = vld [vmem:[#allocation2 + $0x48] sm:$0xff]
    %v1548 = vld [vmem:[#allocation2 + $0x50] sm:$0xff]
    %v1549 = vld [vmem:[#allocation2 + $0x58] sm:$0xff]
    %v1550 = vld [vmem:[#allocation2 + $0x60] sm:$0xff]
    %v1551 = vld [vmem:[#allocation2 + $0x68] sm:$0xff]
    %v1552 = vld [vmem:[#allocation2 + $0x70] sm:$0xff]
    %v1553 = vld [vmem:[#allocation2 + $0x78] sm:$0xff]
    %v1554 = vld [vmem:[#allocation2 + $0x80] sm:$0xff]
    %v1555 = vld [vmem:[#allocation2 + $0x88] sm:$0xff]
    %v1556 = vld [vmem:[#allocation2 + $0x90] sm:$0xff]
    %v1557 = vld [vmem:[#allocation2 + $0x98] sm:$0xff]
    %v1558 = vld [vmem:[#allocation2 + $0xa0] sm:$0xff]
    %v1559 = vld [vmem:[#allocation2 + $0xa8] sm:$0xff]
    %v1560 = vld [vmem:[#allocation2 + $0xb0] sm:$0xff]
    %v1561 = vld [vmem:[#allocation2 + $0xb8] sm:$0xff]
    %v1562 = vld [vmem:[#allocation2 + $0xc0] sm:$0xff]
    %v1563 = vld [vmem:[#allocation2 + $0xc8] sm:$0xff]
    %v1564 = vld [vmem:[#allocation2 + $0xd0] sm:$0xff]
    %v1565 = vld [vmem:[#allocation2 + $0xd8] sm:$0xff]
    %v1566 = vld [vmem:[#allocation2 + $0xe0] sm:$0xff]
    %v1567 = vld [vmem:[#allocation2 + $0xe8] sm:$0xff]
    %v1568 = vld [vmem:[#allocation2 + $0xf0] sm:$0xff]
    %v1569 = vld [vmem:[#allocation2 + $0xf8] sm:$0xff]
    %v1570 = vld [vmem:[#allocation2 + $0x100] sm:$0xff]
    %v1571 = vld [vmem:[#allocation2 + $0x108] sm:$0xff]
    %v1572 = vld [vmem:[#allocation2 + $0x110] sm:$0xff]
    %v1573 = vld [vmem:[#allocation2 + $0x118] sm:$0xff]
    %v1574 = vld [vmem:[#allocation2 + $0x120] sm:$0xff]
    %v1575 = vld [vmem:[#allocation2 + $0x128] sm:$0xff]
    %v1576 = vld [vmem:[#allocation2 + $0x130] sm:$0xff]
    %v1577 = vld [vmem:[#allocation2 + $0x138] sm:$0xff]
    %v1578 = vld [vmem:[#allocation2 + $0x140] sm:$0xff]
    %v1579 = vld [vmem:[#allocation2 + $0x148] sm:$0xff]
    %v1580 = vld [vmem:[#allocation2 + $0x150] sm:$0xff]
    %v1581 = vld [vmem:[#allocation2 + $0x158] sm:$0xff]
    %v1582 = vld [vmem:[#allocation2 + $0x160] sm:$0xff]
    %v1583 = vld [vmem:[#allocation2 + $0x168] sm:$0xff]
    %v1584 = vld [vmem:[#allocation2 + $0x170] sm:$0xff]
    %v1585 = vld [vmem:[#allocation2 + $0x178] sm:$0xff]
    %v1586 = vld [vmem:[#allocation2 + $0x180] sm:$0xff]
    %v1587 = vld [vmem:[#allocation2 + $0x188] sm:$0xff]
    %v1588 = vld [vmem:[#allocation2 + $0x190] sm:$0xff]
    %v1589 = vld [vmem:[#allocation2 + $0x198] sm:$0xff]
    %v1590 = vld [vmem:[#allocation2 + $0x1a0] sm:$0xff]
    %v1591 = vld [vmem:[#allocation2 + $0x1a8] sm:$0xff]
    %v1592 = vld [vmem:[#allocation2 + $0x1b0] sm:$0xff]
    %v1593 = vld [vmem:[#allocation2 + $0x1b8] sm:$0xff]
    %v1594 = vld [vmem:[#allocation2 + $0x1c0] sm:$0xff]
    %v1595 = vld [vmem:[#allocation2 + $0x1c8] sm:$0xff]
    %v1596 = vld [vmem:[#allocation2 + $0x1d0] sm:$0xff]
    %v1597 = vld [vmem:[#allocation2 + $0x1d8] sm:$0xff]
    %v1598 = vld [vmem:[#allocation2 + $0x1e0] sm:$0xff]
    %v1599 = vld [vmem:[#allocation2 + $0x1e8] sm:$0xff]
    %v1600 = vld [vmem:[#allocation2 + $0x1f0] sm:$0xff]
    %v1601 = vld [vmem:[#allocation2 + $0x1f8] sm:$0xff]
    %v1602 = vld [vmem:[#allocation2 + $0x200] sm:$0xff]
    %v1603 = vld [vmem:[#allocation2 + $0x208] sm:$0xff]
    %v1604 = vld [vmem:[#allocation2 + $0x210] sm:$0xff]
    %v1605 = vld [vmem:[#allocation2 + $0x218] sm:$0xff]
    %v1606 = vld [vmem:[#allocation2 + $0x220] sm:$0xff]
    %v1607 = vld [vmem:[#allocation2 + $0x228] sm:$0xff]
    %v1608 = vld [vmem:[#allocation2 + $0x230] sm:$0xff]
    %v1609 = vld [vmem:[#allocation2 + $0x238] sm:$0xff]
    %v1610 = vld [vmem:[#allocation2 + $0x240] sm:$0xff]
    %v1611 = vld [vmem:[#allocation2 + $0x248] sm:$0xff]
    %v1612 = vld [vmem:[#allocation2 + $0x250] sm:$0xff]
    %v1613 = vld [vmem:[#allocation2 + $0x258] sm:$0xff]
    %v1614 = vld [vmem:[#allocation2 + $0x260] sm:$0xff]
    %v1615 = vld [vmem:[#allocation2 + $0x268] sm:$0xff]
    %v1616 = vld [vmem:[#allocation2 + $0x270] sm:$0xff]
    %v1617 = vld [vmem:[#allocation2 + $0x278] sm:$0xff]
    %v1618 = vld [vmem:[#allocation2 + $0x280] sm:$0xff]
    %v1619 = vld [vmem:[#allocation2 + $0x288] sm:$0xff]
    %v1620 = vld [vmem:[#allocation2 + $0x290] sm:$0xff]
    %v1621 = vld [vmem:[#allocation2 + $0x298] sm:$0xff]
    %v1622 = vld [vmem:[#allocation2 + $0x2a0] sm:$0xff]
    %v1623 = vld [vmem:[#allocation2 + $0x2a8] sm:$0xff]
    %v1624 = vld [vmem:[#allocation2 + $0x2b0] sm:$0xff]
    %v1625 = vld [vmem:[#allocation2 + $0x2b8] sm:$0xff]
    %v1626 = vld [vmem:[#allocation2 + $0x2c0] sm:$0xff]
    %v1627 = vld [vmem:[#allocation2 + $0x2c8] sm:$0xff]
    %v1628 = vld [vmem:[#allocation2 + $0x2d0] sm:$0xff]
    %v1629 = vld [vmem:[#allocation2 + $0x2d8] sm:$0xff]
    %v1630 = vld [vmem:[#allocation2 + $0x2e0] sm:$0xff]
    %v1631 = vld [vmem:[#allocation2 + $0x2e8] sm:$0xff]
    %v1632 = vld [vmem:[#allocation2 + $0x2f0] sm:$0xff]
    %v1633 = vld [vmem:[#allocation2 + $0x2f8] sm:$0xff]
    %v1634 = vld [vmem:[#allocation2 + $0x300] sm:$0xff]
    %v1635 = vld [vmem:[#allocation2 + $0x308] sm:$0xff]
    %v1636 = vld [vmem:[#allocation2 + $0x310] sm:$0xff]
    %v1637 = vld [vmem:[#allocation2 + $0x318] sm:$0xff]
    %v1638 = vld [vmem:[#allocation2 + $0x320] sm:$0xff]
    %v1639 = vld [vmem:[#allocation2 + $0x328] sm:$0xff]
    %v1640 = vld [vmem:[#allocation2 + $0x330] sm:$0xff]
    %v1641 = vld [vmem:[#allocation2 + $0x338] sm:$0xff]
    %v1642 = vld [vmem:[#allocation2 + $0x340] sm:$0xff]
    %v1643 = vld [vmem:[#allocation2 + $0x348] sm:$0xff]
    %v1644 = vld [vmem:[#allocation2 + $0x350] sm:$0xff]
    %v1645 = vld [vmem:[#allocation2 + $0x358] sm:$0xff]
    %v1646 = vld [vmem:[#allocation2 + $0x360] sm:$0xff]
    %v1647 = vld [vmem:[#allocation2 + $0x368] sm:$0xff]
    %v1648 = vld [vmem:[#allocation2 + $0x370] sm:$0xff]
    %v1649 = vld [vmem:[#allocation2 + $0x378] sm:$0xff]
    %v1650 = vld [vmem:[#allocation2 + $0x380] sm:$0xff]
    %v1651 = vld [vmem:[#allocation2 + $0x388] sm:$0xff]
    %v1652 = vld [vmem:[#allocation2 + $0x390] sm:$0xff]
    %v1653 = vld [vmem:[#allocation2 + $0x398] sm:$0xff]
    %v1654 = vld [vmem:[#allocation2 + $0x3a0] sm:$0xff]
    %v1655 = vld [vmem:[#allocation2 + $0x3a8] sm:$0xff]
    %v1656 = vld [vmem:[#allocation2 + $0x3b0] sm:$0xff]
    %v1657 = vld [vmem:[#allocation2 + $0x3b8] sm:$0xff]
    %v1658 = vld [vmem:[#allocation2 + $0x3c0] sm:$0xff]
    %v1659 = vld [vmem:[#allocation2 + $0x3c8] sm:$0xff]
    %v1660 = vld [vmem:[#allocation2 + $0x3d0] sm:$0xff]
    %v1661 = vld [vmem:[#allocation2 + $0x3d8] sm:$0xff]
    %v1662 = vld [vmem:[#allocation2 + $0x3e0] sm:$0xff]
    %v1663 = vld [vmem:[#allocation2 + $0x3e8] sm:$0xff]
    %v1664 = vld [vmem:[#allocation2 + $0x3f0] sm:$0xff]
    %v1665 = vld [vmem:[#allocation2 + $0x3f8] sm:$0xff]
    %v1666 = vpack.c.bf16 %v1526, %v1526
    %v1667 = vpack.c.bf16 %v1527, %v1527
    %v1668 = vpack.c.bf16 %v1528, %v1528
    %v1669 = vpack.c.bf16 %v1529, %v1529
    %v1670 = vpack.c.bf16 %v1530, %v1530
    %v1671 = vpack.c.bf16 %v1531, %v1531
    %v1672 = vpack.c.bf16 %v1532, %v1532
    %v1673 = vpack.c.bf16 %v1533, %v1533
    %1674 = vmatprep.subr.bf16.mxu0 %v1539
    %1675 = vmatpush1.bf16.msra.mxu0 %v1538
    %1676 = vmatprep.subr.bf16.mxu0 %v1541
    %1677 = vmatpush1.bf16.msra.mxu0 %v1540
    %1678 = vmatprep.subr.bf16.mxu0 %v1543
    %1679 = vmatpush1.bf16.msra.mxu0 %v1542
    %1680 = vmatprep.subr.bf16.mxu0 %v1545
    %1681 = vmatpush1.bf16.msra.mxu0 %v1544
    %1682 = vmatprep.subr.bf16.mxu0 %v1547
    %1683 = vmatpush1.bf16.msra.mxu0 %v1546
    %1684 = vmatprep.subr.bf16.mxu0 %v1549
    %1685 = vmatpush1.bf16.msra.mxu0 %v1548
    %1686 = vmatprep.subr.bf16.mxu0 %v1551
    %1687 = vmatpush1.bf16.msra.mxu0 %v1550
    %1688 = vmatprep.subr.bf16.mxu0 %v1553
    %1689 = vmatpush1.bf16.msra.mxu0 %v1552
    %1690 = vmatprep.subr.bf16.mxu0 %v1555
    %1691 = vmatpush1.bf16.msra.mxu0 %v1554
    %1692 = vmatprep.subr.bf16.mxu0 %v1557
    %1693 = vmatpush1.bf16.msra.mxu0 %v1556
    %1694 = vmatprep.subr.bf16.mxu0 %v1559
    %1695 = vmatpush1.bf16.msra.mxu0 %v1558
    %1696 = vmatprep.subr.bf16.mxu0 %v1561
    %1697 = vmatpush1.bf16.msra.mxu0 %v1560
    %1698 = vmatprep.subr.bf16.mxu0 %v1563
    %1699 = vmatpush1.bf16.msra.mxu0 %v1562
    %1700 = vmatprep.subr.bf16.mxu0 %v1565
    %1701 = vmatpush1.bf16.msra.mxu0 %v1564
    %1702 = vmatprep.subr.bf16.mxu0 %v1567
    %1703 = vmatpush1.bf16.msra.mxu0 %v1566
    %1704 = vmatprep.subr.bf16.mxu0 %v1569
    %1705 = vmatpush1.bf16.msra.mxu0 %v1568
    %1706 = vmatprep.mubr.bf16.mxu0 %v1667
    %1707 = vmatmul.mubr.bf16.gmra.mrb[0].mxu0 %v1666
    %v1708 = vpop.f32.mrb[0].mxu0
    %v1709 = vadd.f32 0.0, %v1708
    %v1710 = vpop.f32.mrb[0].mxu0
    %v1711 = vadd.f32 0.0, %v1710
    %v1712 = vpop.f32.mrb[0].mxu0
    %v1713 = vpop.f32.mrb[0].mxu0
    %1714 = vdwg.mxu0
    %1715 = vmatprep.subr.bf16.mxu0 %v1571
    %1716 = vmatpush1.bf16.msra.mxu0 %v1570
    %1717 = vmatprep.subr.bf16.mxu0 %v1573
    %1718 = vmatpush1.bf16.msra.mxu0 %v1572
    %1719 = vmatprep.subr.bf16.mxu0 %v1575
    %1720 = vmatpush1.bf16.msra.mxu0 %v1574
    %1721 = vmatprep.subr.bf16.mxu0 %v1577
    %1722 = vmatpush1.bf16.msra.mxu0 %v1576
    %1723 = vmatprep.subr.bf16.mxu0 %v1579
    %1724 = vmatpush1.bf16.msra.mxu0 %v1578
    %1725 = vmatprep.subr.bf16.mxu0 %v1581
    %1726 = vmatpush1.bf16.msra.mxu0 %v1580
    %1727 = vmatprep.subr.bf16.mxu0 %v1583
    %1728 = vmatpush1.bf16.msra.mxu0 %v1582
    %1729 = vmatprep.subr.bf16.mxu0 %v1585
    %1730 = vmatpush1.bf16.msra.mxu0 %v1584
    %1731 = vmatprep.subr.bf16.mxu0 %v1587
    %1732 = vmatpush1.bf16.msra.mxu0 %v1586
    %1733 = vmatprep.subr.bf16.mxu0 %v1589
    %1734 = vmatpush1.bf16.msra.mxu0 %v1588
    %1735 = vmatprep.subr.bf16.mxu0 %v1591
    %1736 = vmatpush1.bf16.msra.mxu0 %v1590
    %1737 = vmatprep.subr.bf16.mxu0 %v1593
    %1738 = vmatpush1.bf16.msra.mxu0 %v1592
    %1739 = vmatprep.subr.bf16.mxu0 %v1595
    %1740 = vmatpush1.bf16.msra.mxu0 %v1594
    %1741 = vmatprep.subr.bf16.mxu0 %v1597
    %1742 = vmatpush1.bf16.msra.mxu0 %v1596
    %1743 = vmatprep.subr.bf16.mxu0 %v1599
    %1744 = vmatpush1.bf16.msra.mxu0 %v1598
    %1745 = vmatprep.subr.bf16.mxu0 %v1601
    %1746 = vmatpush1.bf16.msra.mxu0 %v1600
    %1747 = vmatprep.mubr.bf16.mxu0 %v1669
    %1748 = vmatmul.mubr.bf16.gmra.mrb[0].mxu0 %v1668
    %v1749 = vpop.f32.mrb[0].mxu0
    %v1750 = vadd.f32 %v1709, %v1749
    %v1751 = vpop.f32.mrb[0].mxu0
    %v1752 = vadd.f32 %v1711, %v1751
    %v1753 = vpop.f32.mrb[0].mxu0
    %v1754 = vpop.f32.mrb[0].mxu0
    %1755 = vdwg.mxu0
    %1756 = vmatprep.subr.bf16.mxu0 %v1603
    %1757 = vmatpush1.bf16.msra.mxu0 %v1602
    %1758 = vmatprep.subr.bf16.mxu0 %v1605
    %1759 = vmatpush1.bf16.msra.mxu0 %v1604
    %1760 = vmatprep.subr.bf16.mxu0 %v1607
    %1761 = vmatpush1.bf16.msra.mxu0 %v1606
    %1762 = vmatprep.subr.bf16.mxu0 %v1609
    %1763 = vmatpush1.bf16.msra.mxu0 %v1608
    %1764 = vmatprep.subr.bf16.mxu0 %v1611
    %1765 = vmatpush1.bf16.msra.mxu0 %v1610
    %1766 = vmatprep.subr.bf16.mxu0 %v1613
    %1767 = vmatpush1.bf16.msra.mxu0 %v1612
    %1768 = vmatprep.subr.bf16.mxu0 %v1615
    %1769 = vmatpush1.bf16.msra.mxu0 %v1614
    %1770 = vmatprep.subr.bf16.mxu0 %v1617
    %1771 = vmatpush1.bf16.msra.mxu0 %v1616
    %1772 = vmatprep.subr.bf16.mxu0 %v1619
    %1773 = vmatpush1.bf16.msra.mxu0 %v1618
    %1774 = vmatprep.subr.bf16.mxu0 %v1621
    %1775 = vmatpush1.bf16.msra.mxu0 %v1620
    %1776 = vmatprep.subr.bf16.mxu0 %v1623
    %1777 = vmatpush1.bf16.msra.mxu0 %v1622
    %1778 = vmatprep.subr.bf16.mxu0 %v1625
    %1779 = vmatpush1.bf16.msra.mxu0 %v1624
    %1780 = vmatprep.subr.bf16.mxu0 %v1627
    %1781 = vmatpush1.bf16.msra.mxu0 %v1626
    %1782 = vmatprep.subr.bf16.mxu0 %v1629
    %1783 = vmatpush1.bf16.msra.mxu0 %v1628
    %1784 = vmatprep.subr.bf16.mxu0 %v1631
    %1785 = vmatpush1.bf16.msra.mxu0 %v1630
    %1786 = vmatprep.subr.bf16.mxu0 %v1633
    %1787 = vmatpush1.bf16.msra.mxu0 %v1632
    %1788 = vmatprep.mubr.bf16.mxu0 %v1671
    %1789 = vmatmul.mubr.bf16.gmra.mrb[0].mxu0 %v1670
    %v1790 = vpop.f32.mrb[0].mxu0
    %v1791 = vadd.f32 %v1750, %v1790
    %v1792 = vpop.f32.mrb[0].mxu0
    %v1793 = vadd.f32 %v1752, %v1792
    %v1794 = vpop.f32.mrb[0].mxu0
    %v1795 = vpop.f32.mrb[0].mxu0
    %1796 = vdwg.mxu0
    %1797 = vmatprep.subr.bf16.mxu0 %v1635
    %1798 = vmatpush1.bf16.msra.mxu0 %v1634
    %1799 = vmatprep.subr.bf16.mxu0 %v1637
    %1800 = vmatpush1.bf16.msra.mxu0 %v1636
    %1801 = vmatprep.subr.bf16.mxu0 %v1639
    %1802 = vmatpush1.bf16.msra.mxu0 %v1638
    %1803 = vmatprep.subr.bf16.mxu0 %v1641
    %1804 = vmatpush1.bf16.msra.mxu0 %v1640
    %1805 = vmatprep.subr.bf16.mxu0 %v1643
    %1806 = vmatpush1.bf16.msra.mxu0 %v1642
    %1807 = vmatprep.subr.bf16.mxu0 %v1645
    %1808 = vmatpush1.bf16.msra.mxu0 %v1644
    %1809 = vmatprep.subr.bf16.mxu0 %v1647
    %1810 = vmatpush1.bf16.msra.mxu0 %v1646
    %1811 = vmatprep.subr.bf16.mxu0 %v1649
    %1812 = vmatpush1.bf16.msra.mxu0 %v1648
    %1813 = vmatprep.subr.bf16.mxu0 %v1651
    %1814 = vmatpush1.bf16.msra.mxu0 %v1650
    %1815 = vmatprep.subr.bf16.mxu0 %v1653
    %1816 = vmatpush1.bf16.msra.mxu0 %v1652
    %1817 = vmatprep.subr.bf16.mxu0 %v1655
    %1818 = vmatpush1.bf16.msra.mxu0 %v1654
    %1819 = vmatprep.subr.bf16.mxu0 %v1657
    %1820 = vmatpush1.bf16.msra.mxu0 %v1656
    %1821 = vmatprep.subr.bf16.mxu0 %v1659
    %1822 = vmatpush1.bf16.msra.mxu0 %v1658
    %1823 = vmatprep.subr.bf16.mxu0 %v1661
    %1824 = vmatpush1.bf16.msra.mxu0 %v1660
    %1825 = vmatprep.subr.bf16.mxu0 %v1663
    %1826 = vmatpush1.bf16.msra.mxu0 %v1662
    %1827 = vmatprep.subr.bf16.mxu0 %v1665
    %1828 = vmatpush1.bf16.msra.mxu0 %v1664
    %1829 = vmatprep.mubr.bf16.mxu0 %v1673
    %1830 = vmatmul.mubr.bf16.gmra.mrb[0].mxu0 %v1672
    %v1831 = vpop.f32.mrb[0].mxu0
    %v1832 = vadd.f32 %v1791, %v1831
    %v1833 = vpop.f32.mrb[0].mxu0
    %v1834 = vadd.f32 %v1793, %v1833
    %v1835 = vpop.f32.mrb[0].mxu0
    %v1836 = vpop.f32.mrb[0].mxu0
    %1837 = vdwg.mxu0
    %s1838 = scalar_lea.vmem %s3, 2
    %v1839 = vld [vmem:[%s1838] ss:$4 sm:$0x3]
    %s1840 = scalar_lea.vmem %s3, 3
    %v1841 = vld [vmem:[%s1840] ss:$4 sm:$0x3]
    %v1842 = vsel %vm1067, %v1832, 0.0
    %v1843 = vrot.slane %v1842, 4
    %v1844 = vadd.f32 %v1842, %v1843
    %v1845 = vrot.slane %v1844, 2
    %v1846 = vadd.f32 %v1844, %v1845
    %v1847 = vrot.slane %v1846, 1
    %v1848 = vadd.f32 %v1846, %v1847
    %v1849 = vsel %vm1067, %v1834, 0.0
    %v1850 = vrot.slane %v1849, 4
    %v1851 = vadd.f32 %v1849, %v1850
    %v1852 = vrot.slane %v1851, 2
    %v1853 = vadd.f32 %v1851, %v1852
    %v1854 = vrot.slane %v1853, 1
    %v1855 = vadd.f32 %v1853, %v1854
    %v1856 = vmul.f32 %v1848, %v1315
    %v1857 = vmul.f32 %v1855, %v1315
    %v1858 = vsub.f32 %v1832, %v1856
    %v1859 = vsub.f32 %v1834, %v1857
    %v1860 = vmul.f32 %v1858, %v1858
    %v1861 = vmul.f32 %v1859, %v1859
    %v1862 = vsel %vm1067, %v1860, 0.0
    %v1863 = vrot.slane %v1862, 4
    %v1864 = vadd.f32 %v1862, %v1863
    %v1865 = vrot.slane %v1864, 2
    %v1866 = vadd.f32 %v1864, %v1865
    %v1867 = vrot.slane %v1866, 1
    %v1868 = vadd.f32 %v1866, %v1867
    %v1869 = vsel %vm1067, %v1861, 0.0
    %v1870 = vrot.slane %v1869, 4
    %v1871 = vadd.f32 %v1869, %v1870
    %v1872 = vrot.slane %v1871, 2
    %v1873 = vadd.f32 %v1871, %v1872
    %v1874 = vrot.slane %v1873, 1
    %v1875 = vadd.f32 %v1873, %v1874
    %v1876 = vmul.f32 %v1868, %v1315
    %v1877 = vmul.f32 %v1875, %v1315
    %v1878 = vadd.f32 %v1876, 1e-05
    %v1879 = vadd.f32 %v1877, 1e-05
    %v1880 = vrsqrt.pop %v1878
    %v1881 = vrsqrt.pop %v1879
    %v1882 = vmul.f32 %v1858, %v1880
    %v1883 = vmul.f32 %v1859, %v1881
    %v1885 = vlaneseq
    %v1886 = vshrl.u32 %v1885, 7
    %v1887 = vsub.s32 0, %v1886
    %v1888 = vrot.slane %v1839, %v1887
    %v1889 = vlaneseq
    %v1890 = vshrl.u32 %v1889, 7
    %v1891 = vsub.s32 1, %v1890
    %v1892 = vrot.slane %v1839, %v1891
    %v1895 = vmul.f32 %v1882, %v1888
    %v1896 = vmul.f32 %v1883, %v1892
    %v1898 = vlaneseq
    %v1899 = vshrl.u32 %v1898, 7
    %v1900 = vsub.s32 0, %v1899
    %v1901 = vrot.slane %v1841, %v1900
    %v1902 = vlaneseq
    %v1903 = vshrl.u32 %v1902, 7
    %v1904 = vsub.s32 1, %v1903
    %v1905 = vrot.slane %v1841, %v1904
    %v1908 = vadd.f32 %v1895, %v1901
    %v1909 = vadd.f32 %v1896, %v1905
    %v1910 = vmax.f32 %v1908, 0.0
    %v1911 = vmax.f32 %v1909, 0.0
    %v1912 = vld [vmem:[%s2 + $0x8] sm:$0x1]
    %v1913 = vld [vmem:[%s2 + $0x9] sm:$0x1]
    %v1916 = vcombine.low %v1910, %v1911
    %v1919 = vunpack.c.l.s4 1935823168
    %v1920 = vunpack.c.0.s8 %v1919
    %v1921 = vlaneseq
    %v1922 = vshrl.u32 %v1921, 7
    %v1923 = vsub.s32 %v1920, %v1922
    %v1924 = vrot.slane %v1916, %v1923
    %v1925 = vld [vmem:[#allocation2 + $0x400] sm:$0xff]
    %v1926 = vld [vmem:[#allocation2 + $0x408] sm:$0xff]
    %v1927 = vld [vmem:[#allocation2 + $0x410] sm:$0xff]
    %v1928 = vld [vmem:[#allocation2 + $0x418] sm:$0xff]
    %v1929 = vld [vmem:[#allocation2 + $0x420] sm:$0xff]
    %v1930 = vld [vmem:[#allocation2 + $0x428] sm:$0xff]
    %v1931 = vld [vmem:[#allocation2 + $0x430] sm:$0xff]
    %v1932 = vld [vmem:[#allocation2 + $0x438] sm:$0xff]
    %v1933 = vld [vmem:[#allocation2 + $0x440] sm:$0xff]
    %v1934 = vld [vmem:[#allocation2 + $0x448] sm:$0xff]
    %v1935 = vld [vmem:[#allocation2 + $0x450] sm:$0xff]
    %v1936 = vld [vmem:[#allocation2 + $0x458] sm:$0xff]
    %v1937 = vld [vmem:[#allocation2 + $0x460] sm:$0xff]
    %v1938 = vld [vmem:[#allocation2 + $0x468] sm:$0xff]
    %v1939 = vld [vmem:[#allocation2 + $0x470] sm:$0xff]
    %v1940 = vld [vmem:[#allocation2 + $0x478] sm:$0xff]
    %v1941 = vpack.c.bf16 %v1924, %v1924
    %v1942 = vld [vmem:[#allocation2 + $0x480] sm:$0xff]
    %v1943 = vld [vmem:[#allocation2 + $0x488] sm:$0xff]
    %v1944 = vpack.c.bf16 %v748, %v748
    %v1946 = vsel %vm195, %v1944, 0
    %1948 = vmatprep.subr.bf16.mxu0 %v1943
    %1949 = vmatpush1.bf16.msra.mxu0 %v1942
    %1950 = vmatprep.subr.bf16.mxu0 0
    %1951 = vmatpush1.bf16.msra.mxu0 0
    %1952 = vmatprep.subr.bf16.mxu0 0
    %1953 = vmatpush1.bf16.msra.mxu0 0
    %1954 = vmatprep.subr.bf16.mxu0 0
    %1955 = vmatpush1.bf16.msra.mxu0 0
    %1956 = vmatprep.subr.bf16.mxu0 0
    %1957 = vmatpush1.bf16.msra.mxu0 0
    %1958 = vmatprep.subr.bf16.mxu0 0
    %1959 = vmatpush1.bf16.msra.mxu0 0
    %1960 = vmatprep.subr.bf16.mxu0 0
    %1961 = vmatpush1.bf16.msra.mxu0 0
    %1962 = vmatprep.subr.bf16.mxu0 0
    %1963 = vmatpush1.bf16.msra.mxu0 0
    %1964 = vmatprep.subr.bf16.mxu0 0
    %1965 = vmatpush1.bf16.msra.mxu0 0
    %1966 = vmatprep.subr.bf16.mxu0 0
    %1967 = vmatpush1.bf16.msra.mxu0 0
    %1968 = vmatprep.subr.bf16.mxu0 0
    %1969 = vmatpush1.bf16.msra.mxu0 0
    %1970 = vmatprep.subr.bf16.mxu0 0
    %1971 = vmatpush1.bf16.msra.mxu0 0
    %1972 = vmatprep.subr.bf16.mxu0 0
    %1973 = vmatpush1.bf16.msra.mxu0 0
    %1974 = vmatprep.subr.bf16.mxu0 0
    %1975 = vmatpush1.bf16.msra.mxu0 0
    %1976 = vmatprep.subr.bf16.mxu0 0
    %1977 = vmatpush1.bf16.msra.mxu0 0
    %1978 = vmatprep.subr.bf16.mxu0 0
    %1979 = vmatpush1.bf16.msra.mxu0 0
    %1980 = vmatprep.mubr.bf16.mxu0 0
    %1981 = vmatmul.mubr.bf16.gmra.mrb[0].mxu0 %v1946
    %v1982 = vpop.f32.mrb[0].mxu0
    %v1983 = vadd.f32 0.0, %v1982
    %v1984 = vpop.f32.mrb[0].mxu0
    %v1985 = vadd.f32 0.0, %v1984
    %v1986 = vpop.f32.mrb[0].mxu0
    %v1987 = vpop.f32.mrb[0].mxu0
    %1988 = vdwg.mxu0
    %1989 = vmatprep.subr.bf16.mxu0 %v1926
    %1990 = vmatpush1.bf16.msra.mxu0 %v1925
    %1991 = vmatprep.subr.bf16.mxu0 %v1928
    %1992 = vmatpush1.bf16.msra.mxu0 %v1927
    %1993 = vmatprep.subr.bf16.mxu0 %v1930
    %1994 = vmatpush1.bf16.msra.mxu0 %v1929
    %1995 = vmatprep.subr.bf16.mxu0 %v1932
    %1996 = vmatpush1.bf16.msra.mxu0 %v1931
    %1997 = vmatprep.subr.bf16.mxu0 %v1934
    %1998 = vmatpush1.bf16.msra.mxu0 %v1933
    %1999 = vmatprep.subr.bf16.mxu0 %v1936
    %2000 = vmatpush1.bf16.msra.mxu0 %v1935
    %2001 = vmatprep.subr.bf16.mxu0 %v1938
    %2002 = vmatpush1.bf16.msra.mxu0 %v1937
    %2003 = vmatprep.subr.bf16.mxu0 %v1940
    %2004 = vmatpush1.bf16.msra.mxu0 %v1939
    %2005 = vmatprep.subr.bf16.mxu0 0
    %2006 = vmatpush1.bf16.msra.mxu0 0
    %2007 = vmatprep.subr.bf16.mxu0 0
    %2008 = vmatpush1.bf16.msra.mxu0 0
    %2009 = vmatprep.subr.bf16.mxu0 0
    %2010 = vmatpush1.bf16.msra.mxu0 0
    %2011 = vmatprep.subr.bf16.mxu0 0
    %2012 = vmatpush1.bf16.msra.mxu0 0
    %2013 = vmatprep.subr.bf16.mxu0 0
    %2014 = vmatpush1.bf16.msra.mxu0 0
    %2015 = vmatprep.subr.bf16.mxu0 0
    %2016 = vmatpush1.bf16.msra.mxu0 0
    %2017 = vmatprep.subr.bf16.mxu0 0
    %2018 = vmatpush1.bf16.msra.mxu0 0
    %2019 = vmatprep.subr.bf16.mxu0 0
    %2020 = vmatpush1.bf16.msra.mxu0 0
    %2021 = vmatprep.mubr.bf16.mxu0 0
    %2022 = vmatmul.mubr.bf16.gmra.mrb[0].mxu0 %v1941
    %v2023 = vpop.f32.mrb[0].mxu0
    %v2024 = vadd.f32 %v1983, %v2023
    %v2025 = vpop.f32.mrb[0].mxu0
    %v2026 = vadd.f32 %v1985, %v2025
    %v2027 = vpop.f32.mrb[0].mxu0
    %v2028 = vpop.f32.mrb[0].mxu0
    %2029 = vdwg.mxu0
    %v2032 = vunpack.c.l.s4 1983009808
    %v2033 = vunpack.c.0.s8 %v2032
    %v2034 = vlaneseq
    %v2035 = vshrl.u32 %v2034, 7
    %v2036 = vsub.s32 %v2033, %v2035
    %v2037 = vrot.slane %v2024, %v2036
    %v2038 = vcombine.high %v2037, %v2037
    %v2043 = vunpack.c.l.s4 1983009808
    %v2044 = vunpack.c.0.s8 %v2043
    %v2045 = vlaneseq
    %v2046 = vshrl.u32 %v2045, 7
    %v2047 = vsub.s32 %v2044, %v2046
    %v2048 = vrot.slane %v2026, %v2047
    %v2049 = vcombine.high %v2048, %v2048
    %v2050 = vcombine.low %v2048, %v2048
    %v2052 = vunpack.c.l.s4 1983009808
    %v2053 = vunpack.c.0.s8 %v2052
    %v2054 = vlaneseq
    %v2055 = vshrl.u32 %v2054, 7
    %v2056 = vsub.s32 %v2053, %v2055
    %v2057 = vrot.slane %v2050, %v2056
    %v2058 = vcombine.low %v2049, %v2049
    %v2060 = vunpack.c.l.s4 1983009808
    %v2061 = vunpack.c.0.s8 %v2060
    %v2062 = vlaneseq
    %v2063 = vshrl.u32 %v2062, 7
    %v2064 = vsub.s32 %v2061, %v2063
    %v2065 = vrot.slane %v2058, %v2064
    %v2068 = vsel %vm1067, %v2037, %v2057
    %v2069 = vsel %vm1067, %v2038, %v2065
    %v2072 = vcombine.low %v2068, %v2069
    %v2074 = vrot.slane %v2072, 4
    %v2075 = vadd.f32 %v2072, %v2074
    %v2076 = vrot.slane %v2075, 2
    %v2077 = vadd.f32 %v2075, %v2076
    %v2078 = vrot.slane %v2077, 1
    %v2079 = vadd.f32 %v2077, %v2078
    %v2080 = vmul.f32 %v2079, %v543
    %v2082 = vcombine.high %v2080, %v2080
    %v2084 = vsub.f32 %v2068, %v2080
    %v2085 = vsub.f32 %v2069, %v2082
    %v2086 = vmul.f32 %v2084, %v2084
    %v2087 = vmul.f32 %v2085, %v2085
    %v2090 = vcombine.low %v2086, %v2087
    %v2092 = vrot.slane %v2090, 4
    %v2093 = vadd.f32 %v2090, %v2092
    %v2094 = vrot.slane %v2093, 2
    %v2095 = vadd.f32 %v2093, %v2094
    %v2096 = vrot.slane %v2095, 1
    %v2097 = vadd.f32 %v2095, %v2096
    %v2098 = vmul.f32 %v2097, %v543
    %v2099 = vadd.f32 %v2098, 1e-05
    %v2100 = vrsqrt.pop %v2099
    %v2102 = vcombine.high %v2100, %v2100
    %v2104 = vmul.f32 %v2084, %v2100
    %v2105 = vmul.f32 %v2085, %v2102
    %v2106 = vlaneseq
    %v2107 = vshrl.u32 %v2106, 7
    %v2108 = vsub.s32 0, %v2107
    %v2109 = vrot.slane %v1912, %v2108
    %v2111 = vcombine.high %v2109, %v2109
    %v2113 = vmul.f32 %v2104, %v2109
    %v2114 = vmul.f32 %v2105, %v2111
    %v2115 = vlaneseq
    %v2116 = vshrl.u32 %v2115, 7
    %v2117 = vsub.s32 0, %v2116
    %v2118 = vrot.slane %v1913, %v2117
    %v2120 = vcombine.high %v2118, %v2118
    %v2122 = vadd.f32 %v2113, %v2118
    %v2123 = vadd.f32 %v2114, %v2120
    %v2124 = vmax.f32 %v2122, 0.0
    %v2125 = vmax.f32 %v2123, 0.0
    %v2126 = vld [vmem:[#allocation2 + $0x640] sm:$0xff]
    %v2127 = vld [vmem:[#allocation2 + $0x650] sm:$0xff]
    %v2128 = vld [vmem:[#allocation2 + $0x660] sm:$0xff]
    %v2129 = vld [vmem:[#allocation2 + $0x670] sm:$0xff]
    %v2130 = vld [vmem:[#allocation2 + $0x680] sm:$0xff]
    %v2131 = vld [vmem:[#allocation2 + $0x690] sm:$0xff]
    %v2132 = vld [vmem:[#allocation2 + $0x6a0] sm:$0xff]
    %v2133 = vld [vmem:[#allocation2 + $0x6b0] sm:$0xff]
    %v2134 = vld [vmem:[#allocation2 + $0x6c0] sm:$0xff]
    %v2135 = vld [vmem:[#allocation2 + $0x648] sm:$0xff]
    %v2136 = vld [vmem:[#allocation2 + $0x658] sm:$0xff]
    %v2137 = vld [vmem:[#allocation2 + $0x668] sm:$0xff]
    %v2138 = vld [vmem:[#allocation2 + $0x678] sm:$0xff]
    %v2139 = vld [vmem:[#allocation2 + $0x688] sm:$0xff]
    %v2140 = vld [vmem:[#allocation2 + $0x698] sm:$0xff]
    %v2141 = vld [vmem:[#allocation2 + $0x6a8] sm:$0xff]
    %v2142 = vld [vmem:[#allocation2 + $0x6b8] sm:$0xff]
    %v2143 = vld [vmem:[#allocation2 + $0x6c8] sm:$0xff]
    %v2144 = vld [vmem:[#allocation2 + $0x6d0] sm:$0xff]
    %v2145 = vld [vmem:[#allocation2 + $0x6e0] sm:$0xff]
    %v2146 = vld [vmem:[#allocation2 + $0x6f0] sm:$0xff]
    %v2147 = vld [vmem:[#allocation2 + $0x700] sm:$0xff]
    %v2148 = vld [vmem:[#allocation2 + $0x710] sm:$0xff]
    %v2149 = vld [vmem:[#allocation2 + $0x720] sm:$0xff]
    %v2150 = vld [vmem:[#allocation2 + $0x730] sm:$0xff]
    %v2151 = vld [vmem:[#allocation2 + $0x740] sm:$0xff]
    %v2152 = vld [vmem:[#allocation2 + $0x6d8] sm:$0xff]
    %v2153 = vld [vmem:[#allocation2 + $0x6e8] sm:$0xff]
    %v2154 = vld [vmem:[#allocation2 + $0x6f8] sm:$0xff]
    %v2155 = vld [vmem:[#allocation2 + $0x708] sm:$0xff]
    %v2156 = vld [vmem:[#allocation2 + $0x718] sm:$0xff]
    %v2157 = vld [vmem:[#allocation2 + $0x728] sm:$0xff]
    %v2158 = vld [vmem:[#allocation2 + $0x738] sm:$0xff]
    %v2159 = vld [vmem:[#allocation2 + $0x748] sm:$0xff]
    %v2160 = vld [vmem:[#allocation2 + $0x750] sm:$0xff]
    %v2161 = vld [vmem:[#allocation2 + $0x758] sm:$0xff]
    %v2162 = vld [vmem:[%s2 + $0xb] sm:$0x1]
    %v2163 = vld [vmem:[%s2 + $0xc] sm:$0x1]
    %v2164 = vld [vmem:[%s2 + $0xd] sm:$0x1]
    %v2165 = vld [vmem:[%s2 + $0xe] sm:$0x1]
    %v2166 = vld [vmem:[%s2 + $0xf] sm:$0x1]
    %v2169 = vcombine.low %v2124, %v2125
    %v2171 = vpack.c.bf16 %v2169, %v2169
    %v2172 = vpack.c.bf16 %v570, %v570
    %v2174 = vsel %vm195, %v2172, 0
    %2176 = vmatprep.subr.bf16.mxu0 0
    %2177 = vmatpush1.bf16.msra.mxu0 %v2134
    %2178 = vmatprep.subr.bf16.mxu0 0
    %2179 = vmatpush1.bf16.msra.mxu0 0
    %2180 = vmatprep.subr.bf16.mxu0 0
    %2181 = vmatpush1.bf16.msra.mxu0 0
    %2182 = vmatprep.subr.bf16.mxu0 0
    %2183 = vmatpush1.bf16.msra.mxu0 0
    %2184 = vmatprep.subr.bf16.mxu0 0
    %2185 = vmatpush1.bf16.msra.mxu0 0
    %2186 = vmatprep.subr.bf16.mxu0 0
    %2187 = vmatpush1.bf16.msra.mxu0 0
    %2188 = vmatprep.subr.bf16.mxu0 0
    %2189 = vmatpush1.bf16.msra.mxu0 0
    %2190 = vmatprep.subr.bf16.mxu0 0
    %2191 = vmatpush1.bf16.msra.mxu0 0
    %2192 = vmatprep.subr.bf16.mxu0 0
    %2193 = vmatpush1.bf16.msra.mxu0 0
    %2194 = vmatprep.subr.bf16.mxu0 0
    %2195 = vmatpush1.bf16.msra.mxu0 0
    %2196 = vmatprep.subr.bf16.mxu0 0
    %2197 = vmatpush1.bf16.msra.mxu0 0
    %2198 = vmatprep.subr.bf16.mxu0 0
    %2199 = vmatpush1.bf16.msra.mxu0 0
    %2200 = vmatprep.subr.bf16.mxu0 0
    %2201 = vmatpush1.bf16.msra.mxu0 0
    %2202 = vmatprep.subr.bf16.mxu0 0
    %2203 = vmatpush1.bf16.msra.mxu0 0
    %2204 = vmatprep.subr.bf16.mxu0 0
    %2205 = vmatpush1.bf16.msra.mxu0 0
    %2206 = vmatprep.subr.bf16.mxu0 0
    %2207 = vmatpush1.bf16.msra.mxu0 0
    %2208 = vmatprep.mubr.bf16.mxu0 0
    %2209 = vmatmul.mubr.bf16.gmra.mrb[0].mxu0 %v2174
    %v2210 = vpop.f32.mrb[0].mxu0
    %v2211 = vadd.f32 0.0, %v2210
    %v2212 = vpop.f32.mrb[0].mxu0
    %v2213 = vpop.f32.mrb[0].mxu0
    %v2214 = vpop.f32.mrb[0].mxu0
    %2215 = vdwg.mxu0
    %2216 = vmatprep.subr.bf16.mxu0 0
    %2217 = vmatpush1.bf16.msra.mxu0 %v2126
    %2218 = vmatprep.subr.bf16.mxu0 0
    %2219 = vmatpush1.bf16.msra.mxu0 %v2127
    %2220 = vmatprep.subr.bf16.mxu0 0
    %2221 = vmatpush1.bf16.msra.mxu0 %v2128
    %2222 = vmatprep.subr.bf16.mxu0 0
    %2223 = vmatpush1.bf16.msra.mxu0 %v2129
    %2224 = vmatprep.subr.bf16.mxu0 0
    %2225 = vmatpush1.bf16.msra.mxu0 %v2130
    %2226 = vmatprep.subr.bf16.mxu0 0
    %2227 = vmatpush1.bf16.msra.mxu0 %v2131
    %2228 = vmatprep.subr.bf16.mxu0 0
    %2229 = vmatpush1.bf16.msra.mxu0 %v2132
    %2230 = vmatprep.subr.bf16.mxu0 0
    %2231 = vmatpush1.bf16.msra.mxu0 %v2133
    %2232 = vmatprep.subr.bf16.mxu0 0
    %2233 = vmatpush1.bf16.msra.mxu0 0
    %2234 = vmatprep.subr.bf16.mxu0 0
    %2235 = vmatpush1.bf16.msra.mxu0 0
    %2236 = vmatprep.subr.bf16.mxu0 0
    %2237 = vmatpush1.bf16.msra.mxu0 0
    %2238 = vmatprep.subr.bf16.mxu0 0
    %2239 = vmatpush1.bf16.msra.mxu0 0
    %2240 = vmatprep.subr.bf16.mxu0 0
    %2241 = vmatpush1.bf16.msra.mxu0 0
    %2242 = vmatprep.subr.bf16.mxu0 0
    %2243 = vmatpush1.bf16.msra.mxu0 0
    %2244 = vmatprep.subr.bf16.mxu0 0
    %2245 = vmatpush1.bf16.msra.mxu0 0
    %2246 = vmatprep.subr.bf16.mxu0 0
    %2247 = vmatpush1.bf16.msra.mxu0 0
    %2248 = vmatprep.mubr.bf16.mxu0 0
    %2249 = vmatmul.mubr.bf16.gmra.mrb[0].mxu0 %v2171
    %v2250 = vpop.f32.mrb[0].mxu0
    %v2251 = vadd.f32 %v2211, %v2250
    %v2252 = vpop.f32.mrb[0].mxu0
    %v2253 = vpop.f32.mrb[0].mxu0
    %v2254 = vpop.f32.mrb[0].mxu0
    %2255 = vdwg.mxu0
    %v2256 = vlaneseq
    %v2257 = vshrl.u32 %v2256, 7
    %v2258 = vsub.s32 0, %v2257
    %v2259 = vrot.slane %v2162, %v2258
    %v2260 = vadd.f32 %v2251, %v2259
    %v2262 = vcombine.high %v2260, %v2260
    %2263 = vmatprep.subr.bf16.mxu0 0
    %2264 = vmatpush1.bf16.msra.mxu0 %v2143
    %2265 = vmatprep.subr.bf16.mxu0 0
    %2266 = vmatpush1.bf16.msra.mxu0 0
    %2267 = vmatprep.subr.bf16.mxu0 0
    %2268 = vmatpush1.bf16.msra.mxu0 0
    %2269 = vmatprep.subr.bf16.mxu0 0
    %2270 = vmatpush1.bf16.msra.mxu0 0
    %2271 = vmatprep.subr.bf16.mxu0 0
    %2272 = vmatpush1.bf16.msra.mxu0 0
    %2273 = vmatprep.subr.bf16.mxu0 0
    %2274 = vmatpush1.bf16.msra.mxu0 0
    %2275 = vmatprep.subr.bf16.mxu0 0
    %2276 = vmatpush1.bf16.msra.mxu0 0
    %2277 = vmatprep.subr.bf16.mxu0 0
    %2278 = vmatpush1.bf16.msra.mxu0 0
    %2279 = vmatprep.subr.bf16.mxu0 0
    %2280 = vmatpush1.bf16.msra.mxu0 0
    %2281 = vmatprep.subr.bf16.mxu0 0
    %2282 = vmatpush1.bf16.msra.mxu0 0
    %2283 = vmatprep.subr.bf16.mxu0 0
    %2284 = vmatpush1.bf16.msra.mxu0 0
    %2285 = vmatprep.subr.bf16.mxu0 0
    %2286 = vmatpush1.bf16.msra.mxu0 0
    %2287 = vmatprep.subr.bf16.mxu0 0
    %2288 = vmatpush1.bf16.msra.mxu0 0
    %2289 = vmatprep.subr.bf16.mxu0 0
    %2290 = vmatpush1.bf16.msra.mxu0 0
    %2291 = vmatprep.subr.bf16.mxu0 0
    %2292 = vmatpush1.bf16.msra.mxu0 0
    %2293 = vmatprep.subr.bf16.mxu0 0
    %2294 = vmatpush1.bf16.msra.mxu0 0
    %2295 = vmatprep.mubr.bf16.mxu0 0
    %2296 = vmatmul.mubr.bf16.gmra.mrb[0].mxu0 %v2174
    %v2297 = vpop.f32.mrb[0].mxu0
    %v2298 = vadd.f32 0.0, %v2297
    %v2299 = vpop.f32.mrb[0].mxu0
    %v2300 = vpop.f32.mrb[0].mxu0
    %v2301 = vpop.f32.mrb[0].mxu0
    %2302 = vdwg.mxu0
    %2303 = vmatprep.subr.bf16.mxu0 0
    %2304 = vmatpush1.bf16.msra.mxu0 %v2135
    %2305 = vmatprep.subr.bf16.mxu0 0
    %2306 = vmatpush1.bf16.msra.mxu0 %v2136
    %2307 = vmatprep.subr.bf16.mxu0 0
    %2308 = vmatpush1.bf16.msra.mxu0 %v2137
    %2309 = vmatprep.subr.bf16.mxu0 0
    %2310 = vmatpush1.bf16.msra.mxu0 %v2138
    %2311 = vmatprep.subr.bf16.mxu0 0
    %2312 = vmatpush1.bf16.msra.mxu0 %v2139
    %2313 = vmatprep.subr.bf16.mxu0 0
    %2314 = vmatpush1.bf16.msra.mxu0 %v2140
    %2315 = vmatprep.subr.bf16.mxu0 0
    %2316 = vmatpush1.bf16.msra.mxu0 %v2141
    %2317 = vmatprep.subr.bf16.mxu0 0
    %2318 = vmatpush1.bf16.msra.mxu0 %v2142
    %2319 = vmatprep.subr.bf16.mxu0 0
    %2320 = vmatpush1.bf16.msra.mxu0 0
    %2321 = vmatprep.subr.bf16.mxu0 0
    %2322 = vmatpush1.bf16.msra.mxu0 0
    %2323 = vmatprep.subr.bf16.mxu0 0
    %2324 = vmatpush1.bf16.msra.mxu0 0
    %2325 = vmatprep.subr.bf16.mxu0 0
    %2326 = vmatpush1.bf16.msra.mxu0 0
    %2327 = vmatprep.subr.bf16.mxu0 0
    %2328 = vmatpush1.bf16.msra.mxu0 0
    %2329 = vmatprep.subr.bf16.mxu0 0
    %2330 = vmatpush1.bf16.msra.mxu0 0
    %2331 = vmatprep.subr.bf16.mxu0 0
    %2332 = vmatpush1.bf16.msra.mxu0 0
    %2333 = vmatprep.subr.bf16.mxu0 0
    %2334 = vmatpush1.bf16.msra.mxu0 0
    %2335 = vmatprep.mubr.bf16.mxu0 0
    %2336 = vmatmul.mubr.bf16.gmra.mrb[0].mxu0 %v2171
    %v2337 = vpop.f32.mrb[0].mxu0
    %v2338 = vadd.f32 %v2298, %v2337
    %v2339 = vpop.f32.mrb[0].mxu0
    %v2340 = vpop.f32.mrb[0].mxu0
    %v2341 = vpop.f32.mrb[0].mxu0
    %2342 = vdwg.mxu0
    %v2343 = vlaneseq
    %v2344 = vshrl.u32 %v2343, 7
    %v2345 = vsub.s32 0, %v2344
    %v2346 = vrot.slane %v2163, %v2345
    %v2347 = vadd.f32 %v2338, %v2346
    %v2349 = vcombine.high %v2347, %v2347
    %2350 = vmatprep.subr.bf16.mxu0 0
    %2351 = vmatpush1.bf16.msra.mxu0 %v2160
    %2352 = vmatprep.subr.bf16.mxu0 0
    %2353 = vmatpush1.bf16.msra.mxu0 0
    %2354 = vmatprep.subr.bf16.mxu0 0
    %2355 = vmatpush1.bf16.msra.mxu0 0
    %2356 = vmatprep.subr.bf16.mxu0 0
    %2357 = vmatpush1.bf16.msra.mxu0 0
    %2358 = vmatprep.subr.bf16.mxu0 0
    %2359 = vmatpush1.bf16.msra.mxu0 0
    %2360 = vmatprep.subr.bf16.mxu0 0
    %2361 = vmatpush1.bf16.msra.mxu0 0
    %2362 = vmatprep.subr.bf16.mxu0 0
    %2363 = vmatpush1.bf16.msra.mxu0 0
    %2364 = vmatprep.subr.bf16.mxu0 0
    %2365 = vmatpush1.bf16.msra.mxu0 0
    %2366 = vmatprep.subr.bf16.mxu0 0
    %2367 = vmatpush1.bf16.msra.mxu0 0
    %2368 = vmatprep.subr.bf16.mxu0 0
    %2369 = vmatpush1.bf16.msra.mxu0 0
    %2370 = vmatprep.subr.bf16.mxu0 0
    %2371 = vmatpush1.bf16.msra.mxu0 0
    %2372 = vmatprep.subr.bf16.mxu0 0
    %2373 = vmatpush1.bf16.msra.mxu0 0
    %2374 = vmatprep.subr.bf16.mxu0 0
    %2375 = vmatpush1.bf16.msra.mxu0 0
    %2376 = vmatprep.subr.bf16.mxu0 0
    %2377 = vmatpush1.bf16.msra.mxu0 0
    %2378 = vmatprep.subr.bf16.mxu0 0
    %2379 = vmatpush1.bf16.msra.mxu0 0
    %2380 = vmatprep.subr.bf16.mxu0 0
    %2381 = vmatpush1.bf16.msra.mxu0 0
    %2382 = vmatprep.mubr.bf16.mxu0 0
    %2383 = vmatmul.mubr.bf16.gmra.mrb[0].mxu0 %v2174
    %v2384 = vpop.f32.mrb[0].mxu0
    %v2385 = vadd.f32 0.0, %v2384
    %v2386 = vpop.f32.mrb[0].mxu0
    %v2387 = vpop.f32.mrb[0].mxu0
    %v2388 = vpop.f32.mrb[0].mxu0
    %2389 = vdwg.mxu0
    %2390 = vmatprep.subr.bf16.mxu0 0
    %2391 = vmatpush1.bf16.msra.mxu0 %v2144
    %2392 = vmatprep.subr.bf16.mxu0 0
    %2393 = vmatpush1.bf16.msra.mxu0 %v2145
    %2394 = vmatprep.subr.bf16.mxu0 0
    %2395 = vmatpush1.bf16.msra.mxu0 %v2146
    %2396 = vmatprep.subr.bf16.mxu0 0
    %2397 = vmatpush1.bf16.msra.mxu0 %v2147
    %2398 = vmatprep.subr.bf16.mxu0 0
    %2399 = vmatpush1.bf16.msra.mxu0 %v2148
    %2400 = vmatprep.subr.bf16.mxu0 0
    %2401 = vmatpush1.bf16.msra.mxu0 %v2149
    %2402 = vmatprep.subr.bf16.mxu0 0
    %2403 = vmatpush1.bf16.msra.mxu0 %v2150
    %2404 = vmatprep.subr.bf16.mxu0 0
    %2405 = vmatpush1.bf16.msra.mxu0 %v2151
    %2406 = vmatprep.subr.bf16.mxu0 0
    %2407 = vmatpush1.bf16.msra.mxu0 0
    %2408 = vmatprep.subr.bf16.mxu0 0
    %2409 = vmatpush1.bf16.msra.mxu0 0
    %2410 = vmatprep.subr.bf16.mxu0 0
    %2411 = vmatpush1.bf16.msra.mxu0 0
    %2412 = vmatprep.subr.bf16.mxu0 0
    %2413 = vmatpush1.bf16.msra.mxu0 0
    %2414 = vmatprep.subr.bf16.mxu0 0
    %2415 = vmatpush1.bf16.msra.mxu0 0
    %2416 = vmatprep.subr.bf16.mxu0 0
    %2417 = vmatpush1.bf16.msra.mxu0 0
    %2418 = vmatprep.subr.bf16.mxu0 0
    %2419 = vmatpush1.bf16.msra.mxu0 0
    %2420 = vmatprep.subr.bf16.mxu0 0
    %2421 = vmatpush1.bf16.msra.mxu0 0
    %2422 = vmatprep.mubr.bf16.mxu0 0
    %2423 = vmatmul.mubr.bf16.gmra.mrb[0].mxu0 %v2171
    %v2424 = vpop.f32.mrb[0].mxu0
    %v2425 = vadd.f32 %v2385, %v2424
    %v2426 = vpop.f32.mrb[0].mxu0
    %v2427 = vpop.f32.mrb[0].mxu0
    %v2428 = vpop.f32.mrb[0].mxu0
    %2429 = vdwg.mxu0
    %v2430 = vlaneseq
    %v2431 = vshrl.u32 %v2430, 7
    %v2432 = vsub.s32 0, %v2431
    %v2433 = vrot.slane %v2164, %v2432
    %v2434 = vadd.f32 %v2425, %v2433
    %v2436 = vcombine.high %v2434, %v2434
    %2437 = vmatprep.subr.bf16.mxu0 0
    %2438 = vmatpush1.bf16.msra.mxu0 %v2161
    %2439 = vmatprep.subr.bf16.mxu0 0
    %2440 = vmatpush1.bf16.msra.mxu0 0
    %2441 = vmatprep.subr.bf16.mxu0 0
    %2442 = vmatpush1.bf16.msra.mxu0 0
    %2443 = vmatprep.subr.bf16.mxu0 0
    %2444 = vmatpush1.bf16.msra.mxu0 0
    %2445 = vmatprep.subr.bf16.mxu0 0
    %2446 = vmatpush1.bf16.msra.mxu0 0
    %2447 = vmatprep.subr.bf16.mxu0 0
    %2448 = vmatpush1.bf16.msra.mxu0 0
    %2449 = vmatprep.subr.bf16.mxu0 0
    %2450 = vmatpush1.bf16.msra.mxu0 0
    %2451 = vmatprep.subr.bf16.mxu0 0
    %2452 = vmatpush1.bf16.msra.mxu0 0
    %2453 = vmatprep.subr.bf16.mxu0 0
    %2454 = vmatpush1.bf16.msra.mxu0 0
    %2455 = vmatprep.subr.bf16.mxu0 0
    %2456 = vmatpush1.bf16.msra.mxu0 0
    %2457 = vmatprep.subr.bf16.mxu0 0
    %2458 = vmatpush1.bf16.msra.mxu0 0
    %2459 = vmatprep.subr.bf16.mxu0 0
    %2460 = vmatpush1.bf16.msra.mxu0 0
    %2461 = vmatprep.subr.bf16.mxu0 0
    %2462 = vmatpush1.bf16.msra.mxu0 0
    %2463 = vmatprep.subr.bf16.mxu0 0
    %2464 = vmatpush1.bf16.msra.mxu0 0
    %2465 = vmatprep.subr.bf16.mxu0 0
    %2466 = vmatpush1.bf16.msra.mxu0 0
    %2467 = vmatprep.subr.bf16.mxu0 0
    %2468 = vmatpush1.bf16.msra.mxu0 0
    %2469 = vmatprep.mubr.bf16.mxu0 0
    %2470 = vmatmul.mubr.bf16.gmra.mrb[0].mxu0 %v2174
    %v2471 = vpop.f32.mrb[0].mxu0
    %v2472 = vadd.f32 0.0, %v2471
    %v2473 = vpop.f32.mrb[0].mxu0
    %v2474 = vpop.f32.mrb[0].mxu0
    %v2475 = vpop.f32.mrb[0].mxu0
    %2476 = vdwg.mxu0
    %2477 = vmatprep.subr.bf16.mxu0 0
    %2478 = vmatpush1.bf16.msra.mxu0 %v2152
    %2479 = vmatprep.subr.bf16.mxu0 0
    %2480 = vmatpush1.bf16.msra.mxu0 %v2153
    %2481 = vmatprep.subr.bf16.mxu0 0
    %2482 = vmatpush1.bf16.msra.mxu0 %v2154
    %2483 = vmatprep.subr.bf16.mxu0 0
    %2484 = vmatpush1.bf16.msra.mxu0 %v2155
    %2485 = vmatprep.subr.bf16.mxu0 0
    %2486 = vmatpush1.bf16.msra.mxu0 %v2156
    %2487 = vmatprep.subr.bf16.mxu0 0
    %2488 = vmatpush1.bf16.msra.mxu0 %v2157
    %2489 = vmatprep.subr.bf16.mxu0 0
    %2490 = vmatpush1.bf16.msra.mxu0 %v2158
    %2491 = vmatprep.subr.bf16.mxu0 0
    %2492 = vmatpush1.bf16.msra.mxu0 %v2159
    %2493 = vmatprep.subr.bf16.mxu0 0
    %2494 = vmatpush1.bf16.msra.mxu0 0
    %2495 = vmatprep.subr.bf16.mxu0 0
    %2496 = vmatpush1.bf16.msra.mxu0 0
    %2497 = vmatprep.subr.bf16.mxu0 0
    %2498 = vmatpush1.bf16.msra.mxu0 0
    %2499 = vmatprep.subr.bf16.mxu0 0
    %2500 = vmatpush1.bf16.msra.mxu0 0
    %2501 = vmatprep.subr.bf16.mxu0 0
    %2502 = vmatpush1.bf16.msra.mxu0 0
    %2503 = vmatprep.subr.bf16.mxu0 0
    %2504 = vmatpush1.bf16.msra.mxu0 0
    %2505 = vmatprep.subr.bf16.mxu0 0
    %2506 = vmatpush1.bf16.msra.mxu0 0
    %2507 = vmatprep.subr.bf16.mxu0 0
    %2508 = vmatpush1.bf16.msra.mxu0 0
    %2509 = vmatprep.mubr.bf16.mxu0 0
    %2510 = vmatmul.mubr.bf16.gmra.mrb[0].mxu0 %v2171
    %v2511 = vpop.f32.mrb[0].mxu0
    %v2512 = vadd.f32 %v2472, %v2511
    %v2513 = vpop.f32.mrb[0].mxu0
    %v2514 = vpop.f32.mrb[0].mxu0
    %v2515 = vpop.f32.mrb[0].mxu0
    %2516 = vdwg.mxu0
    %v2517 = vlaneseq
    %v2518 = vshrl.u32 %v2517, 7
    %v2519 = vsub.s32 0, %v2518
    %v2520 = vrot.slane %v2165, %v2519
    %v2521 = vadd.f32 %v2512, %v2520
    %v2523 = vcombine.high %v2521, %v2521
    %vm2524 = vcmask 146432
    %v2525 = vsel %vm2524, %v2260, 0
    %v2527 = vsel %vm2524, %v2347, 0
    %2529 = vmatprep.subr.mxu0 0.0
    %2530 = vmatpush1.xpose.msra.mxu0 %v2527
    %2531 = vmatprep.subr.mxu0 0.0
    %2532 = vmatpush1.xpose.msra.mxu0 0.0
    %2533 = vmatprep.subr.mxu0 0.0
    %2534 = vmatpush1.xpose.msra.mxu0 0.0
    %2535 = vmatprep.subr.mxu0 0.0
    %2536 = vmatpush1.xpose.msra.mxu0 0.0
    %2537 = vmatprep.subr.mxu0 0.0
    %2538 = vmatpush1.xpose.msra.mxu0 0.0
    %2539 = vmatprep.subr.mxu0 0.0
    %2540 = vmatpush1.xpose.msra.mxu0 0.0
    %2541 = vmatprep.subr.mxu0 0.0
    %2542 = vmatpush1.xpose.msra.mxu0 0.0
    %2543 = vmatprep.subr.mxu0 0.0
    %2544 = vmatpush1.xpose.msra.mxu0 0.0
    %2545 = vmatprep.subr.mxu0 0.0
    %2546 = vmatpush1.xpose.msra.mxu0 0.0
    %2547 = vmatprep.subr.mxu0 0.0
    %2548 = vmatpush1.xpose.msra.mxu0 0.0
    %2549 = vmatprep.subr.mxu0 0.0
    %2550 = vmatpush1.xpose.msra.mxu0 0.0
    %2551 = vmatprep.subr.mxu0 0.0
    %2552 = vmatpush1.xpose.msra.mxu0 0.0
    %2553 = vmatprep.subr.mxu0 0.0
    %2554 = vmatpush1.xpose.msra.mxu0 0.0
    %2555 = vmatprep.subr.mxu0 0.0
    %2556 = vmatpush1.xpose.msra.mxu0 0.0
    %2557 = vmatprep.subr.mxu0 0.0
    %2558 = vmatpush1.xpose.msra.mxu0 0.0
    %2559 = vmatprep.subr.mxu0 0.0
    %2560 = vmatpush1.xpose.msra.mxu0 0.0
    %2561 = vmatprep.subr.mxu0 0.0
    %2562 = vmatpush1.xpose.msra.mxu0 0.0
    %2563 = vmatprep.subr.mxu0 0.0
    %2564 = vmatpush1.xpose.msra.mxu0 0.0
    %2565 = vmatprep.subr.mxu0 0.0
    %2566 = vmatpush1.xpose.msra.mxu0 0.0
    %2567 = vmatprep.subr.mxu0 0.0
    %2568 = vmatpush1.xpose.msra.mxu0 0.0
    %2569 = vmatprep.subr.mxu0 0.0
    %2570 = vmatpush1.xpose.msra.mxu0 0.0
    %2571 = vmatprep.subr.mxu0 0.0
    %2572 = vmatpush1.xpose.msra.mxu0 0.0
    %2573 = vmatprep.subr.mxu0 0.0
    %2574 = vmatpush1.xpose.msra.mxu0 0.0
    %2575 = vmatprep.subr.mxu0 0.0
    %2576 = vmatpush1.xpose.msra.mxu0 0.0
    %2577 = vmatprep.subr.mxu0 0.0
    %2578 = vmatpush1.xpose.msra.mxu0 0.0
    %2579 = vmatprep.subr.mxu0 0.0
    %2580 = vmatpush1.xpose.msra.mxu0 0.0
    %2581 = vmatprep.subr.mxu0 0.0
    %2582 = vmatpush1.xpose.msra.mxu0 0.0
    %2583 = vmatprep.subr.mxu0 0.0
    %2584 = vmatpush1.xpose.msra.mxu0 0.0
    %2585 = vmatprep.subr.mxu0 0.0
    %2586 = vmatpush1.xpose.msra.mxu0 0.0
    %2587 = vmatprep.subr.mxu0 0.0
    %2588 = vmatpush1.xpose.msra.mxu0 0.0
    %2589 = vmatprep.subr.mxu0 0.0
    %2590 = vmatpush1.xpose.msra.mxu0 0.0
    %2591 = vmatprep.subr.mxu0 0.0
    %2592 = vmatpush1.xpose.msra.mxu0 0.0
    %2593 = vmatprep.mubr.f32.mxu0 0.0
    %2594 = vmatmul.mubr.f32.gmra.mrb[0].mxu0 %v2525
    %v2595 = vpop.f32.mrb[0].mxu0
    %v2596 = vadd.f32 0.0, %v2595
    %v2597 = vpop.f32.mrb[0].mxu0
    %2598 = vdwg.mxu0
    %v2599 = vsel %vm2524, %v2262, 0
    %v2601 = vsel %vm2524, %v2349, 0
    %2603 = vmatprep.subr.mxu0 0.0
    %2604 = vmatpush1.xpose.msra.mxu0 %v2601
    %2605 = vmatprep.subr.mxu0 0.0
    %2606 = vmatpush1.xpose.msra.mxu0 0.0
    %2607 = vmatprep.subr.mxu0 0.0
    %2608 = vmatpush1.xpose.msra.mxu0 0.0
    %2609 = vmatprep.subr.mxu0 0.0
    %2610 = vmatpush1.xpose.msra.mxu0 0.0
    %2611 = vmatprep.subr.mxu0 0.0
    %2612 = vmatpush1.xpose.msra.mxu0 0.0
    %2613 = vmatprep.subr.mxu0 0.0
    %2614 = vmatpush1.xpose.msra.mxu0 0.0
    %2615 = vmatprep.subr.mxu0 0.0
    %2616 = vmatpush1.xpose.msra.mxu0 0.0
    %2617 = vmatprep.subr.mxu0 0.0
    %2618 = vmatpush1.xpose.msra.mxu0 0.0
    %2619 = vmatprep.subr.mxu0 0.0
    %2620 = vmatpush1.xpose.msra.mxu0 0.0
    %2621 = vmatprep.subr.mxu0 0.0
    %2622 = vmatpush1.xpose.msra.mxu0 0.0
    %2623 = vmatprep.subr.mxu0 0.0
    %2624 = vmatpush1.xpose.msra.mxu0 0.0
    %2625 = vmatprep.subr.mxu0 0.0
    %2626 = vmatpush1.xpose.msra.mxu0 0.0
    %2627 = vmatprep.subr.mxu0 0.0
    %2628 = vmatpush1.xpose.msra.mxu0 0.0
    %2629 = vmatprep.subr.mxu0 0.0
    %2630 = vmatpush1.xpose.msra.mxu0 0.0
    %2631 = vmatprep.subr.mxu0 0.0
    %2632 = vmatpush1.xpose.msra.mxu0 0.0
    %2633 = vmatprep.subr.mxu0 0.0
    %2634 = vmatpush1.xpose.msra.mxu0 0.0
    %2635 = vmatprep.subr.mxu0 0.0
    %2636 = vmatpush1.xpose.msra.mxu0 0.0
    %2637 = vmatprep.subr.mxu0 0.0
    %2638 = vmatpush1.xpose.msra.mxu0 0.0
    %2639 = vmatprep.subr.mxu0 0.0
    %2640 = vmatpush1.xpose.msra.mxu0 0.0
    %2641 = vmatprep.subr.mxu0 0.0
    %2642 = vmatpush1.xpose.msra.mxu0 0.0
    %2643 = vmatprep.subr.mxu0 0.0
    %2644 = vmatpush1.xpose.msra.mxu0 0.0
    %2645 = vmatprep.subr.mxu0 0.0
    %2646 = vmatpush1.xpose.msra.mxu0 0.0
    %2647 = vmatprep.subr.mxu0 0.0
    %2648 = vmatpush1.xpose.msra.mxu0 0.0
    %2649 = vmatprep.subr.mxu0 0.0
    %2650 = vmatpush1.xpose.msra.mxu0 0.0
    %2651 = vmatprep.subr.mxu0 0.0
    %2652 = vmatpush1.xpose.msra.mxu0 0.0
    %2653 = vmatprep.subr.mxu0 0.0
    %2654 = vmatpush1.xpose.msra.mxu0 0.0
    %2655 = vmatprep.subr.mxu0 0.0
    %2656 = vmatpush1.xpose.msra.mxu0 0.0
    %2657 = vmatprep.subr.mxu0 0.0
    %2658 = vmatpush1.xpose.msra.mxu0 0.0
    %2659 = vmatprep.subr.mxu0 0.0
    %2660 = vmatpush1.xpose.msra.mxu0 0.0
    %2661 = vmatprep.subr.mxu0 0.0
    %2662 = vmatpush1.xpose.msra.mxu0 0.0
    %2663 = vmatprep.subr.mxu0 0.0
    %2664 = vmatpush1.xpose.msra.mxu0 0.0
    %2665 = vmatprep.subr.mxu0 0.0
    %2666 = vmatpush1.xpose.msra.mxu0 0.0
    %2667 = vmatprep.mubr.f32.mxu0 0.0
    %2668 = vmatmul.mubr.f32.gmra.mrb[0].mxu0 %v2599
    %v2669 = vpop.f32.mrb[0].mxu0
    %v2670 = vadd.f32 0.0, %v2669
    %v2671 = vpop.f32.mrb[0].mxu0
    %2672 = vdwg.mxu0
    %vm2673 = vcmask 27648
    %v2674 = vsel %vm2673, %v2596, -inf
    %2675 = vmax.xlane.f32.xlu0 %v2674
    %v2676 = vpop.xlane.xlu0 %2675
    %v2677 = vsel %vm2673, %v2670, -inf
    %2678 = vmax.xlane.f32.xlu0 %v2677
    %v2679 = vpop.xlane.xlu0 %2678
    %v2680 = vsub.f32 %v2596, %v2676
    %v2681 = vsub.f32 %v2670, %v2679
    %v2682 = vmul.f32 %v2680, 1.442695
    %v2683 = vpow.pop %v2682
    %v2684 = vmul.f32 %v2681, 1.442695
    %v2685 = vpow.pop %v2684
    %v2686 = vsel %vm2673, %v2683, 0.0
    %2687 = vadd.xlane.f32.xlu0 %v2686
    %v2688 = vpop.xlane.xlu0 %2687
    %v2689 = vsel %vm2673, %v2685, 0.0
    %2690 = vadd.xlane.f32.xlu0 %v2689
    %v2691 = vpop.xlane.xlu0 %2690
    %v2692 = vrcp.pop %v2688
    %v2693 = vrcp.pop %v2691
    %v2694 = vmul.f32 %v2683, %v2692
    %v2695 = vmul.f32 %v2685, %v2693
    %vm2696 = vcmask 31744
    %v2698 = vsel %vm2696, %v2694, 0
    %vm2700 = vcmask 1043456
    %v2701 = vsel %vm2700, %v2434, 0
    %2703 = vmatprep.subr.mxu0 0.0
    %2704 = vmatpush1.msra.mxu0 %v2701
    %2705 = vmatprep.subr.mxu0 0.0
    %2706 = vmatpush1.msra.mxu0 0.0
    %2707 = vmatprep.subr.mxu0 0.0
    %2708 = vmatpush1.msra.mxu0 0.0
    %2709 = vmatprep.subr.mxu0 0.0
    %2710 = vmatpush1.msra.mxu0 0.0
    %2711 = vmatprep.subr.mxu0 0.0
    %2712 = vmatpush1.msra.mxu0 0.0
    %2713 = vmatprep.subr.mxu0 0.0
    %2714 = vmatpush1.msra.mxu0 0.0
    %2715 = vmatprep.subr.mxu0 0.0
    %2716 = vmatpush1.msra.mxu0 0.0
    %2717 = vmatprep.subr.mxu0 0.0
    %2718 = vmatpush1.msra.mxu0 0.0
    %2719 = vmatprep.subr.mxu0 0.0
    %2720 = vmatpush1.msra.mxu0 0.0
    %2721 = vmatprep.subr.mxu0 0.0
    %2722 = vmatpush1.msra.mxu0 0.0
    %2723 = vmatprep.subr.mxu0 0.0
    %2724 = vmatpush1.msra.mxu0 0.0
    %2725 = vmatprep.subr.mxu0 0.0
    %2726 = vmatpush1.msra.mxu0 0.0
    %2727 = vmatprep.subr.mxu0 0.0
    %2728 = vmatpush1.msra.mxu0 0.0
    %2729 = vmatprep.subr.mxu0 0.0
    %2730 = vmatpush1.msra.mxu0 0.0
    %2731 = vmatprep.subr.mxu0 0.0
    %2732 = vmatpush1.msra.mxu0 0.0
    %2733 = vmatprep.subr.mxu0 0.0
    %2734 = vmatpush1.msra.mxu0 0.0
    %2735 = vmatprep.subr.mxu0 0.0
    %2736 = vmatpush1.msra.mxu0 0.0
    %2737 = vmatprep.subr.mxu0 0.0
    %2738 = vmatpush1.msra.mxu0 0.0
    %2739 = vmatprep.subr.mxu0 0.0
    %2740 = vmatpush1.msra.mxu0 0.0
    %2741 = vmatprep.subr.mxu0 0.0
    %2742 = vmatpush1.msra.mxu0 0.0
    %2743 = vmatprep.subr.mxu0 0.0
    %2744 = vmatpush1.msra.mxu0 0.0
    %2745 = vmatprep.subr.mxu0 0.0
    %2746 = vmatpush1.msra.mxu0 0.0
    %2747 = vmatprep.subr.mxu0 0.0
    %2748 = vmatpush1.msra.mxu0 0.0
    %2749 = vmatprep.subr.mxu0 0.0
    %2750 = vmatpush1.msra.mxu0 0.0
    %2751 = vmatprep.subr.mxu0 0.0
    %2752 = vmatpush1.msra.mxu0 0.0
    %2753 = vmatprep.subr.mxu0 0.0
    %2754 = vmatpush1.msra.mxu0 0.0
    %2755 = vmatprep.subr.mxu0 0.0
    %2756 = vmatpush1.msra.mxu0 0.0
    %2757 = vmatprep.subr.mxu0 0.0
    %2758 = vmatpush1.msra.mxu0 0.0
    %2759 = vmatprep.subr.mxu0 0.0
    %2760 = vmatpush1.msra.mxu0 0.0
    %2761 = vmatprep.subr.mxu0 0.0
    %2762 = vmatpush1.msra.mxu0 0.0
    %2763 = vmatprep.subr.mxu0 0.0
    %2764 = vmatpush1.msra.mxu0 0.0
    %2765 = vmatprep.subr.mxu0 0.0
    %2766 = vmatpush1.msra.mxu0 0.0
    %2767 = vmatprep.mubr.f32.mxu0 0.0
    %2768 = vmatmul.mubr.f32.gmra.mrb[0].mxu0 %v2698
    %v2769 = vpop.f32.mrb[0].mxu0
    %v2770 = vadd.f32 0.0, %v2769
    %v2771 = vpop.f32.mrb[0].mxu0
    %2772 = vdwg.mxu0
    %v2774 = vsel %vm2696, %v2695, 0
    %v2776 = vsel %vm2700, %v2436, 0
    %2778 = vmatprep.subr.mxu0 0.0
    %2779 = vmatpush1.msra.mxu0 %v2776
    %2780 = vmatprep.subr.mxu0 0.0
    %2781 = vmatpush1.msra.mxu0 0.0
    %2782 = vmatprep.subr.mxu0 0.0
    %2783 = vmatpush1.msra.mxu0 0.0
    %2784 = vmatprep.subr.mxu0 0.0
    %2785 = vmatpush1.msra.mxu0 0.0
    %2786 = vmatprep.subr.mxu0 0.0
    %2787 = vmatpush1.msra.mxu0 0.0
    %2788 = vmatprep.subr.mxu0 0.0
    %2789 = vmatpush1.msra.mxu0 0.0
    %2790 = vmatprep.subr.mxu0 0.0
    %2791 = vmatpush1.msra.mxu0 0.0
    %2792 = vmatprep.subr.mxu0 0.0
    %2793 = vmatpush1.msra.mxu0 0.0
    %2794 = vmatprep.subr.mxu0 0.0
    %2795 = vmatpush1.msra.mxu0 0.0
    %2796 = vmatprep.subr.mxu0 0.0
    %2797 = vmatpush1.msra.mxu0 0.0
    %2798 = vmatprep.subr.mxu0 0.0
    %2799 = vmatpush1.msra.mxu0 0.0
    %2800 = vmatprep.subr.mxu0 0.0
    %2801 = vmatpush1.msra.mxu0 0.0
    %2802 = vmatprep.subr.mxu0 0.0
    %2803 = vmatpush1.msra.mxu0 0.0
    %2804 = vmatprep.subr.mxu0 0.0
    %2805 = vmatpush1.msra.mxu0 0.0
    %2806 = vmatprep.subr.mxu0 0.0
    %2807 = vmatpush1.msra.mxu0 0.0
    %2808 = vmatprep.subr.mxu0 0.0
    %2809 = vmatpush1.msra.mxu0 0.0
    %2810 = vmatprep.subr.mxu0 0.0
    %2811 = vmatpush1.msra.mxu0 0.0
    %2812 = vmatprep.subr.mxu0 0.0
    %2813 = vmatpush1.msra.mxu0 0.0
    %2814 = vmatprep.subr.mxu0 0.0
    %2815 = vmatpush1.msra.mxu0 0.0
    %2816 = vmatprep.subr.mxu0 0.0
    %2817 = vmatpush1.msra.mxu0 0.0
    %2818 = vmatprep.subr.mxu0 0.0
    %2819 = vmatpush1.msra.mxu0 0.0
    %2820 = vmatprep.subr.mxu0 0.0
    %2821 = vmatpush1.msra.mxu0 0.0
    %2822 = vmatprep.subr.mxu0 0.0
    %2823 = vmatpush1.msra.mxu0 0.0
    %2824 = vmatprep.subr.mxu0 0.0
    %2825 = vmatpush1.msra.mxu0 0.0
    %2826 = vmatprep.subr.mxu0 0.0
    %2827 = vmatpush1.msra.mxu0 0.0
    %2828 = vmatprep.subr.mxu0 0.0
    %2829 = vmatpush1.msra.mxu0 0.0
    %2830 = vmatprep.subr.mxu0 0.0
    %2831 = vmatpush1.msra.mxu0 0.0
    %2832 = vmatprep.subr.mxu0 0.0
    %2833 = vmatpush1.msra.mxu0 0.0
    %2834 = vmatprep.subr.mxu0 0.0
    %2835 = vmatpush1.msra.mxu0 0.0
    %2836 = vmatprep.subr.mxu0 0.0
    %2837 = vmatpush1.msra.mxu0 0.0
    %2838 = vmatprep.subr.mxu0 0.0
    %2839 = vmatpush1.msra.mxu0 0.0
    %2840 = vmatprep.subr.mxu0 0.0
    %2841 = vmatpush1.msra.mxu0 0.0
    %2842 = vmatprep.mubr.f32.mxu0 0.0
    %2843 = vmatmul.mubr.f32.gmra.mrb[0].mxu0 %v2774
    %v2844 = vpop.f32.mrb[0].mxu0
    %v2845 = vadd.f32 0.0, %v2844
    %v2846 = vpop.f32.mrb[0].mxu0
    %2847 = vdwg.mxu0
    %v2848 = vsel %vm2700, %v2521, 0
    %2850 = vmatprep.subr.mxu0 0.0
    %2851 = vmatpush1.msra.mxu0 %v2848
    %2852 = vmatprep.subr.mxu0 0.0
    %2853 = vmatpush1.msra.mxu0 0.0
    %2854 = vmatprep.subr.mxu0 0.0
    %2855 = vmatpush1.msra.mxu0 0.0
    %2856 = vmatprep.subr.mxu0 0.0
    %2857 = vmatpush1.msra.mxu0 0.0
    %2858 = vmatprep.subr.mxu0 0.0
    %2859 = vmatpush1.msra.mxu0 0.0
    %2860 = vmatprep.subr.mxu0 0.0
    %2861 = vmatpush1.msra.mxu0 0.0
    %2862 = vmatprep.subr.mxu0 0.0
    %2863 = vmatpush1.msra.mxu0 0.0
    %2864 = vmatprep.subr.mxu0 0.0
    %2865 = vmatpush1.msra.mxu0 0.0
    %2866 = vmatprep.subr.mxu0 0.0
    %2867 = vmatpush1.msra.mxu0 0.0
    %2868 = vmatprep.subr.mxu0 0.0
    %2869 = vmatpush1.msra.mxu0 0.0
    %2870 = vmatprep.subr.mxu0 0.0
    %2871 = vmatpush1.msra.mxu0 0.0
    %2872 = vmatprep.subr.mxu0 0.0
    %2873 = vmatpush1.msra.mxu0 0.0
    %2874 = vmatprep.subr.mxu0 0.0
    %2875 = vmatpush1.msra.mxu0 0.0
    %2876 = vmatprep.subr.mxu0 0.0
    %2877 = vmatpush1.msra.mxu0 0.0
    %2878 = vmatprep.subr.mxu0 0.0
    %2879 = vmatpush1.msra.mxu0 0.0
    %2880 = vmatprep.subr.mxu0 0.0
    %2881 = vmatpush1.msra.mxu0 0.0
    %2882 = vmatprep.subr.mxu0 0.0
    %2883 = vmatpush1.msra.mxu0 0.0
    %2884 = vmatprep.subr.mxu0 0.0
    %2885 = vmatpush1.msra.mxu0 0.0
    %2886 = vmatprep.subr.mxu0 0.0
    %2887 = vmatpush1.msra.mxu0 0.0
    %2888 = vmatprep.subr.mxu0 0.0
    %2889 = vmatpush1.msra.mxu0 0.0
    %2890 = vmatprep.subr.mxu0 0.0
    %2891 = vmatpush1.msra.mxu0 0.0
    %2892 = vmatprep.subr.mxu0 0.0
    %2893 = vmatpush1.msra.mxu0 0.0
    %2894 = vmatprep.subr.mxu0 0.0
    %2895 = vmatpush1.msra.mxu0 0.0
    %2896 = vmatprep.subr.mxu0 0.0
    %2897 = vmatpush1.msra.mxu0 0.0
    %2898 = vmatprep.subr.mxu0 0.0
    %2899 = vmatpush1.msra.mxu0 0.0
    %2900 = vmatprep.subr.mxu0 0.0
    %2901 = vmatpush1.msra.mxu0 0.0
    %2902 = vmatprep.subr.mxu0 0.0
    %2903 = vmatpush1.msra.mxu0 0.0
    %2904 = vmatprep.subr.mxu0 0.0
    %2905 = vmatpush1.msra.mxu0 0.0
    %2906 = vmatprep.subr.mxu0 0.0
    %2907 = vmatpush1.msra.mxu0 0.0
    %2908 = vmatprep.subr.mxu0 0.0
    %2909 = vmatpush1.msra.mxu0 0.0
    %2910 = vmatprep.subr.mxu0 0.0
    %2911 = vmatpush1.msra.mxu0 0.0
    %2912 = vmatprep.subr.mxu0 0.0
    %2913 = vmatpush1.msra.mxu0 0.0
    %2914 = vmatprep.mubr.f32.mxu0 0.0
    %2915 = vmatmul.mubr.f32.gmra.mrb[0].mxu0 %v2698
    %v2916 = vpop.f32.mrb[0].mxu0
    %v2917 = vadd.f32 0.0, %v2916
    %v2918 = vpop.f32.mrb[0].mxu0
    %2919 = vdwg.mxu0
    %v2920 = vsel %vm2700, %v2523, 0
    %2922 = vmatprep.subr.mxu0 0.0
    %2923 = vmatpush1.msra.mxu0 %v2920
    %2924 = vmatprep.subr.mxu0 0.0
    %2925 = vmatpush1.msra.mxu0 0.0
    %2926 = vmatprep.subr.mxu0 0.0
    %2927 = vmatpush1.msra.mxu0 0.0
    %2928 = vmatprep.subr.mxu0 0.0
    %2929 = vmatpush1.msra.mxu0 0.0
    %2930 = vmatprep.subr.mxu0 0.0
    %2931 = vmatpush1.msra.mxu0 0.0
    %2932 = vmatprep.subr.mxu0 0.0
    %2933 = vmatpush1.msra.mxu0 0.0
    %2934 = vmatprep.subr.mxu0 0.0
    %2935 = vmatpush1.msra.mxu0 0.0
    %2936 = vmatprep.subr.mxu0 0.0
    %2937 = vmatpush1.msra.mxu0 0.0
    %2938 = vmatprep.subr.mxu0 0.0
    %2939 = vmatpush1.msra.mxu0 0.0
    %2940 = vmatprep.subr.mxu0 0.0
    %2941 = vmatpush1.msra.mxu0 0.0
    %2942 = vmatprep.subr.mxu0 0.0
    %2943 = vmatpush1.msra.mxu0 0.0
    %2944 = vmatprep.subr.mxu0 0.0
    %2945 = vmatpush1.msra.mxu0 0.0
    %2946 = vmatprep.subr.mxu0 0.0
    %2947 = vmatpush1.msra.mxu0 0.0
    %2948 = vmatprep.subr.mxu0 0.0
    %2949 = vmatpush1.msra.mxu0 0.0
    %2950 = vmatprep.subr.mxu0 0.0
    %2951 = vmatpush1.msra.mxu0 0.0
    %2952 = vmatprep.subr.mxu0 0.0
    %2953 = vmatpush1.msra.mxu0 0.0
    %2954 = vmatprep.subr.mxu0 0.0
    %2955 = vmatpush1.msra.mxu0 0.0
    %2956 = vmatprep.subr.mxu0 0.0
    %2957 = vmatpush1.msra.mxu0 0.0
    %2958 = vmatprep.subr.mxu0 0.0
    %2959 = vmatpush1.msra.mxu0 0.0
    %2960 = vmatprep.subr.mxu0 0.0
    %2961 = vmatpush1.msra.mxu0 0.0
    %2962 = vmatprep.subr.mxu0 0.0
    %2963 = vmatpush1.msra.mxu0 0.0
    %2964 = vmatprep.subr.mxu0 0.0
    %2965 = vmatpush1.msra.mxu0 0.0
    %2966 = vmatprep.subr.mxu0 0.0
    %2967 = vmatpush1.msra.mxu0 0.0
    %2968 = vmatprep.subr.mxu0 0.0
    %2969 = vmatpush1.msra.mxu0 0.0
    %2970 = vmatprep.subr.mxu0 0.0
    %2971 = vmatpush1.msra.mxu0 0.0
    %2972 = vmatprep.subr.mxu0 0.0
    %2973 = vmatpush1.msra.mxu0 0.0
    %2974 = vmatprep.subr.mxu0 0.0
    %2975 = vmatpush1.msra.mxu0 0.0
    %2976 = vmatprep.subr.mxu0 0.0
    %2977 = vmatpush1.msra.mxu0 0.0
    %2978 = vmatprep.subr.mxu0 0.0
    %2979 = vmatpush1.msra.mxu0 0.0
    %2980 = vmatprep.subr.mxu0 0.0
    %2981 = vmatpush1.msra.mxu0 0.0
    %2982 = vmatprep.subr.mxu0 0.0
    %2983 = vmatpush1.msra.mxu0 0.0
    %2984 = vmatprep.subr.mxu0 0.0
    %2985 = vmatpush1.msra.mxu0 0.0
    %2986 = vmatprep.mubr.f32.mxu0 0.0
    %2987 = vmatmul.mubr.f32.gmra.mrb[0].mxu0 %v2774
    %v2988 = vpop.f32.mrb[0].mxu0
    %v2989 = vadd.f32 0.0, %v2988
    %v2990 = vpop.f32.mrb[0].mxu0
    %2991 = vdwg.mxu0
    %s2993 = vtos %v2166
    %v2994 = vstv %s2993
    %v2996 = vmul.f32 %v2994, %v2770
    %v2997 = vmul.f32 %v2994, %v2845
    %v2998 = vadd.f32 %v2996, %v2124
    %v2999 = vadd.f32 %v2997, %v2125
    %v3000 = vmul.f32 %v2994, %v2917
    %v3001 = vmul.f32 %v2994, %v2989
    %v3003 = vadd.f32 %v3000, %v570
    %v3004 = vadd.f32 %v3001, %v578
    %v3005 = vld [vmem:[#allocation2 + $0x490] sm:$0xff]
    %v3006 = vld [vmem:[#allocation2 + $0x498] sm:$0xff]
    %v3007 = vld [vmem:[#allocation2 + $0x4a0] sm:$0xff]
    %v3008 = vld [vmem:[#allocation2 + $0x4a8] sm:$0xff]
    %v3009 = vld [vmem:[#allocation2 + $0x4b0] sm:$0xff]
    %v3010 = vld [vmem:[#allocation2 + $0x4b8] sm:$0xff]
    %v3011 = vld [vmem:[#allocation2 + $0x4c0] sm:$0xff]
    %v3012 = vld [vmem:[#allocation2 + $0x4c8] sm:$0xff]
    %v3013 = vld [vmem:[#allocation2 + $0x4d0] sm:$0xff]
    %v3014 = vld [vmem:[#allocation2 + $0x4d8] sm:$0xff]
    %v3015 = vld [vmem:[#allocation2 + $0x4e0] sm:$0xff]
    %v3016 = vld [vmem:[#allocation2 + $0x4e8] sm:$0xff]
    %v3017 = vld [vmem:[#allocation2 + $0x4f0] sm:$0xff]
    %v3018 = vld [vmem:[#allocation2 + $0x4f8] sm:$0xff]
    %v3019 = vld [vmem:[#allocation2 + $0x500] sm:$0xff]
    %v3020 = vld [vmem:[#allocation2 + $0x508] sm:$0xff]
    %v3023 = vcombine.low %v2998, %v2999
    %v3025 = vpack.c.bf16 %v3023, %v3023
    %v3026 = vld [vmem:[#allocation2 + $0x510] sm:$0xff]
    %v3027 = vld [vmem:[#allocation2 + $0x518] sm:$0xff]
    %v3030 = vcombine.low %v3003, %v3004
    %v3032 = vpack.c.bf16 %v3030, %v3030
    %v3034 = vsel %vm195, %v3032, 0
    %3036 = vmatprep.subr.bf16.mxu0 %v3027
    %3037 = vmatpush1.bf16.msra.mxu0 %v3026
    %3038 = vmatprep.subr.bf16.mxu0 0
    %3039 = vmatpush1.bf16.msra.mxu0 0
    %3040 = vmatprep.subr.bf16.mxu0 0
    %3041 = vmatpush1.bf16.msra.mxu0 0
    %3042 = vmatprep.subr.bf16.mxu0 0
    %3043 = vmatpush1.bf16.msra.mxu0 0
    %3044 = vmatprep.subr.bf16.mxu0 0
    %3045 = vmatpush1.bf16.msra.mxu0 0
    %3046 = vmatprep.subr.bf16.mxu0 0
    %3047 = vmatpush1.bf16.msra.mxu0 0
    %3048 = vmatprep.subr.bf16.mxu0 0
    %3049 = vmatpush1.bf16.msra.mxu0 0
    %3050 = vmatprep.subr.bf16.mxu0 0
    %3051 = vmatpush1.bf16.msra.mxu0 0
    %3052 = vmatprep.subr.bf16.mxu0 0
    %3053 = vmatpush1.bf16.msra.mxu0 0
    %3054 = vmatprep.subr.bf16.mxu0 0
    %3055 = vmatpush1.bf16.msra.mxu0 0
    %3056 = vmatprep.subr.bf16.mxu0 0
    %3057 = vmatpush1.bf16.msra.mxu0 0
    %3058 = vmatprep.subr.bf16.mxu0 0
    %3059 = vmatpush1.bf16.msra.mxu0 0
    %3060 = vmatprep.subr.bf16.mxu0 0
    %3061 = vmatpush1.bf16.msra.mxu0 0
    %3062 = vmatprep.subr.bf16.mxu0 0
    %3063 = vmatpush1.bf16.msra.mxu0 0
    %3064 = vmatprep.subr.bf16.mxu0 0
    %3065 = vmatpush1.bf16.msra.mxu0 0
    %3066 = vmatprep.subr.bf16.mxu0 0
    %3067 = vmatpush1.bf16.msra.mxu0 0
    %3068 = vmatprep.mubr.bf16.mxu0 0
    %3069 = vmatmul.mubr.bf16.gmra.mrb[0].mxu0 %v3034
    %v3070 = vpop.f32.mrb[0].mxu0
    %v3071 = vadd.f32 0.0, %v3070
    %v3072 = vpop.f32.mrb[0].mxu0
    %v3073 = vadd.f32 0.0, %v3072
    %v3074 = vpop.f32.mrb[0].mxu0
    %v3075 = vpop.f32.mrb[0].mxu0
    %3076 = vdwg.mxu0
    %3077 = vmatprep.subr.bf16.mxu0 %v3006
    %3078 = vmatpush1.bf16.msra.mxu0 %v3005
    %3079 = vmatprep.subr.bf16.mxu0 %v3008
    %3080 = vmatpush1.bf16.msra.mxu0 %v3007
    %3081 = vmatprep.subr.bf16.mxu0 %v3010
    %3082 = vmatpush1.bf16.msra.mxu0 %v3009
    %3083 = vmatprep.subr.bf16.mxu0 %v3012
    %3084 = vmatpush1.bf16.msra.mxu0 %v3011
    %3085 = vmatprep.subr.bf16.mxu0 %v3014
    %3086 = vmatpush1.bf16.msra.mxu0 %v3013
    %3087 = vmatprep.subr.bf16.mxu0 %v3016
    %3088 = vmatpush1.bf16.msra.mxu0 %v3015
    %3089 = vmatprep.subr.bf16.mxu0 %v3018
    %3090 = vmatpush1.bf16.msra.mxu0 %v3017
    %3091 = vmatprep.subr.bf16.mxu0 %v3020
    %3092 = vmatpush1.bf16.msra.mxu0 %v3019
    %3093 = vmatprep.subr.bf16.mxu0 0
    %3094 = vmatpush1.bf16.msra.mxu0 0
    %3095 = vmatprep.subr.bf16.mxu0 0
    %3096 = vmatpush1.bf16.msra.mxu0 0
    %3097 = vmatprep.subr.bf16.mxu0 0
    %3098 = vmatpush1.bf16.msra.mxu0 0
    %3099 = vmatprep.subr.bf16.mxu0 0
    %3100 = vmatpush1.bf16.msra.mxu0 0
    %3101 = vmatprep.subr.bf16.mxu0 0
    %3102 = vmatpush1.bf16.msra.mxu0 0
    %3103 = vmatprep.subr.bf16.mxu0 0
    %3104 = vmatpush1.bf16.msra.mxu0 0
    %3105 = vmatprep.subr.bf16.mxu0 0
    %3106 = vmatpush1.bf16.msra.mxu0 0
    %3107 = vmatprep.subr.bf16.mxu0 0
    %3108 = vmatpush1.bf16.msra.mxu0 0
    %3109 = vmatprep.mubr.bf16.mxu0 0
    %3110 = vmatmul.mubr.bf16.gmra.mrb[0].mxu0 %v3025
    %v3111 = vpop.f32.mrb[0].mxu0
    %v3112 = vadd.f32 %v3071, %v3111
    %v3113 = vpop.f32.mrb[0].mxu0
    %v3114 = vadd.f32 %v3073, %v3113
    %v3115 = vpop.f32.mrb[0].mxu0
    %v3116 = vpop.f32.mrb[0].mxu0
    %3117 = vdwg.mxu0
    %v3119 = vcombine.high %v3112, %v3112
    %v3122 = vcombine.high %v3114, %v3114
    %v3123 = vcombine.low %v3114, %v3114
    %v3124 = vcombine.low %v3122, %v3122
    %v3127 = vsel %vm2700, %v3112, %v3123
    %v3128 = vsel %vm2700, %v3119, %v3124
    %v3129 = vadd.f32 %v3127, %v3128
    %v3130 = vrot.slane %v3129, 4
    %v3131 = vadd.f32 %v3129, %v3130
    %v3132 = vrot.slane %v3131, 2
    %v3133 = vadd.f32 %v3131, %v3132
    %v3134 = vrot.slane %v3133, 1
    %v3135 = vadd.f32 %v3133, %v3134
    %v3136 = vmul.f32 %v3135, %v384
    %v3137 = vsub.f32 %v3127, %v3136
    %v3138 = vsub.f32 %v3128, %v3136
    %v3139 = vmul.f32 %v3137, %v3137
    %v3140 = vmul.f32 %v3138, %v3138
    %v3141 = vadd.f32 %v3139, %v3140
    %v3142 = vrot.slane %v3141, 4
    %v3143 = vadd.f32 %v3141, %v3142
    %v3144 = vrot.slane %v3143, 2
    %v3145 = vadd.f32 %v3143, %v3144
    %v3146 = vrot.slane %v3145, 1
    %v3147 = vadd.f32 %v3145, %v3146
    %v3148 = vmul.f32 %v3147, %v384
    %v3149 = vadd.f32 %v3148, 1e-05
    %v3150 = vrsqrt.pop %v3149
    %v3151 = vmul.f32 %v3137, %v3150
    %v3152 = vmul.f32 %v3138, %v3150
    %v3153 = vmul.f32 %v3151, %v2109
    %v3154 = vmul.f32 %v3152, %v2109
    %v3155 = vadd.f32 %v3153, %v2118
    %v3156 = vadd.f32 %v3154, %v2118
    %v3157 = vmax.f32 %v3155, 0.0
    %v3158 = vmax.f32 %v3156, 0.0
    %v3159 = vld [vmem:[#allocation2 + $0x520] sm:$0xff]
    %v3160 = vld [vmem:[#allocation2 + $0x528] sm:$0xff]
    %v3161 = vld [vmem:[#allocation2 + $0x530] sm:$0xff]
    %v3162 = vld [vmem:[#allocation2 + $0x538] sm:$0xff]
    %v3163 = vld [vmem:[#allocation2 + $0x540] sm:$0xff]
    %v3164 = vld [vmem:[#allocation2 + $0x548] sm:$0xff]
    %v3165 = vld [vmem:[#allocation2 + $0x550] sm:$0xff]
    %v3166 = vld [vmem:[#allocation2 + $0x558] sm:$0xff]
    %v3167 = vld [vmem:[#allocation2 + $0x560] sm:$0xff]
    %v3168 = vld [vmem:[#allocation2 + $0x568] sm:$0xff]
    %v3169 = vld [vmem:[#allocation2 + $0x570] sm:$0xff]
    %v3170 = vld [vmem:[#allocation2 + $0x578] sm:$0xff]
    %v3171 = vld [vmem:[#allocation2 + $0x580] sm:$0xff]
    %v3172 = vld [vmem:[#allocation2 + $0x588] sm:$0xff]
    %v3173 = vld [vmem:[#allocation2 + $0x590] sm:$0xff]
    %v3174 = vld [vmem:[#allocation2 + $0x598] sm:$0xff]
    %v3175 = vpack.c.bf16 %v3158, %v3157
    %v3176 = vld [vmem:[#allocation2 + $0x5a0] sm:$0xff]
    %v3177 = vld [vmem:[#allocation2 + $0x5a8] sm:$0xff]
    %v3178 = vpack.c.bf16 %v421, %v420
    %v3180 = vsel %vm195, %v3178, 0
    %3182 = vmatprep.subr.bf16.mxu0 %v3177
    %3183 = vmatpush1.bf16.msra.mxu0 %v3176
    %3184 = vmatprep.subr.bf16.mxu0 0
    %3185 = vmatpush1.bf16.msra.mxu0 0
    %3186 = vmatprep.subr.bf16.mxu0 0
    %3187 = vmatpush1.bf16.msra.mxu0 0
    %3188 = vmatprep.subr.bf16.mxu0 0
    %3189 = vmatpush1.bf16.msra.mxu0 0
    %3190 = vmatprep.subr.bf16.mxu0 0
    %3191 = vmatpush1.bf16.msra.mxu0 0
    %3192 = vmatprep.subr.bf16.mxu0 0
    %3193 = vmatpush1.bf16.msra.mxu0 0
    %3194 = vmatprep.subr.bf16.mxu0 0
    %3195 = vmatpush1.bf16.msra.mxu0 0
    %3196 = vmatprep.subr.bf16.mxu0 0
    %3197 = vmatpush1.bf16.msra.mxu0 0
    %3198 = vmatprep.subr.bf16.mxu0 0
    %3199 = vmatpush1.bf16.msra.mxu0 0
    %3200 = vmatprep.subr.bf16.mxu0 0
    %3201 = vmatpush1.bf16.msra.mxu0 0
    %3202 = vmatprep.subr.bf16.mxu0 0
    %3203 = vmatpush1.bf16.msra.mxu0 0
    %3204 = vmatprep.subr.bf16.mxu0 0
    %3205 = vmatpush1.bf16.msra.mxu0 0
    %3206 = vmatprep.subr.bf16.mxu0 0
    %3207 = vmatpush1.bf16.msra.mxu0 0
    %3208 = vmatprep.subr.bf16.mxu0 0
    %3209 = vmatpush1.bf16.msra.mxu0 0
    %3210 = vmatprep.subr.bf16.mxu0 0
    %3211 = vmatpush1.bf16.msra.mxu0 0
    %3212 = vmatprep.subr.bf16.mxu0 0
    %3213 = vmatpush1.bf16.msra.mxu0 0
    %3214 = vmatprep.mubr.bf16.mxu0 0
    %3215 = vmatmul.mubr.bf16.gmra.mrb[0].mxu0 %v3180
    %v3216 = vpop.f32.mrb[0].mxu0
    %v3217 = vadd.f32 0.0, %v3216
    %v3218 = vpop.f32.mrb[0].mxu0
    %v3219 = vadd.f32 0.0, %v3218
    %v3220 = vpop.f32.mrb[0].mxu0
    %v3221 = vadd.f32 0.0, %v3220
    %v3222 = vpop.f32.mrb[0].mxu0
    %v3223 = vadd.f32 0.0, %v3222
    %3224 = vdwg.mxu0
    %3225 = vmatprep.subr.bf16.mxu0 %v3160
    %3226 = vmatpush1.bf16.msra.mxu0 %v3159
    %3227 = vmatprep.subr.bf16.mxu0 %v3162
    %3228 = vmatpush1.bf16.msra.mxu0 %v3161
    %3229 = vmatprep.subr.bf16.mxu0 %v3164
    %3230 = vmatpush1.bf16.msra.mxu0 %v3163
    %3231 = vmatprep.subr.bf16.mxu0 %v3166
    %3232 = vmatpush1.bf16.msra.mxu0 %v3165
    %3233 = vmatprep.subr.bf16.mxu0 %v3168
    %3234 = vmatpush1.bf16.msra.mxu0 %v3167
    %3235 = vmatprep.subr.bf16.mxu0 %v3170
    %3236 = vmatpush1.bf16.msra.mxu0 %v3169
    %3237 = vmatprep.subr.bf16.mxu0 %v3172
    %3238 = vmatpush1.bf16.msra.mxu0 %v3171
    %3239 = vmatprep.subr.bf16.mxu0 %v3174
    %3240 = vmatpush1.bf16.msra.mxu0 %v3173
    %3241 = vmatprep.subr.bf16.mxu0 0
    %3242 = vmatpush1.bf16.msra.mxu0 0
    %3243 = vmatprep.subr.bf16.mxu0 0
    %3244 = vmatpush1.bf16.msra.mxu0 0
    %3245 = vmatprep.subr.bf16.mxu0 0
    %3246 = vmatpush1.bf16.msra.mxu0 0
    %3247 = vmatprep.subr.bf16.mxu0 0
    %3248 = vmatpush1.bf16.msra.mxu0 0
    %3249 = vmatprep.subr.bf16.mxu0 0
    %3250 = vmatpush1.bf16.msra.mxu0 0
    %3251 = vmatprep.subr.bf16.mxu0 0
    %3252 = vmatpush1.bf16.msra.mxu0 0
    %3253 = vmatprep.subr.bf16.mxu0 0
    %3254 = vmatpush1.bf16.msra.mxu0 0
    %3255 = vmatprep.subr.bf16.mxu0 0
    %3256 = vmatpush1.bf16.msra.mxu0 0
    %3257 = vmatprep.mubr.bf16.mxu0 0
    %3258 = vmatmul.mubr.bf16.gmra.mrb[0].mxu0 %v3175
    %v3259 = vpop.f32.mrb[0].mxu0
    %v3260 = vadd.f32 %v3217, %v3259
    %v3261 = vpop.f32.mrb[0].mxu0
    %v3262 = vadd.f32 %v3219, %v3261
    %v3263 = vpop.f32.mrb[0].mxu0
    %v3264 = vadd.f32 %v3221, %v3263
    %v3265 = vpop.f32.mrb[0].mxu0
    %v3266 = vadd.f32 %v3223, %v3265
    %3267 = vdwg.mxu0
    %v3268 = vadd.f32 %v3260, %v3262
    %v3269 = vadd.f32 %v3268, %v3264
    %v3270 = vadd.f32 %v3269, %v3266
    %v3271 = vrot.slane %v3270, 4
    %v3272 = vadd.f32 %v3270, %v3271
    %v3273 = vrot.slane %v3272, 2
    %v3274 = vadd.f32 %v3272, %v3273
    %v3275 = vrot.slane %v3274, 1
    %v3276 = vadd.f32 %v3274, %v3275
    %v3277 = vmul.f32 %v3276, %v209
    %v3278 = vsub.f32 %v3260, %v3277
    %v3279 = vsub.f32 %v3262, %v3277
    %v3280 = vsub.f32 %v3264, %v3277
    %v3281 = vsub.f32 %v3266, %v3277
    %v3282 = vmul.f32 %v3278, %v3278
    %v3283 = vmul.f32 %v3279, %v3279
    %v3284 = vmul.f32 %v3280, %v3280
    %v3285 = vmul.f32 %v3281, %v3281
    %v3286 = vadd.f32 %v3282, %v3283
    %v3287 = vadd.f32 %v3286, %v3284
    %v3288 = vadd.f32 %v3287, %v3285
    %v3289 = vrot.slane %v3288, 4
    %v3290 = vadd.f32 %v3288, %v3289
    %v3291 = vrot.slane %v3290, 2
    %v3292 = vadd.f32 %v3290, %v3291
    %v3293 = vrot.slane %v3292, 1
    %v3294 = vadd.f32 %v3292, %v3293
    %v3295 = vmul.f32 %v3294, %v209
    %v3296 = vadd.f32 %v3295, 1e-05
    %v3297 = vrsqrt.pop %v3296
    %v3298 = vmul.f32 %v3278, %v3297
    %v3299 = vmul.f32 %v3279, %v3297
    %v3300 = vmul.f32 %v3280, %v3297
    %v3301 = vmul.f32 %v3281, %v3297
    %v3302 = vmul.f32 %v3298, %v2109
    %v3303 = vmul.f32 %v3299, %v2109
    %v3304 = vmul.f32 %v3300, %v2109
    %v3305 = vmul.f32 %v3301, %v2109
    %v3306 = vadd.f32 %v3302, %v2118
    %v3307 = vadd.f32 %v3303, %v2118
    %v3308 = vadd.f32 %v3304, %v2118
    %v3309 = vadd.f32 %v3305, %v2118
    %v3310 = vmax.f32 %v3306, 0.0
    %v3311 = vmax.f32 %v3307, 0.0
    %v3312 = vmax.f32 %v3308, 0.0
    %v3313 = vmax.f32 %v3309, 0.0
    %v3314 = vpack.c.bf16 %v3311, %v3310
    %v3315 = vpack.c.bf16 %v3313, %v3312
    %v3316 = vpack.c.bf16 %v264, %v263
    %v3317 = vpack.c.bf16 %v266, %v265
    %v3319 = vsel %vm195, %v3316, 0
    %v3322 = vsel %vm195, %v3317, 0
    %3324 = vmatprep.subr.bf16.mxu0 0
    %3325 = vmatpush1.bf16.msra.mxu0 %v2134
    %3326 = vmatprep.subr.bf16.mxu0 0
    %3327 = vmatpush1.bf16.msra.mxu0 0
    %3328 = vmatprep.subr.bf16.mxu0 0
    %3329 = vmatpush1.bf16.msra.mxu0 0
    %3330 = vmatprep.subr.bf16.mxu0 0
    %3331 = vmatpush1.bf16.msra.mxu0 0
    %3332 = vmatprep.subr.bf16.mxu0 0
    %3333 = vmatpush1.bf16.msra.mxu0 0
    %3334 = vmatprep.subr.bf16.mxu0 0
    %3335 = vmatpush1.bf16.msra.mxu0 0
    %3336 = vmatprep.subr.bf16.mxu0 0
    %3337 = vmatpush1.bf16.msra.mxu0 0
    %3338 = vmatprep.subr.bf16.mxu0 0
    %3339 = vmatpush1.bf16.msra.mxu0 0
    %3340 = vmatprep.subr.bf16.mxu0 0
    %3341 = vmatpush1.bf16.msra.mxu0 0
    %3342 = vmatprep.subr.bf16.mxu0 0
    %3343 = vmatpush1.bf16.msra.mxu0 0
    %3344 = vmatprep.subr.bf16.mxu0 0
    %3345 = vmatpush1.bf16.msra.mxu0 0
    %3346 = vmatprep.subr.bf16.mxu0 0
    %3347 = vmatpush1.bf16.msra.mxu0 0
    %3348 = vmatprep.subr.bf16.mxu0 0
    %3349 = vmatpush1.bf16.msra.mxu0 0
    %3350 = vmatprep.subr.bf16.mxu0 0
    %3351 = vmatpush1.bf16.msra.mxu0 0
    %3352 = vmatprep.subr.bf16.mxu0 0
    %3353 = vmatpush1.bf16.msra.mxu0 0
    %3354 = vmatprep.subr.bf16.mxu0 0
    %3355 = vmatpush1.bf16.msra.mxu0 0
    %3356 = vmatprep.mubr.bf16.mxu0 0
    %3357 = vmatmul.mubr.bf16.gmra.mrb[0].mxu0 %v3319
    %v3358 = vpop.f32.mrb[0].mxu0
    %v3359 = vadd.f32 0.0, %v3358
    %v3360 = vpop.f32.mrb[0].mxu0
    %v3361 = vpop.f32.mrb[0].mxu0
    %v3362 = vadd.f32 0.0, %v3361
    %v3363 = vpop.f32.mrb[0].mxu0
    %3364 = vmatprep.mubr.bf16.mxu0 0
    %3365 = vmatmul.mubr.bf16.gmra.mrb[0].mxu0 %v3322
    %v3366 = vpop.f32.mrb[0].mxu0
    %v3367 = vadd.f32 0.0, %v3366
    %v3368 = vpop.f32.mrb[0].mxu0
    %v3369 = vpop.f32.mrb[0].mxu0
    %v3370 = vadd.f32 0.0, %v3369
    %v3371 = vpop.f32.mrb[0].mxu0
    %3372 = vdwg.mxu0
    %3373 = vmatprep.subr.bf16.mxu0 0
    %3374 = vmatpush1.bf16.msra.mxu0 %v2126
    %3375 = vmatprep.subr.bf16.mxu0 0
    %3376 = vmatpush1.bf16.msra.mxu0 %v2127
    %3377 = vmatprep.subr.bf16.mxu0 0
    %3378 = vmatpush1.bf16.msra.mxu0 %v2128
    %3379 = vmatprep.subr.bf16.mxu0 0
    %3380 = vmatpush1.bf16.msra.mxu0 %v2129
    %3381 = vmatprep.subr.bf16.mxu0 0
    %3382 = vmatpush1.bf16.msra.mxu0 %v2130
    %3383 = vmatprep.subr.bf16.mxu0 0
    %3384 = vmatpush1.bf16.msra.mxu0 %v2131
    %3385 = vmatprep.subr.bf16.mxu0 0
    %3386 = vmatpush1.bf16.msra.mxu0 %v2132
    %3387 = vmatprep.subr.bf16.mxu0 0
    %3388 = vmatpush1.bf16.msra.mxu0 %v2133
    %3389 = vmatprep.subr.bf16.mxu0 0
    %3390 = vmatpush1.bf16.msra.mxu0 0
    %3391 = vmatprep.subr.bf16.mxu0 0
    %3392 = vmatpush1.bf16.msra.mxu0 0
    %3393 = vmatprep.subr.bf16.mxu0 0
    %3394 = vmatpush1.bf16.msra.mxu0 0
    %3395 = vmatprep.subr.bf16.mxu0 0
    %3396 = vmatpush1.bf16.msra.mxu0 0
    %3397 = vmatprep.subr.bf16.mxu0 0
    %3398 = vmatpush1.bf16.msra.mxu0 0
    %3399 = vmatprep.subr.bf16.mxu0 0
    %3400 = vmatpush1.bf16.msra.mxu0 0
    %3401 = vmatprep.subr.bf16.mxu0 0
    %3402 = vmatpush1.bf16.msra.mxu0 0
    %3403 = vmatprep.subr.bf16.mxu0 0
    %3404 = vmatpush1.bf16.msra.mxu0 0
    %3405 = vmatprep.mubr.bf16.mxu0 0
    %3406 = vmatmul.mubr.bf16.gmra.mrb[0].mxu0 %v3314
    %v3407 = vpop.f32.mrb[0].mxu0
    %v3408 = vadd.f32 %v3359, %v3407
    %v3409 = vpop.f32.mrb[0].mxu0
    %v3410 = vpop.f32.mrb[0].mxu0
    %v3411 = vadd.f32 %v3362, %v3410
    %v3412 = vpop.f32.mrb[0].mxu0
    %3413 = vmatprep.mubr.bf16.mxu0 0
    %3414 = vmatmul.mubr.bf16.gmra.mrb[0].mxu0 %v3315
    %v3415 = vpop.f32.mrb[0].mxu0
    %v3416 = vadd.f32 %v3367, %v3415
    %v3417 = vpop.f32.mrb[0].mxu0
    %v3418 = vpop.f32.mrb[0].mxu0
    %v3419 = vadd.f32 %v3370, %v3418
    %v3420 = vpop.f32.mrb[0].mxu0
    %3421 = vdwg.mxu0
    %v3422 = vadd.f32 %v3408, %v2259
    %v3423 = vadd.f32 %v3411, %v2259
    %v3424 = vadd.f32 %v3416, %v2259
    %v3425 = vadd.f32 %v3419, %v2259
    %3426 = vmatprep.subr.bf16.mxu0 0
    %3427 = vmatpush1.bf16.msra.mxu0 %v2143
    %3428 = vmatprep.subr.bf16.mxu0 0
    %3429 = vmatpush1.bf16.msra.mxu0 0
    %3430 = vmatprep.subr.bf16.mxu0 0
    %3431 = vmatpush1.bf16.msra.mxu0 0
    %3432 = vmatprep.subr.bf16.mxu0 0
    %3433 = vmatpush1.bf16.msra.mxu0 0
    %3434 = vmatprep.subr.bf16.mxu0 0
    %3435 = vmatpush1.bf16.msra.mxu0 0
    %3436 = vmatprep.subr.bf16.mxu0 0
    %3437 = vmatpush1.bf16.msra.mxu0 0
    %3438 = vmatprep.subr.bf16.mxu0 0
    %3439 = vmatpush1.bf16.msra.mxu0 0
    %3440 = vmatprep.subr.bf16.mxu0 0
    %3441 = vmatpush1.bf16.msra.mxu0 0
    %3442 = vmatprep.subr.bf16.mxu0 0
    %3443 = vmatpush1.bf16.msra.mxu0 0
    %3444 = vmatprep.subr.bf16.mxu0 0
    %3445 = vmatpush1.bf16.msra.mxu0 0
    %3446 = vmatprep.subr.bf16.mxu0 0
    %3447 = vmatpush1.bf16.msra.mxu0 0
    %3448 = vmatprep.subr.bf16.mxu0 0
    %3449 = vmatpush1.bf16.msra.mxu0 0
    %3450 = vmatprep.subr.bf16.mxu0 0
    %3451 = vmatpush1.bf16.msra.mxu0 0
    %3452 = vmatprep.subr.bf16.mxu0 0
    %3453 = vmatpush1.bf16.msra.mxu0 0
    %3454 = vmatprep.subr.bf16.mxu0 0
    %3455 = vmatpush1.bf16.msra.mxu0 0
    %3456 = vmatprep.subr.bf16.mxu0 0
    %3457 = vmatpush1.bf16.msra.mxu0 0
    %3458 = vmatprep.mubr.bf16.mxu0 0
    %3459 = vmatmul.mubr.bf16.gmra.mrb[0].mxu0 %v3319
    %v3460 = vpop.f32.mrb[0].mxu0
    %v3461 = vadd.f32 0.0, %v3460
    %v3462 = vpop.f32.mrb[0].mxu0
    %v3463 = vpop.f32.mrb[0].mxu0
    %v3464 = vadd.f32 0.0, %v3463
    %v3465 = vpop.f32.mrb[0].mxu0
    %3466 = vmatprep.mubr.bf16.mxu0 0
    %3467 = vmatmul.mubr.bf16.gmra.mrb[0].mxu0 %v3322
    %v3468 = vpop.f32.mrb[0].mxu0
    %v3469 = vadd.f32 0.0, %v3468
    %v3470 = vpop.f32.mrb[0].mxu0
    %v3471 = vpop.f32.mrb[0].mxu0
    %v3472 = vadd.f32 0.0, %v3471
    %v3473 = vpop.f32.mrb[0].mxu0
    %3474 = vdwg.mxu0
    %3475 = vmatprep.subr.bf16.mxu0 0
    %3476 = vmatpush1.bf16.msra.mxu0 %v2135
    %3477 = vmatprep.subr.bf16.mxu0 0
    %3478 = vmatpush1.bf16.msra.mxu0 %v2136
    %3479 = vmatprep.subr.bf16.mxu0 0
    %3480 = vmatpush1.bf16.msra.mxu0 %v2137
    %3481 = vmatprep.subr.bf16.mxu0 0
    %3482 = vmatpush1.bf16.msra.mxu0 %v2138
    %3483 = vmatprep.subr.bf16.mxu0 0
    %3484 = vmatpush1.bf16.msra.mxu0 %v2139
    %3485 = vmatprep.subr.bf16.mxu0 0
    %3486 = vmatpush1.bf16.msra.mxu0 %v2140
    %3487 = vmatprep.subr.bf16.mxu0 0
    %3488 = vmatpush1.bf16.msra.mxu0 %v2141
    %3489 = vmatprep.subr.bf16.mxu0 0
    %3490 = vmatpush1.bf16.msra.mxu0 %v2142
    %3491 = vmatprep.subr.bf16.mxu0 0
    %3492 = vmatpush1.bf16.msra.mxu0 0
    %3493 = vmatprep.subr.bf16.mxu0 0
    %3494 = vmatpush1.bf16.msra.mxu0 0
    %3495 = vmatprep.subr.bf16.mxu0 0
    %3496 = vmatpush1.bf16.msra.mxu0 0
    %3497 = vmatprep.subr.bf16.mxu0 0
    %3498 = vmatpush1.bf16.msra.mxu0 0
    %3499 = vmatprep.subr.bf16.mxu0 0
    %3500 = vmatpush1.bf16.msra.mxu0 0
    %3501 = vmatprep.subr.bf16.mxu0 0
    %3502 = vmatpush1.bf16.msra.mxu0 0
    %3503 = vmatprep.subr.bf16.mxu0 0
    %3504 = vmatpush1.bf16.msra.mxu0 0
    %3505 = vmatprep.subr.bf16.mxu0 0
    %3506 = vmatpush1.bf16.msra.mxu0 0
    %3507 = vmatprep.mubr.bf16.mxu0 0
    %3508 = vmatmul.mubr.bf16.gmra.mrb[0].mxu0 %v3314
    %v3509 = vpop.f32.mrb[0].mxu0
    %v3510 = vadd.f32 %v3461, %v3509
    %v3511 = vpop.f32.mrb[0].mxu0
    %v3512 = vpop.f32.mrb[0].mxu0
    %v3513 = vadd.f32 %v3464, %v3512
    %v3514 = vpop.f32.mrb[0].mxu0
    %3515 = vmatprep.mubr.bf16.mxu0 0
    %3516 = vmatmul.mubr.bf16.gmra.mrb[0].mxu0 %v3315
    %v3517 = vpop.f32.mrb[0].mxu0
    %v3518 = vadd.f32 %v3469, %v3517
    %v3519 = vpop.f32.mrb[0].mxu0
    %v3520 = vpop.f32.mrb[0].mxu0
    %v3521 = vadd.f32 %v3472, %v3520
    %v3522 = vpop.f32.mrb[0].mxu0
    %3523 = vdwg.mxu0
    %v3524 = vadd.f32 %v3510, %v2346
    %v3525 = vadd.f32 %v3513, %v2346
    %v3526 = vadd.f32 %v3518, %v2346
    %v3527 = vadd.f32 %v3521, %v2346
    %3528 = vmatprep.subr.bf16.mxu0 0
    %3529 = vmatpush1.bf16.msra.mxu0 %v2160
    %3530 = vmatprep.subr.bf16.mxu0 0
    %3531 = vmatpush1.bf16.msra.mxu0 0
    %3532 = vmatprep.subr.bf16.mxu0 0
    %3533 = vmatpush1.bf16.msra.mxu0 0
    %3534 = vmatprep.subr.bf16.mxu0 0
    %3535 = vmatpush1.bf16.msra.mxu0 0
    %3536 = vmatprep.subr.bf16.mxu0 0
    %3537 = vmatpush1.bf16.msra.mxu0 0
    %3538 = vmatprep.subr.bf16.mxu0 0
    %3539 = vmatpush1.bf16.msra.mxu0 0
    %3540 = vmatprep.subr.bf16.mxu0 0
    %3541 = vmatpush1.bf16.msra.mxu0 0
    %3542 = vmatprep.subr.bf16.mxu0 0
    %3543 = vmatpush1.bf16.msra.mxu0 0
    %3544 = vmatprep.subr.bf16.mxu0 0
    %3545 = vmatpush1.bf16.msra.mxu0 0
    %3546 = vmatprep.subr.bf16.mxu0 0
    %3547 = vmatpush1.bf16.msra.mxu0 0
    %3548 = vmatprep.subr.bf16.mxu0 0
    %3549 = vmatpush1.bf16.msra.mxu0 0
    %3550 = vmatprep.subr.bf16.mxu0 0
    %3551 = vmatpush1.bf16.msra.mxu0 0
    %3552 = vmatprep.subr.bf16.mxu0 0
    %3553 = vmatpush1.bf16.msra.mxu0 0
    %3554 = vmatprep.subr.bf16.mxu0 0
    %3555 = vmatpush1.bf16.msra.mxu0 0
    %3556 = vmatprep.subr.bf16.mxu0 0
    %3557 = vmatpush1.bf16.msra.mxu0 0
    %3558 = vmatprep.subr.bf16.mxu0 0
    %3559 = vmatpush1.bf16.msra.mxu0 0
    %3560 = vmatprep.mubr.bf16.mxu0 0
    %3561 = vmatmul.mubr.bf16.gmra.mrb[0].mxu0 %v3319
    %v3562 = vpop.f32.mrb[0].mxu0
    %v3563 = vadd.f32 0.0, %v3562
    %v3564 = vpop.f32.mrb[0].mxu0
    %v3565 = vpop.f32.mrb[0].mxu0
    %v3566 = vadd.f32 0.0, %v3565
    %v3567 = vpop.f32.mrb[0].mxu0
    %3568 = vmatprep.mubr.bf16.mxu0 0
    %3569 = vmatmul.mubr.bf16.gmra.mrb[0].mxu0 %v3322
    %v3570 = vpop.f32.mrb[0].mxu0
    %v3571 = vadd.f32 0.0, %v3570
    %v3572 = vpop.f32.mrb[0].mxu0
    %v3573 = vpop.f32.mrb[0].mxu0
    %v3574 = vadd.f32 0.0, %v3573
    %v3575 = vpop.f32.mrb[0].mxu0
    %3576 = vdwg.mxu0
    %3577 = vmatprep.subr.bf16.mxu0 0
    %3578 = vmatpush1.bf16.msra.mxu0 %v2144
    %3579 = vmatprep.subr.bf16.mxu0 0
    %3580 = vmatpush1.bf16.msra.mxu0 %v2145
    %3581 = vmatprep.subr.bf16.mxu0 0
    %3582 = vmatpush1.bf16.msra.mxu0 %v2146
    %3583 = vmatprep.subr.bf16.mxu0 0
    %3584 = vmatpush1.bf16.msra.mxu0 %v2147
    %3585 = vmatprep.subr.bf16.mxu0 0
    %3586 = vmatpush1.bf16.msra.mxu0 %v2148
    %3587 = vmatprep.subr.bf16.mxu0 0
    %3588 = vmatpush1.bf16.msra.mxu0 %v2149
    %3589 = vmatprep.subr.bf16.mxu0 0
    %3590 = vmatpush1.bf16.msra.mxu0 %v2150
    %3591 = vmatprep.subr.bf16.mxu0 0
    %3592 = vmatpush1.bf16.msra.mxu0 %v2151
    %3593 = vmatprep.subr.bf16.mxu0 0
    %3594 = vmatpush1.bf16.msra.mxu0 0
    %3595 = vmatprep.subr.bf16.mxu0 0
    %3596 = vmatpush1.bf16.msra.mxu0 0
    %3597 = vmatprep.subr.bf16.mxu0 0
    %3598 = vmatpush1.bf16.msra.mxu0 0
    %3599 = vmatprep.subr.bf16.mxu0 0
    %3600 = vmatpush1.bf16.msra.mxu0 0
    %3601 = vmatprep.subr.bf16.mxu0 0
    %3602 = vmatpush1.bf16.msra.mxu0 0
    %3603 = vmatprep.subr.bf16.mxu0 0
    %3604 = vmatpush1.bf16.msra.mxu0 0
    %3605 = vmatprep.subr.bf16.mxu0 0
    %3606 = vmatpush1.bf16.msra.mxu0 0
    %3607 = vmatprep.subr.bf16.mxu0 0
    %3608 = vmatpush1.bf16.msra.mxu0 0
    %3609 = vmatprep.mubr.bf16.mxu0 0
    %3610 = vmatmul.mubr.bf16.gmra.mrb[0].mxu0 %v3314
    %v3611 = vpop.f32.mrb[0].mxu0
    %v3612 = vadd.f32 %v3563, %v3611
    %v3613 = vpop.f32.mrb[0].mxu0
    %v3614 = vpop.f32.mrb[0].mxu0
    %v3615 = vadd.f32 %v3566, %v3614
    %v3616 = vpop.f32.mrb[0].mxu0
    %3617 = vmatprep.mubr.bf16.mxu0 0
    %3618 = vmatmul.mubr.bf16.gmra.mrb[0].mxu0 %v3315
    %v3619 = vpop.f32.mrb[0].mxu0
    %v3620 = vadd.f32 %v3571, %v3619
    %v3621 = vpop.f32.mrb[0].mxu0
    %v3622 = vpop.f32.mrb[0].mxu0
    %v3623 = vadd.f32 %v3574, %v3622
    %v3624 = vpop.f32.mrb[0].mxu0
    %3625 = vdwg.mxu0
    %v3626 = vadd.f32 %v3612, %v2433
    %v3627 = vadd.f32 %v3615, %v2433
    %v3628 = vadd.f32 %v3620, %v2433
    %v3629 = vadd.f32 %v3623, %v2433
    %3630 = vmatprep.subr.bf16.mxu0 0
    %3631 = vmatpush1.bf16.msra.mxu0 %v2161
    %3632 = vmatprep.subr.bf16.mxu0 0
    %3633 = vmatpush1.bf16.msra.mxu0 0
    %3634 = vmatprep.subr.bf16.mxu0 0
    %3635 = vmatpush1.bf16.msra.mxu0 0
    %3636 = vmatprep.subr.bf16.mxu0 0
    %3637 = vmatpush1.bf16.msra.mxu0 0
    %3638 = vmatprep.subr.bf16.mxu0 0
    %3639 = vmatpush1.bf16.msra.mxu0 0
    %3640 = vmatprep.subr.bf16.mxu0 0
    %3641 = vmatpush1.bf16.msra.mxu0 0
    %3642 = vmatprep.subr.bf16.mxu0 0
    %3643 = vmatpush1.bf16.msra.mxu0 0
    %3644 = vmatprep.subr.bf16.mxu0 0
    %3645 = vmatpush1.bf16.msra.mxu0 0
    %3646 = vmatprep.subr.bf16.mxu0 0
    %3647 = vmatpush1.bf16.msra.mxu0 0
    %3648 = vmatprep.subr.bf16.mxu0 0
    %3649 = vmatpush1.bf16.msra.mxu0 0
    %3650 = vmatprep.subr.bf16.mxu0 0
    %3651 = vmatpush1.bf16.msra.mxu0 0
    %3652 = vmatprep.subr.bf16.mxu0 0
    %3653 = vmatpush1.bf16.msra.mxu0 0
    %3654 = vmatprep.subr.bf16.mxu0 0
    %3655 = vmatpush1.bf16.msra.mxu0 0
    %3656 = vmatprep.subr.bf16.mxu0 0
    %3657 = vmatpush1.bf16.msra.mxu0 0
    %3658 = vmatprep.subr.bf16.mxu0 0
    %3659 = vmatpush1.bf16.msra.mxu0 0
    %3660 = vmatprep.subr.bf16.mxu0 0
    %3661 = vmatpush1.bf16.msra.mxu0 0
    %3662 = vmatprep.mubr.bf16.mxu0 0
    %3663 = vmatmul.mubr.bf16.gmra.mrb[0].mxu0 %v3319
    %v3664 = vpop.f32.mrb[0].mxu0
    %v3665 = vadd.f32 0.0, %v3664
    %v3666 = vpop.f32.mrb[0].mxu0
    %v3667 = vpop.f32.mrb[0].mxu0
    %v3668 = vadd.f32 0.0, %v3667
    %v3669 = vpop.f32.mrb[0].mxu0
    %3670 = vmatprep.mubr.bf16.mxu0 0
    %3671 = vmatmul.mubr.bf16.gmra.mrb[0].mxu0 %v3322
    %v3672 = vpop.f32.mrb[0].mxu0
    %v3673 = vadd.f32 0.0, %v3672
    %v3674 = vpop.f32.mrb[0].mxu0
    %v3675 = vpop.f32.mrb[0].mxu0
    %v3676 = vadd.f32 0.0, %v3675
    %v3677 = vpop.f32.mrb[0].mxu0
    %3678 = vdwg.mxu0
    %3679 = vmatprep.subr.bf16.mxu0 0
    %3680 = vmatpush1.bf16.msra.mxu0 %v2152
    %3681 = vmatprep.subr.bf16.mxu0 0
    %3682 = vmatpush1.bf16.msra.mxu0 %v2153
    %3683 = vmatprep.subr.bf16.mxu0 0
    %3684 = vmatpush1.bf16.msra.mxu0 %v2154
    %3685 = vmatprep.subr.bf16.mxu0 0
    %3686 = vmatpush1.bf16.msra.mxu0 %v2155
    %3687 = vmatprep.subr.bf16.mxu0 0
    %3688 = vmatpush1.bf16.msra.mxu0 %v2156
    %3689 = vmatprep.subr.bf16.mxu0 0
    %3690 = vmatpush1.bf16.msra.mxu0 %v2157
    %3691 = vmatprep.subr.bf16.mxu0 0
    %3692 = vmatpush1.bf16.msra.mxu0 %v2158
    %3693 = vmatprep.subr.bf16.mxu0 0
    %3694 = vmatpush1.bf16.msra.mxu0 %v2159
    %3695 = vmatprep.subr.bf16.mxu0 0
    %3696 = vmatpush1.bf16.msra.mxu0 0
    %3697 = vmatprep.subr.bf16.mxu0 0
    %3698 = vmatpush1.bf16.msra.mxu0 0
    %3699 = vmatprep.subr.bf16.mxu0 0
    %3700 = vmatpush1.bf16.msra.mxu0 0
    %3701 = vmatprep.subr.bf16.mxu0 0
    %3702 = vmatpush1.bf16.msra.mxu0 0
    %3703 = vmatprep.subr.bf16.mxu0 0
    %3704 = vmatpush1.bf16.msra.mxu0 0
    %3705 = vmatprep.subr.bf16.mxu0 0
    %3706 = vmatpush1.bf16.msra.mxu0 0
    %3707 = vmatprep.subr.bf16.mxu0 0
    %3708 = vmatpush1.bf16.msra.mxu0 0
    %3709 = vmatprep.subr.bf16.mxu0 0
    %3710 = vmatpush1.bf16.msra.mxu0 0
    %3711 = vmatprep.mubr.bf16.mxu0 0
    %3712 = vmatmul.mubr.bf16.gmra.mrb[0].mxu0 %v3314
    %v3713 = vpop.f32.mrb[0].mxu0
    %v3714 = vadd.f32 %v3665, %v3713
    %v3715 = vpop.f32.mrb[0].mxu0
    %v3716 = vpop.f32.mrb[0].mxu0
    %v3717 = vadd.f32 %v3668, %v3716
    %v3718 = vpop.f32.mrb[0].mxu0
    %3719 = vmatprep.mubr.bf16.mxu0 0
    %3720 = vmatmul.mubr.bf16.gmra.mrb[0].mxu0 %v3315
    %v3721 = vpop.f32.mrb[0].mxu0
    %v3722 = vadd.f32 %v3673, %v3721
    %v3723 = vpop.f32.mrb[0].mxu0
    %v3724 = vpop.f32.mrb[0].mxu0
    %v3725 = vadd.f32 %v3676, %v3724
    %v3726 = vpop.f32.mrb[0].mxu0
    %3727 = vdwg.mxu0
    %v3728 = vadd.f32 %v3714, %v2520
    %v3729 = vadd.f32 %v3717, %v2520
    %v3730 = vadd.f32 %v3722, %v2520
    %v3731 = vadd.f32 %v3725, %v2520
    %v3733 = vsel %vm2524, %v3422, 0
    %v3736 = vsel %vm2524, %v3423, 0
    %v3739 = vsel %vm2524, %v3524, 0
    %v3742 = vsel %vm2524, %v3525, 0
    %3744 = vmatprep.subr.mxu0 0.0
    %3745 = vmatpush1.xpose.msra.mxu0 %v3739
    %3746 = vmatprep.subr.mxu0 0.0
    %3747 = vmatpush1.xpose.msra.mxu0 %v3742
    %3748 = vmatprep.subr.mxu0 0.0
    %3749 = vmatpush1.xpose.msra.mxu0 0.0
    %3750 = vmatprep.subr.mxu0 0.0
    %3751 = vmatpush1.xpose.msra.mxu0 0.0
    %3752 = vmatprep.subr.mxu0 0.0
    %3753 = vmatpush1.xpose.msra.mxu0 0.0
    %3754 = vmatprep.subr.mxu0 0.0
    %3755 = vmatpush1.xpose.msra.mxu0 0.0
    %3756 = vmatprep.subr.mxu0 0.0
    %3757 = vmatpush1.xpose.msra.mxu0 0.0
    %3758 = vmatprep.subr.mxu0 0.0
    %3759 = vmatpush1.xpose.msra.mxu0 0.0
    %3760 = vmatprep.subr.mxu0 0.0
    %3761 = vmatpush1.xpose.msra.mxu0 0.0
    %3762 = vmatprep.subr.mxu0 0.0
    %3763 = vmatpush1.xpose.msra.mxu0 0.0
    %3764 = vmatprep.subr.mxu0 0.0
    %3765 = vmatpush1.xpose.msra.mxu0 0.0
    %3766 = vmatprep.subr.mxu0 0.0
    %3767 = vmatpush1.xpose.msra.mxu0 0.0
    %3768 = vmatprep.subr.mxu0 0.0
    %3769 = vmatpush1.xpose.msra.mxu0 0.0
    %3770 = vmatprep.subr.mxu0 0.0
    %3771 = vmatpush1.xpose.msra.mxu0 0.0
    %3772 = vmatprep.subr.mxu0 0.0
    %3773 = vmatpush1.xpose.msra.mxu0 0.0
    %3774 = vmatprep.subr.mxu0 0.0
    %3775 = vmatpush1.xpose.msra.mxu0 0.0
    %3776 = vmatprep.subr.mxu0 0.0
    %3777 = vmatpush1.xpose.msra.mxu0 0.0
    %3778 = vmatprep.subr.mxu0 0.0
    %3779 = vmatpush1.xpose.msra.mxu0 0.0
    %3780 = vmatprep.subr.mxu0 0.0
    %3781 = vmatpush1.xpose.msra.mxu0 0.0
    %3782 = vmatprep.subr.mxu0 0.0
    %3783 = vmatpush1.xpose.msra.mxu0 0.0
    %3784 = vmatprep.subr.mxu0 0.0
    %3785 = vmatpush1.xpose.msra.mxu0 0.0
    %3786 = vmatprep.subr.mxu0 0.0
    %3787 = vmatpush1.xpose.msra.mxu0 0.0
    %3788 = vmatprep.subr.mxu0 0.0
    %3789 = vmatpush1.xpose.msra.mxu0 0.0
    %3790 = vmatprep.subr.mxu0 0.0
    %3791 = vmatpush1.xpose.msra.mxu0 0.0
    %3792 = vmatprep.subr.mxu0 0.0
    %3793 = vmatpush1.xpose.msra.mxu0 0.0
    %3794 = vmatprep.subr.mxu0 0.0
    %3795 = vmatpush1.xpose.msra.mxu0 0.0
    %3796 = vmatprep.subr.mxu0 0.0
    %3797 = vmatpush1.xpose.msra.mxu0 0.0
    %3798 = vmatprep.subr.mxu0 0.0
    %3799 = vmatpush1.xpose.msra.mxu0 0.0
    %3800 = vmatprep.subr.mxu0 0.0
    %3801 = vmatpush1.xpose.msra.mxu0 0.0
    %3802 = vmatprep.subr.mxu0 0.0
    %3803 = vmatpush1.xpose.msra.mxu0 0.0
    %3804 = vmatprep.subr.mxu0 0.0
    %3805 = vmatpush1.xpose.msra.mxu0 0.0
    %3806 = vmatprep.subr.mxu0 0.0
    %3807 = vmatpush1.xpose.msra.mxu0 0.0
    %3808 = vmatprep.mubr.f32.mxu0 0.0
    %3809 = vmatmul.mubr.f32.gmra.mrb[0].mxu0 %v3733
    %v3810 = vpop.f32.mrb[0].mxu0
    %v3811 = vadd.f32 0.0, %v3810
    %v3812 = vpop.f32.mrb[0].mxu0
    %3813 = vmatprep.mubr.f32.mxu0 0.0
    %3814 = vmatmul.mubr.f32.gmra.mrb[0].mxu0 %v3736
    %v3815 = vpop.f32.mrb[0].mxu0
    %v3816 = vadd.f32 0.0, %v3815
    %v3817 = vpop.f32.mrb[0].mxu0
    %3818 = vdwg.mxu0
    %v3820 = vsel %vm2524, %v3424, 0
    %v3823 = vsel %vm2524, %v3425, 0
    %v3826 = vsel %vm2524, %v3526, 0
    %v3829 = vsel %vm2524, %v3527, 0
    %3831 = vmatprep.subr.mxu0 0.0
    %3832 = vmatpush1.xpose.msra.mxu0 %v3826
    %3833 = vmatprep.subr.mxu0 0.0
    %3834 = vmatpush1.xpose.msra.mxu0 %v3829
    %3835 = vmatprep.subr.mxu0 0.0
    %3836 = vmatpush1.xpose.msra.mxu0 0.0
    %3837 = vmatprep.subr.mxu0 0.0
    %3838 = vmatpush1.xpose.msra.mxu0 0.0
    %3839 = vmatprep.subr.mxu0 0.0
    %3840 = vmatpush1.xpose.msra.mxu0 0.0
    %3841 = vmatprep.subr.mxu0 0.0
    %3842 = vmatpush1.xpose.msra.mxu0 0.0
    %3843 = vmatprep.subr.mxu0 0.0
    %3844 = vmatpush1.xpose.msra.mxu0 0.0
    %3845 = vmatprep.subr.mxu0 0.0
    %3846 = vmatpush1.xpose.msra.mxu0 0.0
    %3847 = vmatprep.subr.mxu0 0.0
    %3848 = vmatpush1.xpose.msra.mxu0 0.0
    %3849 = vmatprep.subr.mxu0 0.0
    %3850 = vmatpush1.xpose.msra.mxu0 0.0
    %3851 = vmatprep.subr.mxu0 0.0
    %3852 = vmatpush1.xpose.msra.mxu0 0.0
    %3853 = vmatprep.subr.mxu0 0.0
    %3854 = vmatpush1.xpose.msra.mxu0 0.0
    %3855 = vmatprep.subr.mxu0 0.0
    %3856 = vmatpush1.xpose.msra.mxu0 0.0
    %3857 = vmatprep.subr.mxu0 0.0
    %3858 = vmatpush1.xpose.msra.mxu0 0.0
    %3859 = vmatprep.subr.mxu0 0.0
    %3860 = vmatpush1.xpose.msra.mxu0 0.0
    %3861 = vmatprep.subr.mxu0 0.0
    %3862 = vmatpush1.xpose.msra.mxu0 0.0
    %3863 = vmatprep.subr.mxu0 0.0
    %3864 = vmatpush1.xpose.msra.mxu0 0.0
    %3865 = vmatprep.subr.mxu0 0.0
    %3866 = vmatpush1.xpose.msra.mxu0 0.0
    %3867 = vmatprep.subr.mxu0 0.0
    %3868 = vmatpush1.xpose.msra.mxu0 0.0
    %3869 = vmatprep.subr.mxu0 0.0
    %3870 = vmatpush1.xpose.msra.mxu0 0.0
    %3871 = vmatprep.subr.mxu0 0.0
    %3872 = vmatpush1.xpose.msra.mxu0 0.0
    %3873 = vmatprep.subr.mxu0 0.0
    %3874 = vmatpush1.xpose.msra.mxu0 0.0
    %3875 = vmatprep.subr.mxu0 0.0
    %3876 = vmatpush1.xpose.msra.mxu0 0.0
    %3877 = vmatprep.subr.mxu0 0.0
    %3878 = vmatpush1.xpose.msra.mxu0 0.0
    %3879 = vmatprep.subr.mxu0 0.0
    %3880 = vmatpush1.xpose.msra.mxu0 0.0
    %3881 = vmatprep.subr.mxu0 0.0
    %3882 = vmatpush1.xpose.msra.mxu0 0.0
    %3883 = vmatprep.subr.mxu0 0.0
    %3884 = vmatpush1.xpose.msra.mxu0 0.0
    %3885 = vmatprep.subr.mxu0 0.0
    %3886 = vmatpush1.xpose.msra.mxu0 0.0
    %3887 = vmatprep.subr.mxu0 0.0
    %3888 = vmatpush1.xpose.msra.mxu0 0.0
    %3889 = vmatprep.subr.mxu0 0.0
    %3890 = vmatpush1.xpose.msra.mxu0 0.0
    %3891 = vmatprep.subr.mxu0 0.0
    %3892 = vmatpush1.xpose.msra.mxu0 0.0
    %3893 = vmatprep.subr.mxu0 0.0
    %3894 = vmatpush1.xpose.msra.mxu0 0.0
    %3895 = vmatprep.mubr.f32.mxu0 0.0
    %3896 = vmatmul.mubr.f32.gmra.mrb[0].mxu0 %v3820
    %v3897 = vpop.f32.mrb[0].mxu0
    %v3898 = vadd.f32 0.0, %v3897
    %v3899 = vpop.f32.mrb[0].mxu0
    %3900 = vmatprep.mubr.f32.mxu0 0.0
    %3901 = vmatmul.mubr.f32.gmra.mrb[0].mxu0 %v3823
    %v3902 = vpop.f32.mrb[0].mxu0
    %v3903 = vadd.f32 0.0, %v3902
    %v3904 = vpop.f32.mrb[0].mxu0
    %3905 = vdwg.mxu0
    %v3906 = vsel %vm195, %v3811, -inf
    %3907 = vmax.xlane.f32.xlu0 %v3906
    %v3908 = vpop.xlane.xlu0 %3907
    %v3909 = vsel %vm195, %v3816, -inf
    %3910 = vmax.xlane.f32.xlu0 %v3909
    %v3911 = vpop.xlane.xlu0 %3910
    %v3912 = vsel %vm195, %v3898, -inf
    %3913 = vmax.xlane.f32.xlu0 %v3912
    %v3914 = vpop.xlane.xlu0 %3913
    %v3915 = vsel %vm195, %v3903, -inf
    %3916 = vmax.xlane.f32.xlu0 %v3915
    %v3917 = vpop.xlane.xlu0 %3916
    %v3918 = vsub.f32 %v3811, %v3908
    %v3919 = vsub.f32 %v3816, %v3911
    %v3920 = vsub.f32 %v3898, %v3914
    %v3921 = vsub.f32 %v3903, %v3917
    %v3922 = vmul.f32 %v3918, 1.442695
    %v3923 = vpow.pop %v3922
    %v3924 = vmul.f32 %v3919, 1.442695
    %v3925 = vpow.pop %v3924
    %v3926 = vmul.f32 %v3920, 1.442695
    %v3927 = vpow.pop %v3926
    %v3928 = vmul.f32 %v3921, 1.442695
    %v3929 = vpow.pop %v3928
    %v3930 = vsel %vm195, %v3923, 0.0
    %3931 = vadd.xlane.f32.xlu0 %v3930
    %v3932 = vpop.xlane.xlu0 %3931
    %v3933 = vsel %vm195, %v3925, 0.0
    %3934 = vadd.xlane.f32.xlu0 %v3933
    %v3935 = vpop.xlane.xlu0 %3934
    %v3936 = vsel %vm195, %v3927, 0.0
    %3937 = vadd.xlane.f32.xlu0 %v3936
    %v3938 = vpop.xlane.xlu0 %3937
    %v3939 = vsel %vm195, %v3929, 0.0
    %3940 = vadd.xlane.f32.xlu0 %v3939
    %v3941 = vpop.xlane.xlu0 %3940
    %v3942 = vrcp.pop %v3932
    %v3943 = vrcp.pop %v3935
    %v3944 = vrcp.pop %v3938
    %v3945 = vrcp.pop %v3941
    %v3946 = vmul.f32 %v3923, %v3942
    %v3947 = vmul.f32 %v3925, %v3943
    %v3948 = vmul.f32 %v3927, %v3944
    %v3949 = vmul.f32 %v3929, %v3945
    %v3951 = vsel %vm195, %v3946, 0
    %v3954 = vsel %vm195, %v3947, 0
    %3956 = vmatprep.subr.mxu0 0.0
    %3957 = vmatpush1.msra.mxu0 %v3626
    %3958 = vmatprep.subr.mxu0 0.0
    %3959 = vmatpush1.msra.mxu0 %v3627
    %3960 = vmatprep.subr.mxu0 0.0
    %3961 = vmatpush1.msra.mxu0 0.0
    %3962 = vmatprep.subr.mxu0 0.0
    %3963 = vmatpush1.msra.mxu0 0.0
    %3964 = vmatprep.subr.mxu0 0.0
    %3965 = vmatpush1.msra.mxu0 0.0
    %3966 = vmatprep.subr.mxu0 0.0
    %3967 = vmatpush1.msra.mxu0 0.0
    %3968 = vmatprep.subr.mxu0 0.0
    %3969 = vmatpush1.msra.mxu0 0.0
    %3970 = vmatprep.subr.mxu0 0.0
    %3971 = vmatpush1.msra.mxu0 0.0
    %3972 = vmatprep.subr.mxu0 0.0
    %3973 = vmatpush1.msra.mxu0 0.0
    %3974 = vmatprep.subr.mxu0 0.0
    %3975 = vmatpush1.msra.mxu0 0.0
    %3976 = vmatprep.subr.mxu0 0.0
    %3977 = vmatpush1.msra.mxu0 0.0
    %3978 = vmatprep.subr.mxu0 0.0
    %3979 = vmatpush1.msra.mxu0 0.0
    %3980 = vmatprep.subr.mxu0 0.0
    %3981 = vmatpush1.msra.mxu0 0.0
    %3982 = vmatprep.subr.mxu0 0.0
    %3983 = vmatpush1.msra.mxu0 0.0
    %3984 = vmatprep.subr.mxu0 0.0
    %3985 = vmatpush1.msra.mxu0 0.0
    %3986 = vmatprep.subr.mxu0 0.0
    %3987 = vmatpush1.msra.mxu0 0.0
    %3988 = vmatprep.subr.mxu0 0.0
    %3989 = vmatpush1.msra.mxu0 0.0
    %3990 = vmatprep.subr.mxu0 0.0
    %3991 = vmatpush1.msra.mxu0 0.0
    %3992 = vmatprep.subr.mxu0 0.0
    %3993 = vmatpush1.msra.mxu0 0.0
    %3994 = vmatprep.subr.mxu0 0.0
    %3995 = vmatpush1.msra.mxu0 0.0
    %3996 = vmatprep.subr.mxu0 0.0
    %3997 = vmatpush1.msra.mxu0 0.0
    %3998 = vmatprep.subr.mxu0 0.0
    %3999 = vmatpush1.msra.mxu0 0.0
    %4000 = vmatprep.subr.mxu0 0.0
    %4001 = vmatpush1.msra.mxu0 0.0
    %4002 = vmatprep.subr.mxu0 0.0
    %4003 = vmatpush1.msra.mxu0 0.0
    %4004 = vmatprep.subr.mxu0 0.0
    %4005 = vmatpush1.msra.mxu0 0.0
    %4006 = vmatprep.subr.mxu0 0.0
    %4007 = vmatpush1.msra.mxu0 0.0
    %4008 = vmatprep.subr.mxu0 0.0
    %4009 = vmatpush1.msra.mxu0 0.0
    %4010 = vmatprep.subr.mxu0 0.0
    %4011 = vmatpush1.msra.mxu0 0.0
    %4012 = vmatprep.subr.mxu0 0.0
    %4013 = vmatpush1.msra.mxu0 0.0
    %4014 = vmatprep.subr.mxu0 0.0
    %4015 = vmatpush1.msra.mxu0 0.0
    %4016 = vmatprep.subr.mxu0 0.0
    %4017 = vmatpush1.msra.mxu0 0.0
    %4018 = vmatprep.subr.mxu0 0.0
    %4019 = vmatpush1.msra.mxu0 0.0
    %4020 = vmatprep.mubr.f32.mxu0 0.0
    %4021 = vmatmul.mubr.f32.gmra.mrb[0].mxu0 %v3951
    %v4022 = vpop.f32.mrb[0].mxu0
    %v4023 = vadd.f32 0.0, %v4022
    %v4024 = vpop.f32.mrb[0].mxu0
    %4025 = vmatprep.mubr.f32.mxu0 0.0
    %4026 = vmatmul.mubr.f32.gmra.mrb[0].mxu0 %v3954
    %v4027 = vpop.f32.mrb[0].mxu0
    %v4028 = vadd.f32 0.0, %v4027
    %v4029 = vpop.f32.mrb[0].mxu0
    %4030 = vdwg.mxu0
    %v4032 = vsel %vm195, %v3948, 0
    %v4035 = vsel %vm195, %v3949, 0
    %4037 = vmatprep.subr.mxu0 0.0
    %4038 = vmatpush1.msra.mxu0 %v3628
    %4039 = vmatprep.subr.mxu0 0.0
    %4040 = vmatpush1.msra.mxu0 %v3629
    %4041 = vmatprep.subr.mxu0 0.0
    %4042 = vmatpush1.msra.mxu0 0.0
    %4043 = vmatprep.subr.mxu0 0.0
    %4044 = vmatpush1.msra.mxu0 0.0
    %4045 = vmatprep.subr.mxu0 0.0
    %4046 = vmatpush1.msra.mxu0 0.0
    %4047 = vmatprep.subr.mxu0 0.0
    %4048 = vmatpush1.msra.mxu0 0.0
    %4049 = vmatprep.subr.mxu0 0.0
    %4050 = vmatpush1.msra.mxu0 0.0
    %4051 = vmatprep.subr.mxu0 0.0
    %4052 = vmatpush1.msra.mxu0 0.0
    %4053 = vmatprep.subr.mxu0 0.0
    %4054 = vmatpush1.msra.mxu0 0.0
    %4055 = vmatprep.subr.mxu0 0.0
    %4056 = vmatpush1.msra.mxu0 0.0
    %4057 = vmatprep.subr.mxu0 0.0
    %4058 = vmatpush1.msra.mxu0 0.0
    %4059 = vmatprep.subr.mxu0 0.0
    %4060 = vmatpush1.msra.mxu0 0.0
    %4061 = vmatprep.subr.mxu0 0.0
    %4062 = vmatpush1.msra.mxu0 0.0
    %4063 = vmatprep.subr.mxu0 0.0
    %4064 = vmatpush1.msra.mxu0 0.0
    %4065 = vmatprep.subr.mxu0 0.0
    %4066 = vmatpush1.msra.mxu0 0.0
    %4067 = vmatprep.subr.mxu0 0.0
    %4068 = vmatpush1.msra.mxu0 0.0
    %4069 = vmatprep.subr.mxu0 0.0
    %4070 = vmatpush1.msra.mxu0 0.0
    %4071 = vmatprep.subr.mxu0 0.0
    %4072 = vmatpush1.msra.mxu0 0.0
    %4073 = vmatprep.subr.mxu0 0.0
    %4074 = vmatpush1.msra.mxu0 0.0
    %4075 = vmatprep.subr.mxu0 0.0
    %4076 = vmatpush1.msra.mxu0 0.0
    %4077 = vmatprep.subr.mxu0 0.0
    %4078 = vmatpush1.msra.mxu0 0.0
    %4079 = vmatprep.subr.mxu0 0.0
    %4080 = vmatpush1.msra.mxu0 0.0
    %4081 = vmatprep.subr.mxu0 0.0
    %4082 = vmatpush1.msra.mxu0 0.0
    %4083 = vmatprep.subr.mxu0 0.0
    %4084 = vmatpush1.msra.mxu0 0.0
    %4085 = vmatprep.subr.mxu0 0.0
    %4086 = vmatpush1.msra.mxu0 0.0
    %4087 = vmatprep.subr.mxu0 0.0
    %4088 = vmatpush1.msra.mxu0 0.0
    %4089 = vmatprep.subr.mxu0 0.0
    %4090 = vmatpush1.msra.mxu0 0.0
    %4091 = vmatprep.subr.mxu0 0.0
    %4092 = vmatpush1.msra.mxu0 0.0
    %4093 = vmatprep.subr.mxu0 0.0
    %4094 = vmatpush1.msra.mxu0 0.0
    %4095 = vmatprep.subr.mxu0 0.0
    %4096 = vmatpush1.msra.mxu0 0.0
    %4097 = vmatprep.subr.mxu0 0.0
    %4098 = vmatpush1.msra.mxu0 0.0
    %4099 = vmatprep.subr.mxu0 0.0
    %4100 = vmatpush1.msra.mxu0 0.0
    %4101 = vmatprep.mubr.f32.mxu0 0.0
    %4102 = vmatmul.mubr.f32.gmra.mrb[0].mxu0 %v4032
    %v4103 = vpop.f32.mrb[0].mxu0
    %v4104 = vadd.f32 0.0, %v4103
    %v4105 = vpop.f32.mrb[0].mxu0
    %4106 = vmatprep.mubr.f32.mxu0 0.0
    %4107 = vmatmul.mubr.f32.gmra.mrb[0].mxu0 %v4035
    %v4108 = vpop.f32.mrb[0].mxu0
    %v4109 = vadd.f32 0.0, %v4108
    %v4110 = vpop.f32.mrb[0].mxu0
    %4111 = vdwg.mxu0
    %4112 = vmatprep.subr.mxu0 0.0
    %4113 = vmatpush1.msra.mxu0 %v3728
    %4114 = vmatprep.subr.mxu0 0.0
    %4115 = vmatpush1.msra.mxu0 %v3729
    %4116 = vmatprep.subr.mxu0 0.0
    %4117 = vmatpush1.msra.mxu0 0.0
    %4118 = vmatprep.subr.mxu0 0.0
    %4119 = vmatpush1.msra.mxu0 0.0
    %4120 = vmatprep.subr.mxu0 0.0
    %4121 = vmatpush1.msra.mxu0 0.0
    %4122 = vmatprep.subr.mxu0 0.0
    %4123 = vmatpush1.msra.mxu0 0.0
    %4124 = vmatprep.subr.mxu0 0.0
    %4125 = vmatpush1.msra.mxu0 0.0
    %4126 = vmatprep.subr.mxu0 0.0
    %4127 = vmatpush1.msra.mxu0 0.0
    %4128 = vmatprep.subr.mxu0 0.0
    %4129 = vmatpush1.msra.mxu0 0.0
    %4130 = vmatprep.subr.mxu0 0.0
    %4131 = vmatpush1.msra.mxu0 0.0
    %4132 = vmatprep.subr.mxu0 0.0
    %4133 = vmatpush1.msra.mxu0 0.0
    %4134 = vmatprep.subr.mxu0 0.0
    %4135 = vmatpush1.msra.mxu0 0.0
    %4136 = vmatprep.subr.mxu0 0.0
    %4137 = vmatpush1.msra.mxu0 0.0
    %4138 = vmatprep.subr.mxu0 0.0
    %4139 = vmatpush1.msra.mxu0 0.0
    %4140 = vmatprep.subr.mxu0 0.0
    %4141 = vmatpush1.msra.mxu0 0.0
    %4142 = vmatprep.subr.mxu0 0.0
    %4143 = vmatpush1.msra.mxu0 0.0
    %4144 = vmatprep.subr.mxu0 0.0
    %4145 = vmatpush1.msra.mxu0 0.0
    %4146 = vmatprep.subr.mxu0 0.0
    %4147 = vmatpush1.msra.mxu0 0.0
    %4148 = vmatprep.subr.mxu0 0.0
    %4149 = vmatpush1.msra.mxu0 0.0
    %4150 = vmatprep.subr.mxu0 0.0
    %4151 = vmatpush1.msra.mxu0 0.0
    %4152 = vmatprep.subr.mxu0 0.0
    %4153 = vmatpush1.msra.mxu0 0.0
    %4154 = vmatprep.subr.mxu0 0.0
    %4155 = vmatpush1.msra.mxu0 0.0
    %4156 = vmatprep.subr.mxu0 0.0
    %4157 = vmatpush1.msra.mxu0 0.0
    %4158 = vmatprep.subr.mxu0 0.0
    %4159 = vmatpush1.msra.mxu0 0.0
    %4160 = vmatprep.subr.mxu0 0.0
    %4161 = vmatpush1.msra.mxu0 0.0
    %4162 = vmatprep.subr.mxu0 0.0
    %4163 = vmatpush1.msra.mxu0 0.0
    %4164 = vmatprep.subr.mxu0 0.0
    %4165 = vmatpush1.msra.mxu0 0.0
    %4166 = vmatprep.subr.mxu0 0.0
    %4167 = vmatpush1.msra.mxu0 0.0
    %4168 = vmatprep.subr.mxu0 0.0
    %4169 = vmatpush1.msra.mxu0 0.0
    %4170 = vmatprep.subr.mxu0 0.0
    %4171 = vmatpush1.msra.mxu0 0.0
    %4172 = vmatprep.subr.mxu0 0.0
    %4173 = vmatpush1.msra.mxu0 0.0
    %4174 = vmatprep.subr.mxu0 0.0
    %4175 = vmatpush1.msra.mxu0 0.0
    %4176 = vmatprep.mubr.f32.mxu0 0.0
    %4177 = vmatmul.mubr.f32.gmra.mrb[0].mxu0 %v3951
    %v4178 = vpop.f32.mrb[0].mxu0
    %v4179 = vadd.f32 0.0, %v4178
    %v4180 = vpop.f32.mrb[0].mxu0
    %4181 = vmatprep.mubr.f32.mxu0 0.0
    %4182 = vmatmul.mubr.f32.gmra.mrb[0].mxu0 %v3954
    %v4183 = vpop.f32.mrb[0].mxu0
    %v4184 = vadd.f32 0.0, %v4183
    %v4185 = vpop.f32.mrb[0].mxu0
    %4186 = vdwg.mxu0
    %4187 = vmatprep.subr.mxu0 0.0
    %4188 = vmatpush1.msra.mxu0 %v3730
    %4189 = vmatprep.subr.mxu0 0.0
    %4190 = vmatpush1.msra.mxu0 %v3731
    %4191 = vmatprep.subr.mxu0 0.0
    %4192 = vmatpush1.msra.mxu0 0.0
    %4193 = vmatprep.subr.mxu0 0.0
    %4194 = vmatpush1.msra.mxu0 0.0
    %4195 = vmatprep.subr.mxu0 0.0
    %4196 = vmatpush1.msra.mxu0 0.0
    %4197 = vmatprep.subr.mxu0 0.0
    %4198 = vmatpush1.msra.mxu0 0.0
    %4199 = vmatprep.subr.mxu0 0.0
    %4200 = vmatpush1.msra.mxu0 0.0
    %4201 = vmatprep.subr.mxu0 0.0
    %4202 = vmatpush1.msra.mxu0 0.0
    %4203 = vmatprep.subr.mxu0 0.0
    %4204 = vmatpush1.msra.mxu0 0.0
    %4205 = vmatprep.subr.mxu0 0.0
    %4206 = vmatpush1.msra.mxu0 0.0
    %4207 = vmatprep.subr.mxu0 0.0
    %4208 = vmatpush1.msra.mxu0 0.0
    %4209 = vmatprep.subr.mxu0 0.0
    %4210 = vmatpush1.msra.mxu0 0.0
    %4211 = vmatprep.subr.mxu0 0.0
    %4212 = vmatpush1.msra.mxu0 0.0
    %4213 = vmatprep.subr.mxu0 0.0
    %4214 = vmatpush1.msra.mxu0 0.0
    %4215 = vmatprep.subr.mxu0 0.0
    %4216 = vmatpush1.msra.mxu0 0.0
    %4217 = vmatprep.subr.mxu0 0.0
    %4218 = vmatpush1.msra.mxu0 0.0
    %4219 = vmatprep.subr.mxu0 0.0
    %4220 = vmatpush1.msra.mxu0 0.0
    %4221 = vmatprep.subr.mxu0 0.0
    %4222 = vmatpush1.msra.mxu0 0.0
    %4223 = vmatprep.subr.mxu0 0.0
    %4224 = vmatpush1.msra.mxu0 0.0
    %4225 = vmatprep.subr.mxu0 0.0
    %4226 = vmatpush1.msra.mxu0 0.0
    %4227 = vmatprep.subr.mxu0 0.0
    %4228 = vmatpush1.msra.mxu0 0.0
    %4229 = vmatprep.subr.mxu0 0.0
    %4230 = vmatpush1.msra.mxu0 0.0
    %4231 = vmatprep.subr.mxu0 0.0
    %4232 = vmatpush1.msra.mxu0 0.0
    %4233 = vmatprep.subr.mxu0 0.0
    %4234 = vmatpush1.msra.mxu0 0.0
    %4235 = vmatprep.subr.mxu0 0.0
    %4236 = vmatpush1.msra.mxu0 0.0
    %4237 = vmatprep.subr.mxu0 0.0
    %4238 = vmatpush1.msra.mxu0 0.0
    %4239 = vmatprep.subr.mxu0 0.0
    %4240 = vmatpush1.msra.mxu0 0.0
    %4241 = vmatprep.subr.mxu0 0.0
    %4242 = vmatpush1.msra.mxu0 0.0
    %4243 = vmatprep.subr.mxu0 0.0
    %4244 = vmatpush1.msra.mxu0 0.0
    %4245 = vmatprep.subr.mxu0 0.0
    %4246 = vmatpush1.msra.mxu0 0.0
    %4247 = vmatprep.subr.mxu0 0.0
    %4248 = vmatpush1.msra.mxu0 0.0
    %4249 = vmatprep.subr.mxu0 0.0
    %4250 = vmatpush1.msra.mxu0 0.0
    %4251 = vmatprep.mubr.f32.mxu0 0.0
    %4252 = vmatmul.mubr.f32.gmra.mrb[0].mxu0 %v4032
    %v4253 = vpop.f32.mrb[0].mxu0
    %v4254 = vadd.f32 0.0, %v4253
    %v4255 = vpop.f32.mrb[0].mxu0
    %4256 = vmatprep.mubr.f32.mxu0 0.0
    %4257 = vmatmul.mubr.f32.gmra.mrb[0].mxu0 %v4035
    %v4258 = vpop.f32.mrb[0].mxu0
    %v4259 = vadd.f32 0.0, %v4258
    %v4260 = vpop.f32.mrb[0].mxu0
    %4261 = vdwg.mxu0
    %v4262 = vmul.f32 %v2994, %v4023
    %v4263 = vmul.f32 %v2994, %v4028
    %v4264 = vmul.f32 %v2994, %v4104
    %v4265 = vmul.f32 %v2994, %v4109
    %v4266 = vadd.f32 %v4262, %v3310
    %v4267 = vadd.f32 %v4263, %v3311
    %v4268 = vadd.f32 %v4264, %v3312
    %v4269 = vadd.f32 %v4265, %v3313
    %v4270 = vmul.f32 %v2994, %v4179
    %v4271 = vmul.f32 %v2994, %v4184
    %v4272 = vmul.f32 %v2994, %v4254
    %v4273 = vmul.f32 %v2994, %v4259
    %v4274 = vadd.f32 %v4270, %v263
    %v4275 = vadd.f32 %v4271, %v264
    %v4276 = vadd.f32 %v4272, %v265
    %v4277 = vadd.f32 %v4273, %v266
    %v4278 = vld [vmem:[#allocation2 + $0x5b0] sm:$0xff]
    %v4279 = vld [vmem:[#allocation2 + $0x5c0] sm:$0xff]
    %v4280 = vld [vmem:[#allocation2 + $0x5d0] sm:$0xff]
    %v4281 = vld [vmem:[#allocation2 + $0x5e0] sm:$0xff]
    %v4282 = vld [vmem:[#allocation2 + $0x5f0] sm:$0xff]
    %v4283 = vld [vmem:[#allocation2 + $0x600] sm:$0xff]
    %v4284 = vld [vmem:[#allocation2 + $0x610] sm:$0xff]
    %v4285 = vld [vmem:[#allocation2 + $0x620] sm:$0xff]
    %v4286 = vpack.c.bf16 %v4267, %v4266
    %v4287 = vpack.c.bf16 %v4269, %v4268
    %v4288 = vld [vmem:[#allocation2 + $0x630] sm:$0xff]
    %v4289 = vpack.c.bf16 %v4275, %v4274
    %v4290 = vpack.c.bf16 %v4277, %v4276
    %v4292 = vsel %vm195, %v4289, 0
    %v4295 = vsel %vm195, %v4290, 0
    %4297 = vmatprep.subr.bf16.mxu0 0
    %4298 = vmatpush1.bf16.msra.mxu0 %v4288
    %4299 = vmatprep.subr.bf16.mxu0 0
    %4300 = vmatpush1.bf16.msra.mxu0 0
    %4301 = vmatprep.subr.bf16.mxu0 0
    %4302 = vmatpush1.bf16.msra.mxu0 0
    %4303 = vmatprep.subr.bf16.mxu0 0
    %4304 = vmatpush1.bf16.msra.mxu0 0
    %4305 = vmatprep.subr.bf16.mxu0 0
    %4306 = vmatpush1.bf16.msra.mxu0 0
    %4307 = vmatprep.subr.bf16.mxu0 0
    %4308 = vmatpush1.bf16.msra.mxu0 0
    %4309 = vmatprep.subr.bf16.mxu0 0
    %4310 = vmatpush1.bf16.msra.mxu0 0
    %4311 = vmatprep.subr.bf16.mxu0 0
    %4312 = vmatpush1.bf16.msra.mxu0 0
    %4313 = vmatprep.subr.bf16.mxu0 0
    %4314 = vmatpush1.bf16.msra.mxu0 0
    %4315 = vmatprep.subr.bf16.mxu0 0
    %4316 = vmatpush1.bf16.msra.mxu0 0
    %4317 = vmatprep.subr.bf16.mxu0 0
    %4318 = vmatpush1.bf16.msra.mxu0 0
    %4319 = vmatprep.subr.bf16.mxu0 0
    %4320 = vmatpush1.bf16.msra.mxu0 0
    %4321 = vmatprep.subr.bf16.mxu0 0
    %4322 = vmatpush1.bf16.msra.mxu0 0
    %4323 = vmatprep.subr.bf16.mxu0 0
    %4324 = vmatpush1.bf16.msra.mxu0 0
    %4325 = vmatprep.subr.bf16.mxu0 0
    %4326 = vmatpush1.bf16.msra.mxu0 0
    %4327 = vmatprep.subr.bf16.mxu0 0
    %4328 = vmatpush1.bf16.msra.mxu0 0
    %4329 = vmatprep.mubr.bf16.mxu0 0
    %4330 = vmatmul.mubr.bf16.gmra.mrb[0].mxu0 %v4292
    %v4331 = vpop.f32.mrb[0].mxu0
    %v4332 = vadd.f32 0.0, %v4331
    %v4333 = vpop.f32.mrb[0].mxu0
    %v4334 = vpop.f32.mrb[0].mxu0
    %v4335 = vadd.f32 0.0, %v4334
    %v4336 = vpop.f32.mrb[0].mxu0
    %4337 = vmatprep.mubr.bf16.mxu0 0
    %4338 = vmatmul.mubr.bf16.gmra.mrb[0].mxu0 %v4295
    %v4339 = vpop.f32.mrb[0].mxu0
    %v4340 = vadd.f32 0.0, %v4339
    %v4341 = vpop.f32.mrb[0].mxu0
    %v4342 = vpop.f32.mrb[0].mxu0
    %v4343 = vadd.f32 0.0, %v4342
    %v4344 = vpop.f32.mrb[0].mxu0
    %4345 = vdwg.mxu0
    %4346 = vmatprep.subr.bf16.mxu0 0
    %4347 = vmatpush1.bf16.msra.mxu0 %v4278
    %4348 = vmatprep.subr.bf16.mxu0 0
    %4349 = vmatpush1.bf16.msra.mxu0 %v4279
    %4350 = vmatprep.subr.bf16.mxu0 0
    %4351 = vmatpush1.bf16.msra.mxu0 %v4280
    %4352 = vmatprep.subr.bf16.mxu0 0
    %4353 = vmatpush1.bf16.msra.mxu0 %v4281
    %4354 = vmatprep.subr.bf16.mxu0 0
    %4355 = vmatpush1.bf16.msra.mxu0 %v4282
    %4356 = vmatprep.subr.bf16.mxu0 0
    %4357 = vmatpush1.bf16.msra.mxu0 %v4283
    %4358 = vmatprep.subr.bf16.mxu0 0
    %4359 = vmatpush1.bf16.msra.mxu0 %v4284
    %4360 = vmatprep.subr.bf16.mxu0 0
    %4361 = vmatpush1.bf16.msra.mxu0 %v4285
    %4362 = vmatprep.subr.bf16.mxu0 0
    %4363 = vmatpush1.bf16.msra.mxu0 0
    %4364 = vmatprep.subr.bf16.mxu0 0
    %4365 = vmatpush1.bf16.msra.mxu0 0
    %4366 = vmatprep.subr.bf16.mxu0 0
    %4367 = vmatpush1.bf16.msra.mxu0 0
    %4368 = vmatprep.subr.bf16.mxu0 0
    %4369 = vmatpush1.bf16.msra.mxu0 0
    %4370 = vmatprep.subr.bf16.mxu0 0
    %4371 = vmatpush1.bf16.msra.mxu0 0
    %4372 = vmatprep.subr.bf16.mxu0 0
    %4373 = vmatpush1.bf16.msra.mxu0 0
    %4374 = vmatprep.subr.bf16.mxu0 0
    %4375 = vmatpush1.bf16.msra.mxu0 0
    %4376 = vmatprep.subr.bf16.mxu0 0
    %4377 = vmatpush1.bf16.msra.mxu0 0
    %4378 = vmatprep.mubr.bf16.mxu0 0
    %4379 = vmatmul.mubr.bf16.gmra.mrb[0].mxu0 %v4286
    %v4380 = vpop.f32.mrb[0].mxu0
    %v4381 = vadd.f32 %v4332, %v4380
    %v4382 = vpop.f32.mrb[0].mxu0
    %v4383 = vpop.f32.mrb[0].mxu0
    %v4384 = vadd.f32 %v4335, %v4383
    %v4385 = vpop.f32.mrb[0].mxu0
    %4386 = vmatprep.mubr.bf16.mxu0 0
    %4387 = vmatmul.mubr.bf16.gmra.mrb[0].mxu0 %v4287
    %v4388 = vpop.f32.mrb[0].mxu0
    %v4389 = vadd.f32 %v4340, %v4388
    %v4390 = vpop.f32.mrb[0].mxu0
    %v4391 = vpop.f32.mrb[0].mxu0
    %v4392 = vadd.f32 %v4343, %v4391
    %v4393 = vpop.f32.mrb[0].mxu0
    %4394 = vdwg.mxu0
    %v4395 = vld [vmem:[%s2 + $0xa] sm:$0x1]
    %v4396 = vlaneseq
    %v4397 = vshrl.u32 %v4396, 7
    %v4398 = vsub.s32 0, %v4397
    %v4399 = vrot.slane %v4395, %v4398
    %v4400 = vadd.f32 %v4381, %v4399
    %v4401 = vadd.f32 %v4384, %v4399
    %v4402 = vadd.f32 %v4389, %v4399
    %v4403 = vadd.f32 %v4392, %v4399
    %4404 = vmax.xlane.f32.xlu0 %v4400
    %v4405 = vpop.xlane.xlu0 %4404
    %4406 = vmax.xlane.f32.xlu0 %v4401
    %v4407 = vpop.xlane.xlu0 %4406
    %4408 = vmax.xlane.f32.xlu0 %v4402
    %v4409 = vpop.xlane.xlu0 %4408
    %4410 = vmax.xlane.f32.xlu0 %v4403
    %v4411 = vpop.xlane.xlu0 %4410
    %v4412 = vlaneseq
    %v4413 = vand.u32 %v4412, 127
    %vm4414 = vcmp.ge.f32.partialorder %v4400, %v4405
    %vm4415 = vcmp.ge.f32.partialorder %v4401, %v4407
    %vm4416 = vcmp.ge.f32.partialorder %v4402, %v4409
    %vm4417 = vcmp.ge.f32.partialorder %v4403, %v4411
    %v4418 = vsel %vm4414, %v4413, 1073741824
    %v4419 = vsel %vm4415, %v4413, 1073741824
    %v4420 = vsel %vm4416, %v4413, 1073741824
    %v4421 = vsel %vm4417, %v4413, 1073741824
    %v4422 = vand.u32 %v4418, 65535
    %v4423 = vshra.s32 %v4418, 16
    %v4424 = vcvt.s32.f32 %v4422
    %v4425 = vcvt.s32.f32 %v4423
    %4426 = vmin.xlane.f32.xlu0 %v4425
    %v4427 = vpop.xlane.xlu0 %4426
    %vm4428 = vcmp.eq.f32.partialorder %v4425, %v4427
    %v4429 = vsel %vm4428, %v4424, inf
    %4430 = vmin.xlane.f32.xlu0 %v4429
    %v4431 = vpop.xlane.xlu0 %4430
    %v4432 = vcvt.f32.s32 %v4431
    %v4433 = vcvt.f32.s32 %v4427
    %v4434 = vshll.u32 %v4433, 16
    %v4435 = vadd.s32 %v4434, %v4432
    %v4436 = vand.u32 %v4419, 65535
    %v4437 = vshra.s32 %v4419, 16
    %v4438 = vcvt.s32.f32 %v4436
    %v4439 = vcvt.s32.f32 %v4437
    %4440 = vmin.xlane.f32.xlu0 %v4439
    %v4441 = vpop.xlane.xlu0 %4440
    %vm4442 = vcmp.eq.f32.partialorder %v4439, %v4441
    %v4443 = vsel %vm4442, %v4438, inf
    %4444 = vmin.xlane.f32.xlu0 %v4443
    %v4445 = vpop.xlane.xlu0 %4444
    %v4446 = vcvt.f32.s32 %v4445
    %v4447 = vcvt.f32.s32 %v4441
    %v4448 = vshll.u32 %v4447, 16
    %v4449 = vadd.s32 %v4448, %v4446
    %v4450 = vand.u32 %v4420, 65535
    %v4451 = vshra.s32 %v4420, 16
    %v4452 = vcvt.s32.f32 %v4450
    %v4453 = vcvt.s32.f32 %v4451
    %4454 = vmin.xlane.f32.xlu0 %v4453
    %v4455 = vpop.xlane.xlu0 %4454
    %vm4456 = vcmp.eq.f32.partialorder %v4453, %v4455
    %v4457 = vsel %vm4456, %v4452, inf
    %4458 = vmin.xlane.f32.xlu0 %v4457
    %v4459 = vpop.xlane.xlu0 %4458
    %v4460 = vcvt.f32.s32 %v4459
    %v4461 = vcvt.f32.s32 %v4455
    %v4462 = vshll.u32 %v4461, 16
    %v4463 = vadd.s32 %v4462, %v4460
    %v4464 = vand.u32 %v4421, 65535
    %v4465 = vshra.s32 %v4421, 16
    %v4466 = vcvt.s32.f32 %v4464
    %v4467 = vcvt.s32.f32 %v4465
    %4468 = vmin.xlane.f32.xlu0 %v4467
    %v4469 = vpop.xlane.xlu0 %4468
    %vm4470 = vcmp.eq.f32.partialorder %v4467, %v4469
    %v4471 = vsel %vm4470, %v4466, inf
    %4472 = vmin.xlane.f32.xlu0 %v4471
    %v4473 = vpop.xlane.xlu0 %4472
    %v4474 = vcvt.f32.s32 %v4473
    %v4475 = vcvt.f32.s32 %v4469
    %v4476 = vshll.u32 %v4475, 16
    %v4477 = vadd.s32 %v4476, %v4474
    %vm4478 = vcmp.eq.s32.totalorder %v4413, %v4435
    %vm4479 = vcmp.eq.s32.totalorder %v4413, %v4449
    %vm4480 = vcmp.eq.s32.totalorder %v4413, %v4463
    %vm4481 = vcmp.eq.s32.totalorder %v4413, %v4477
    %v4482 = vsel %vm4478, 1, 0
    %v4483 = vsel %vm4479, 1, 0
    %v4484 = vsel %vm4480, 1, 0
    %v4485 = vsel %vm4481, 1, 0
    %v4486 = vcvt.s32.f32 %v4482
    %v4487 = vcvt.s32.f32 %v4483
    %v4488 = vcvt.s32.f32 %v4484
    %v4489 = vcvt.s32.f32 %v4485
    %4490 = vst [vmem:[%s7] sm:$0xff] %v4486
    %4491 = vst [vmem:[%s7 + $0x8] sm:$0xff] %v4487
    %4492 = vst [vmem:[%s7 + $0x10] sm:$0xff] %v4488
    %4493 = vst [vmem:[%s7 + $0x18] sm:$0xff] %v4489
    // Predicated region
    $region30: #{generator_forward.1} parent=1 // pred_check
      _
    $region31: #{generator_forward.1} parent=1 // pred_check_branch
      %4495 = sbr.rel (0) target = $region33
    $region32: #{generator_forward.1} parent=1 // pred_region
      _
    $region33: #{generator_forward.1} parent=1 // pred_fallthru
      _
    // Predicated region
    $region34: #{generator_forward.1} parent=1 // pred_check
      _
    $region35: #{generator_forward.1} parent=1 // pred_check_branch
      %4497 = sbr.rel (0) target = $region37
    $region36: #{generator_forward.1} parent=1 // pred_region
      _
    $region37: #{generator_forward.1} parent=1 // pred_fallthru
      _
    %4498 = vsyncpa [#allocation5], 1
  %4499 = vsyncmov [#allocation3]
  %s4500 = vpop.sfrf %4499
  %p4501 = scmp.eq.s32.totalorder %s4500, 0
  %p4502 = pneg %p4501
  %4504 = shalt.err (%p4502)

</llo_original>
